<compile_context>
chip_gen: v7x
topology: tpu7x:2x2x1
jax: 0.10.0
libtpu: 0.0.40
codegen_flags: <defaults>
</compile_context>

<pallas_src>
import functools

import jax
import jax.numpy as jnp
from jax import lax
from jax.experimental import pallas as pl
from jax.experimental.pallas import tpu as pltpu


def _rup(n, m):
    return ((n + m - 1) // m) * m


def _conv_out(sz, k, s, d):
    return (sz - d * (k - 1) - 1) // s + 1


# ---------------------------------------------------------------------------
# Kernel 1: conv1 (8->16, kernel (16,32), stride (4,4)), phase-decomposed.
#
# Writing kw = 4*kwq + r (r = W phase 0..3), conv1 factors into a single
# matmul with K = 4*C*KH and M = n_kwq*CO:
#     Z[kwq*CO+co, (g,wq)] = sum_{r,ci,kh} W[co,ci,kh,4kwq+r] * x[b,ci,4oh+kh,4wq+r]
# followed by a cheap in-VMEM shifted sum over kwq:
#     y[co, col] = sum_kwq Z[kwq*CO+co, col + kwq]
# The grid axis tiles the columns ("parallel": 2 TCs on v7x).
# ---------------------------------------------------------------------------
def _conv1_kernel(a_ref, p_ref, bias_ref, o_ref, *, n_kwq, co, cols_pad):
    # bf16 x bf16 -> f32 accumulation on the MXU.
    z = jnp.dot(a_ref[...], p_ref[...], preferred_element_type=jnp.float32)

    # Resolve kw offsets: y[co, col] = sum_q z[q*co + co_row, col + q].
    # roll(shift = cols_pad - q) == shift columns left by q with wrap; wrapped
    # columns only ever land in wq >= OW (discarded by the wrapper).
    y = z[:co, :]
    for q in range(1, n_kwq):
        zq = z[q * co:(q + 1) * co, :]
        y = y + pltpu.roll(zq, shift=cols_pad - q, axis=1)

    o_ref[...] = jnp.maximum(y + bias_ref[...], 0.0)


def conv1_relu(x, w, b):
    """Conv2d(8->16, kernel=(16,32), stride=(4,4), dil=(1,1), valid) + ReLU.

    x: (B, CI, H, W) f32, w: (CO, CI, KH, KW), b: (CO,)  ->  (B, CO, OH, OW) f32.
    """
    B, C, H, W = x.shape
    CO, CI, KH, KW = w.shape
    assert C == CI and KW % 4 == 0
    OH = _conv_out(H, KH, 4, 1)
    OW = _conv_out(W, KW, 4, 1)
    n_kwq = KW // 4

    wpad = (-W) % 4
    if wpad:  # padded columns are only read by discarded output columns
        x = jnp.pad(x, ((0, 0), (0, 0), (0, 0), (0, wpad)))
    Wq = x.shape[3] // 4
    # kw-shift safety: shifted/wrapped columns must land in wq >= OW.  Holds
    # for valid padding with stride 4 (Wq - OW = ceil(W/4) - floor(W/4) + n_kwq - 1).
    assert Wq - OW >= n_kwq - 1, (Wq, OW, n_kwq)

    # Column tiling: split the B*OH "rows" (each Wq wide) into NSPLIT tiles so
    # the kw shifts never cross a tile; pad each tile's columns to 128.
    nrow = B * OH
    nsplit = 2 if (nrow % 2 == 0 and nrow >= 2) else 1
    rs = nrow // nsplit
    cols = rs * Wq
    cols_pad = _rup(cols, 128)

    # P[s, r*C*KH + ci*KH + kh, g*Wq + wq] = x[b, ci, 4*oh+kh, 4*wq+r]
    #   with (b*OH + oh) == s*rs + g.
    xr = x.reshape(B, C, H, Wq, 4)
    h_idx = (jnp.arange(OH) * 4)[:, None] + jnp.arange(KH)[None, :]   # (OH, KH)
    xg = xr[:, :, h_idx, :, :]                                        # (B,C,OH,KH,Wq,4)
    p = jnp.transpose(xg, (5, 1, 3, 0, 2, 4))                         # (4,C,KH,B,OH,Wq)
    p = p.reshape(4 * C * KH, nsplit, cols)
    p = jnp.transpose(p, (1, 0, 2))                                   # (NSPLIT,K,cols)
    p = jnp.pad(p, ((0, 0), (0, 0), (0, cols_pad - cols)))
    p = p.astype(jnp.bfloat16)

    # A[kwq*CO + co, r*C*KH + ci*KH + kh] = w[co, ci, kh, 4*kwq + r]
    wr = w.reshape(CO, C, KH, n_kwq, 4)
    a = jnp.transpose(wr, (3, 0, 4, 1, 2)).reshape(n_kwq * CO, 4 * C * KH)
    a = a.astype(jnp.bfloat16)

    K = 4 * C * KH
    M = n_kwq * CO
    out = pl.pallas_call(
        functools.partial(_conv1_kernel, n_kwq=n_kwq, co=CO, cols_pad=cols_pad),
        out_shape=jax.ShapeDtypeStruct((CO, nsplit * cols_pad), jnp.float32),
        grid=(nsplit,),
        in_specs=[
            pl.BlockSpec((M, K), lambda s: (0, 0)),
            pl.BlockSpec((None, K, cols_pad), lambda s: (s, 0, 0)),
            pl.BlockSpec((CO, 1), lambda s: (0, 0)),
        ],
        out_specs=pl.BlockSpec((CO, cols_pad), lambda s: (0, s)),
        compiler_params=pltpu.CompilerParams(
            dimension_semantics=("parallel",)),
    )(a, p, b.astype(jnp.float32).reshape(CO, 1))

    y = out.reshape(CO, nsplit, cols_pad)[:, :, :cols]
    y = y.reshape(CO, B, OH, Wq)[:, :, :, :OW]       # drop kw-shift tail
    return jnp.transpose(y, (1, 0, 2, 3))            # back to NCHW


# ---------------------------------------------------------------------------
# Kernel 2: one-shot fused matmul + bias (+ ReLU) for the tiny layers,
# CO-major: out[m, n] = act(sum_k A[m,k] B[k,n] + bias[m]).  Full-array
# blocks (no explicit padding; Mosaic pads internally).
# ---------------------------------------------------------------------------
def _gemm_kernel(a_ref, b_ref, bias_ref, o_ref, *, relu):
    y = jnp.dot(a_ref[...], b_ref[...], preferred_element_type=jnp.float32)
    y = y + bias_ref[...]
    if relu:
        y = jnp.maximum(y, 0.0)
    o_ref[...] = y


def _gemm(a, b, bias, relu):
    """a: (M,K), b: (K,N), bias: (M,) -> (M,N) f32.  Single block (tiny ops)."""
    M, K = a.shape
    K2, N = b.shape
    assert K == K2
    return pl.pallas_call(
        functools.partial(_gemm_kernel, relu=relu),
        out_shape=jax.ShapeDtypeStruct((M, N), jnp.float32),
        grid=(1,),
        in_specs=[
            pl.BlockSpec((M, K), lambda i: (0, 0)),
            pl.BlockSpec((K, N), lambda i: (0, 0)),
            pl.BlockSpec((M, 1), lambda i: (0, 0)),
        ],
        out_specs=pl.BlockSpec((M, N), lambda i: (0, 0)),
    )(a.astype(jnp.float32), b.astype(jnp.float32),
      bias.astype(jnp.float32).reshape(M, 1))


# ---------------------------------------------------------------------------
# im2col (transposed, K-major rows matching w.reshape(CO, CI*KH*KW)) for the
# small conv layers (patch matrices < 1.5 MB, XLA glue is negligible here).
# ---------------------------------------------------------------------------
def _im2col_T(x, kh, kw, sh, sw, dh, dw):
    B, C, H, W = x.shape
    OH = _conv_out(H, kh, sh, dh)
    OW = _conv_out(W, kw, sw, dw)
    h_idx = (jnp.arange(OH) * sh)[:, None] + (jnp.arange(kh) * dh)[None, :]
    w_idx = (jnp.arange(OW) * sw)[:, None] + (jnp.arange(kw) * dw)[None, :]
    xg = x[:, :, h_idx, :]                      # (B, C, OH, KH, W)
    xg = xg[:, :, :, :, w_idx]                  # (B, C, OH, KH, OW, KW)
    xg = jnp.transpose(xg, (1, 3, 5, 0, 2, 4))  # (C, KH, KW, B, OH, OW)
    return xg.reshape(C * kh * kw, B * OH * OW), OH, OW


def conv2d_relu_small(x, w, b, stride, dilation):
    B = x.shape[0]
    CO, CI, KH, KW = w.shape
    pT, OH, OW = _im2col_T(x, KH, KW, stride[0], stride[1],
                           dilation[0], dilation[1])
    y = _gemm(w.reshape(CO, CI * KH * KW), pT, b, relu=True)   # (CO, B*OH*OW)
    return jnp.transpose(y.reshape(CO, B, OH, OW), (1, 0, 2, 3))


# ---------------------------------------------------------------------------
# Kernel 3: fused conv3 + fc1 head (conv3 spatial output is 1x1 here, so the
# two layers are two chained tiny GEMMs; batch-major so no output transpose).
# ---------------------------------------------------------------------------
def _head_kernel(p_ref, w3t_ref, b3_ref, wft_ref, bf_ref, o_ref):
    h = jnp.dot(p_ref[...], w3t_ref[...], preferred_element_type=jnp.float32)
    h = jnp.maximum(h + b3_ref[...], 0.0)                           # (Bp, CO3)
    o_ref[...] = (jnp.dot(h, wft_ref[...], preferred_element_type=jnp.float32)
                  + bf_ref[...])                                    # (Bp, FCout)


def conv3_fc_head(x, w3, b3, wf, bf, stride, dilation):
    B = x.shape[0]
    CO3, CI3, KH3, KW3 = w3.shape
    pT, OH3, OW3 = _im2col_T(x, KH3, KW3, stride[0], stride[1],
                             dilation[0], dilation[1])
    w3m = w3.reshape(CO3, CI3 * KH3 * KW3)
    fc_out, fc_in = wf.shape

    if OH3 * OW3 == 1 and fc_in == CO3:
        K3 = w3m.shape[1]
        Bp = _rup(B, 8)                       # pad batch rows to a sublane tile
        p3 = jnp.pad(jnp.transpose(pT).astype(jnp.float32), ((0, Bp - B), (0, 0)))
        out = pl.pallas_call(
            _head_kernel,
            out_shape=jax.ShapeDtypeStruct((Bp, fc_out), jnp.float32),
            grid=(1,),
            in_specs=[
                pl.BlockSpec((Bp, K3), lambda i: (0, 0)),
                pl.BlockSpec((K3, CO3), lambda i: (0, 0)),
                pl.BlockSpec((1, CO3), lambda i: (0, 0)),
                pl.BlockSpec((CO3, fc_out), lambda i: (0, 0)),
                pl.BlockSpec((1, fc_out), lambda i: (0, 0)),
            ],
            out_specs=pl.BlockSpec((Bp, fc_out), lambda i: (0, 0)),
        )(p3, jnp.transpose(w3m), b3.reshape(1, CO3),
          jnp.transpose(wf), bf.reshape(1, fc_out))
        return out[:B]                                               # (B, fc_out)

    # General fallback (conv3 spatial output > 1x1): two small GEMMs.
    y3 = _gemm(w3m, pT, b3, relu=True)                               # (CO3, B*OH3*OW3)
    y3 = jnp.transpose(y3.reshape(CO3, B, OH3, OW3), (1, 0, 2, 3)).reshape(B, -1)
    return jnp.transpose(_gemm(wf, jnp.transpose(y3), bf, relu=False))


# ---------------------------------------------------------------------------
# crossTalkConvNet
# ---------------------------------------------------------------------------
def init_params(key, input_dims):
    nfreqs, ntimes = input_dims
    h1, w1 = _conv_out(nfreqs, 16, 4, 1), _conv_out(ntimes, 32, 4, 1)
    h2, w2 = _conv_out(h1, 7, 2, 1), _conv_out(w1, 13, 2, 2)
    h3, w3 = _conv_out(h2, 4, 2, 1), _conv_out(w2, 8, 2, 4)
    fc_in = 64 * h3 * w3
    fc_out = 8 * 2 + 8  # 24

    ks = jax.random.split(key, 8)
    s = 0.05
    return {
        "w1": s * jax.random.normal(ks[0], (16, 8, 16, 32), jnp.float32),
        "b1": s * jax.random.normal(ks[1], (16,), jnp.float32),
        "w2": s * jax.random.normal(ks[2], (32, 16, 7, 13), jnp.float32),
        "b2": s * jax.random.normal(ks[3], (32,), jnp.float32),
        "w3": s * jax.random.normal(ks[4], (64, 32, 4, 8), jnp.float32),
        "b3": s * jax.random.normal(ks[5], (64,), jnp.float32),
        "wf": s * jax.random.normal(ks[6], (fc_out, fc_in), jnp.float32),
        "bf": s * jax.random.normal(ks[7], (fc_out,), jnp.float32),
    }


def cross_talk_conv_net_forward(params, x):
    """x: (B, 8, Nfreqs, Ntimes) f32 -> (B, 24) f32."""
    x = conv1_relu(x, params["w1"], params["b1"])
    x = conv2d_relu_small(x, params["w2"], params["b2"],
                          stride=(2, 2), dilation=(1, 2))
    return conv3_fc_head(x, params["w3"], params["b3"],
                         params["wf"], params["bf"],
                         stride=(2, 2), dilation=(1, 4))


# Pure-JAX f32 reference (sanity check; conv1 in the Pallas path uses bf16
# operands with f32 accumulation, so the check below is relative-error based).
def _reference_forward(params, x):
    hp = lax.Precision.HIGHEST

    def conv(x, w, b, stride, dilation):
        y = lax.conv_general_dilated(
            x, w, window_strides=stride, padding="VALID",
            rhs_dilation=dilation,
            dimension_numbers=("NCHW", "OIHW", "NCHW"), precision=hp)
        return jax.nn.relu(y + b.reshape(1, -1, 1, 1))

    x = conv(x, params["w1"], params["b1"], (4, 4), (1, 1))
    x = conv(x, params["w2"], params["b2"], (2, 2), (1, 2))
    x = conv(x, params["w3"], params["b3"], (2, 2), (1, 4))
    x = x.reshape(x.shape[0], -1)
    return jnp.matmul(x, params["wf"].T, precision=hp) + params["bf"]


if __name__ == "__main__":
    # Smallest input that survives the three valid convs: Nfreqs=64, Ntimes=352
    NFREQS, NTIMES, BATCH = 64, 352, 2
    key = jax.random.PRNGKey(0)
    k_param, k_in = jax.random.split(key)

    params = init_params(k_param, (NFREQS, NTIMES))
    x = jax.random.normal(k_in, (BATCH, 8, NFREQS, NTIMES), jnp.float32)

    out = jax.jit(cross_talk_conv_net_forward)(params, x)
    out = jax.block_until_ready(out)
    assert out.shape == (BATCH, 24), out.shape

    ref = jax.block_until_ready(jax.jit(_reference_forward)(params, x))
    err = float(jnp.max(jnp.abs(out - ref)))
    scale = float(jnp.max(jnp.abs(ref)))
    # Relative check (conv1 uses bf16 operands; expected rel err ~1%).
    assert err <= 5e-2 * max(scale, 1.0), f"err={err}, scale={scale}"
    print("KERNEL_OK")
</pallas_src>

<mosaic_0001>
module attributes {stable_mosaic.version = 11 : i64} {
  func.func @_conv1_kernel(%arg0: i32, %arg1: memref<128x512xbf16, #tpu.memory_space<vmem>>, %arg2: memref<1x512x1152xbf16, #tpu.memory_space<vmem>>, %arg3: memref<16x1xf32, #tpu.memory_space<vmem>>, %arg4: memref<16x1152xf32, #tpu.memory_space<vmem>>) attributes {dimension_semantics = [#tpu.dimension_semantics<parallel>], iteration_bounds = array<i64: 2>, scalar_prefetch = 0 : i64, scratch_operands = 0 : i64, tpu.core_type = #tpu.core_type<tc>, window_params = [{pipeline_mode = #tpu.pipeline_mode<synchronous>, transform_indices = @transform_0, window_bounds = array<i64: 128, 512>}, {transform_indices = @transform_1, window_bounds = array<i64: 1, 512, 1152>}, {pipeline_mode = #tpu.pipeline_mode<synchronous>, transform_indices = @transform_2, window_bounds = array<i64: 16, 1>}, {transform_indices = @transform_3, window_bounds = array<i64: 16, 1152>}]} {
    %c0 = arith.constant 0 : index
    %c0_0 = arith.constant 0 : index
    %0 = vector.load %arg1[%c0, %c0_0] : memref<128x512xbf16, #tpu.memory_space<vmem>>, vector<128x512xbf16>
    %c0_1 = arith.constant 0 : index
    %c0_2 = arith.constant 0 : index
    %c0_3 = arith.constant 0 : index
    %1 = vector.load %arg2[%c0_1, %c0_2, %c0_3] : memref<1x512x1152xbf16, #tpu.memory_space<vmem>>, vector<1x512x1152xbf16>
    %2 = vector.shape_cast %1 : vector<1x512x1152xbf16> to vector<512x1152xbf16>
    %cst = arith.constant dense<0.000000e+00> : vector<128x1152xf32>
    %3 = tpu.matmul %0, %2, %cst {dimension_numbers = #tpu.dot_dimension_numbers<[1], [0], [0], [1], [0, 0, 1, 1], [], []>} : vector<128x512xbf16>, vector<512x1152xbf16>, vector<128x1152xf32> -> vector<128x1152xf32>
    %4 = vector.extract_strided_slice %3 {offsets = [0, 0], sizes = [16, 1152], strides = [1, 1]} : vector<128x1152xf32> to vector<16x1152xf32>
    %5 = vector.extract_strided_slice %3 {offsets = [16, 0], sizes = [16, 1152], strides = [1, 1]} : vector<128x1152xf32> to vector<16x1152xf32>
    %c1151_i32 = arith.constant 1151 : i32
    %6 = tpu.dynamic_rotate %5 by %c1151_i32 dim 1 : vector<16x1152xf32>, i32 -> vector<16x1152xf32>
    %7 = arith.addf %4, %6 : vector<16x1152xf32>
    %8 = vector.extract_strided_slice %3 {offsets = [32, 0], sizes = [16, 1152], strides = [1, 1]} : vector<128x1152xf32> to vector<16x1152xf32>
    %c1150_i32 = arith.constant 1150 : i32
    %9 = tpu.dynamic_rotate %8 by %c1150_i32 dim 1 : vector<16x1152xf32>, i32 -> vector<16x1152xf32>
    %10 = arith.addf %7, %9 : vector<16x1152xf32>
    %11 = vector.extract_strided_slice %3 {offsets = [48, 0], sizes = [16, 1152], strides = [1, 1]} : vector<128x1152xf32> to vector<16x1152xf32>
    %c1149_i32 = arith.constant 1149 : i32
    %12 = tpu.dynamic_rotate %11 by %c1149_i32 dim 1 : vector<16x1152xf32>, i32 -> vector<16x1152xf32>
    %13 = arith.addf %10, %12 : vector<16x1152xf32>
    %14 = vector.extract_strided_slice %3 {offsets = [64, 0], sizes = [16, 1152], strides = [1, 1]} : vector<128x1152xf32> to vector<16x1152xf32>
    %c1148_i32 = arith.constant 1148 : i32
    %15 = tpu.dynamic_rotate %14 by %c1148_i32 dim 1 : vector<16x1152xf32>, i32 -> vector<16x1152xf32>
    %16 = arith.addf %13, %15 : vector<16x1152xf32>
    %17 = vector.extract_strided_slice %3 {offsets = [80, 0], sizes = [16, 1152], strides = [1, 1]} : vector<128x1152xf32> to vector<16x1152xf32>
    %c1147_i32 = arith.constant 1147 : i32
    %18 = tpu.dynamic_rotate %17 by %c1147_i32 dim 1 : vector<16x1152xf32>, i32 -> vector<16x1152xf32>
    %19 = arith.addf %16, %18 : vector<16x1152xf32>
    %20 = vector.extract_strided_slice %3 {offsets = [96, 0], sizes = [16, 1152], strides = [1, 1]} : vector<128x1152xf32> to vector<16x1152xf32>
    %c1146_i32 = arith.constant 1146 : i32
    %21 = tpu.dynamic_rotate %20 by %c1146_i32 dim 1 : vector<16x1152xf32>, i32 -> vector<16x1152xf32>
    %22 = arith.addf %19, %21 : vector<16x1152xf32>
    %23 = vector.extract_strided_slice %3 {offsets = [112, 0], sizes = [16, 1152], strides = [1, 1]} : vector<128x1152xf32> to vector<16x1152xf32>
    %c1145_i32 = arith.constant 1145 : i32
    %24 = tpu.dynamic_rotate %23 by %c1145_i32 dim 1 : vector<16x1152xf32>, i32 -> vector<16x1152xf32>
    %25 = arith.addf %22, %24 : vector<16x1152xf32>
    %c0_4 = arith.constant 0 : index
    %c0_5 = arith.constant 0 : index
    %26 = vector.load %arg3[%c0_4, %c0_5] : memref<16x1xf32, #tpu.memory_space<vmem>>, vector<16x1xf32>
    %27 = vector.broadcast %26 : vector<16x1xf32> to vector<16x1152xf32>
    %28 = arith.addf %25, %27 : vector<16x1152xf32>
    %cst_6 = arith.constant 0.000000e+00 : f32
    %29 = vector.broadcast %cst_6 : f32 to vector<16x1152xf32>
    %30 = arith.maximumf %28, %29 : vector<16x1152xf32>
    %c0_7 = arith.constant 0 : index
    %c0_8 = arith.constant 0 : index
    %31 = vector.load %arg4[%c0_7, %c0_8] : memref<16x1152xf32, #tpu.memory_space<vmem>>, vector<16x1152xf32>
    tpu.vector_store %arg4[%c0_7, %c0_8], %30 {strides = array<i32>} : memref<16x1152xf32, #tpu.memory_space<vmem>>, vector<16x1152xf32>,
    return
  }
  func.func @transform_0(%arg0: i32) -> (i32, i32) {
    %c0_i32 = arith.constant 0 : i32
    %c0_i32_0 = arith.constant 0 : i32
    %c0_i32_1 = arith.constant 0 : i32
    return %c0_i32, %c0_i32_0 : i32, i32
  }
  func.func @transform_1(%arg0: i32) -> (i32, i32, i32) {
    %c0_i32 = arith.constant 0 : i32
    %c0_i32_0 = arith.constant 0 : i32
    %c0_i32_1 = arith.constant 0 : i32
    return %arg0, %c0_i32, %c0_i32_0 : i32, i32, i32
  }
  func.func @transform_2(%arg0: i32) -> (i32, i32) {
    %c0_i32 = arith.constant 0 : i32
    %c0_i32_0 = arith.constant 0 : i32
    %c0_i32_1 = arith.constant 0 : i32
    return %c0_i32, %c0_i32_0 : i32, i32
  }
  func.func @transform_3(%arg0: i32) -> (i32, i32) {
    %c0_i32 = arith.constant 0 : i32
    %c0_i32_0 = arith.constant 0 : i32
    return %c0_i32, %arg0 : i32, i32
  }
}

module attributes {stable_mosaic.version = 11 : i64} {
  func.func @_gemm_kernel(%arg0: i32, %arg1: memref<32x1456xf32, #tpu.memory_space<vmem>>, %arg2: memref<1456x232xf32, #tpu.memory_space<vmem>>, %arg3: memref<32x1xf32, #tpu.memory_space<vmem>>, %arg4: memref<32x232xf32, #tpu.memory_space<vmem>>) attributes {dimension_semantics = [#tpu.dimension_semantics<arbitrary>], iteration_bounds = array<i64: 1>, scalar_prefetch = 0 : i64, scratch_operands = 0 : i64, tpu.core_type = #tpu.core_type<tc>, window_params = [{pipeline_mode = #tpu.pipeline_mode<synchronous>, transform_indices = @transform_0, window_bounds = array<i64: 32, 1456>}, {pipeline_mode = #tpu.pipeline_mode<synchronous>, transform_indices = @transform_1, window_bounds = array<i64: 1456, 232>}, {pipeline_mode = #tpu.pipeline_mode<synchronous>, transform_indices = @transform_2, window_bounds = array<i64: 32, 1>}, {pipeline_mode = #tpu.pipeline_mode<synchronous>, transform_indices = @transform_3, window_bounds = array<i64: 32, 232>}]} {
    %c0 = arith.constant 0 : index
    %c0_0 = arith.constant 0 : index
    %0 = vector.load %arg1[%c0, %c0_0] : memref<32x1456xf32, #tpu.memory_space<vmem>>, vector<32x1456xf32>
    %c0_1 = arith.constant 0 : index
    %c0_2 = arith.constant 0 : index
    %1 = vector.load %arg2[%c0_1, %c0_2] : memref<1456x232xf32, #tpu.memory_space<vmem>>, vector<1456x232xf32>
    %cst = arith.constant dense<0.000000e+00> : vector<32x232xf32>
    %2 = tpu.matmul %0, %1, %cst {dimension_numbers = #tpu.dot_dimension_numbers<[1], [0], [0], [1], [0, 0, 1, 1], [], []>} : vector<32x1456xf32>, vector<1456x232xf32>, vector<32x232xf32> -> vector<32x232xf32>
    %c0_3 = arith.constant 0 : index
    %c0_4 = arith.constant 0 : index
    %3 = vector.load %arg3[%c0_3, %c0_4] : memref<32x1xf32, #tpu.memory_space<vmem>>, vector<32x1xf32>
    %4 = vector.broadcast %3 : vector<32x1xf32> to vector<32x232xf32>
    %5 = arith.addf %2, %4 : vector<32x232xf32>
    %cst_5 = arith.constant 0.000000e+00 : f32
    %6 = vector.broadcast %cst_5 : f32 to vector<32x232xf32>
    %7 = arith.maximumf %5, %6 : vector<32x232xf32>
    %c0_6 = arith.constant 0 : index
    %c0_7 = arith.constant 0 : index
    %8 = vector.load %arg4[%c0_6, %c0_7] : memref<32x232xf32, #tpu.memory_space<vmem>>, vector<32x232xf32>
    tpu.vector_store %arg4[%c0_6, %c0_7], %7 {strides = array<i32>} : memref<32x232xf32, #tpu.memory_space<vmem>>, vector<32x232xf32>,
    return
  }
  func.func @transform_0(%arg0: i32) -> (i32, i32) {
    %c0_i32 = arith.constant 0 : i32
    %c0_i32_0 = arith.constant 0 : i32
    %c0_i32_1 = arith.constant 0 : i32
    return %c0_i32, %c0_i32_0 : i32, i32
  }
  func.func @transform_1(%arg0: i32) -> (i32, i32) {
    %c0_i32 = arith.constant 0 : i32
    %c0_i32_0 = arith.constant 0 : i32
    %c0_i32_1 = arith.constant 0 : i32
    return %c0_i32, %c0_i32_0 : i32, i32
  }
  func.func @transform_2(%arg0: i32) -> (i32, i32) {
    %c0_i32 = arith.constant 0 : i32
    %c0_i32_0 = arith.constant 0 : i32
    %c0_i32_1 = arith.constant 0 : i32
    return %c0_i32, %c0_i32_0 : i32, i32
  }
  func.func @transform_3(%arg0: i32) -> (i32, i32) {
    %c0_i32 = arith.constant 0 : i32
    %c0_i32_0 = arith.constant 0 : i32
    %c0_i32_1 = arith.constant 0 : i32
    return %c0_i32, %c0_i32_0 : i32, i32
  }
}

module attributes {stable_mosaic.version = 11 : i64} {
  func.func @_head_kernel(%arg0: i32, %arg1: memref<8x1024xf32, #tpu.memory_space<vmem>>, %arg2: memref<1024x64xf32, #tpu.memory_space<vmem>>, %arg3: memref<1x64xf32, #tpu.memory_space<vmem>>, %arg4: memref<64x24xf32, #tpu.memory_space<vmem>>, %arg5: memref<1x24xf32, #tpu.memory_space<vmem>>, %arg6: memref<8x24xf32, #tpu.memory_space<vmem>>) attributes {dimension_semantics = [#tpu.dimension_semantics<arbitrary>], iteration_bounds = array<i64: 1>, scalar_prefetch = 0 : i64, scratch_operands = 0 : i64, tpu.core_type = #tpu.core_type<tc>, window_params = [{pipeline_mode = #tpu.pipeline_mode<synchronous>, transform_indices = @transform_0, window_bounds = array<i64: 8, 1024>}, {pipeline_mode = #tpu.pipeline_mode<synchronous>, transform_indices = @transform_1, window_bounds = array<i64: 1024, 64>}, {pipeline_mode = #tpu.pipeline_mode<synchronous>, transform_indices = @transform_2, window_bounds = array<i64: 1, 64>}, {pipeline_mode = #tpu.pipeline_mode<synchronous>, transform_indices = @transform_3, window_bounds = array<i64: 64, 24>}, {pipeline_mode = #tpu.pipeline_mode<synchronous>, transform_indices = @transform_4, window_bounds = array<i64: 1, 24>}, {pipeline_mode = #tpu.pipeline_mode<synchronous>, transform_indices = @transform_5, window_bounds = array<i64: 8, 24>}]} {
    %c0 = arith.constant 0 : index
    %c0_0 = arith.constant 0 : index
    %0 = vector.load %arg1[%c0, %c0_0] : memref<8x1024xf32, #tpu.memory_space<vmem>>, vector<8x1024xf32>
    %c0_1 = arith.constant 0 : index
    %c0_2 = arith.constant 0 : index
    %1 = vector.load %arg2[%c0_1, %c0_2] : memref<1024x64xf32, #tpu.memory_space<vmem>>, vector<1024x64xf32>
    %cst = arith.constant dense<0.000000e+00> : vector<8x64xf32>
    %2 = tpu.matmul %0, %1, %cst {dimension_numbers = #tpu.dot_dimension_numbers<[1], [0], [0], [1], [0, 0, 1, 1], [], []>} : vector<8x1024xf32>, vector<1024x64xf32>, vector<8x64xf32> -> vector<8x64xf32>
    %c0_3 = arith.constant 0 : index
    %c0_4 = arith.constant 0 : index
    %3 = vector.load %arg3[%c0_3, %c0_4] : memref<1x64xf32, #tpu.memory_space<vmem>>, vector<1x64xf32>
    %4 = vector.broadcast %3 : vector<1x64xf32> to vector<8x64xf32>
    %5 = arith.addf %2, %4 : vector<8x64xf32>
    %cst_5 = arith.constant 0.000000e+00 : f32
    %6 = vector.broadcast %cst_5 : f32 to vector<8x64xf32>
    %7 = arith.maximumf %5, %6 : vector<8x64xf32>
    %c0_6 = arith.constant 0 : index
    %c0_7 = arith.constant 0 : index
    %8 = vector.load %arg4[%c0_6, %c0_7] : memref<64x24xf32, #tpu.memory_space<vmem>>, vector<64x24xf32>
    %cst_8 = arith.constant dense<0.000000e+00> : vector<8x24xf32>
    %9 = tpu.matmul %7, %8, %cst_8 {dimension_numbers = #tpu.dot_dimension_numbers<[1], [0], [0], [1], [0, 0, 1, 1], [], []>} : vector<8x64xf32>, vector<64x24xf32>, vector<8x24xf32> -> vector<8x24xf32>
    %c0_9 = arith.constant 0 : index
    %c0_10 = arith.constant 0 : index
    %10 = vector.load %arg5[%c0_9, %c0_10] : memref<1x24xf32, #tpu.memory_space<vmem>>, vector<1x24xf32>
    %11 = vector.broadcast %10 : vector<1x24xf32> to vector<8x24xf32>
    %12 = arith.addf %9, %11 : vector<8x24xf32>
    %c0_11 = arith.constant 0 : index
    %c0_12 = arith.constant 0 : index
    %13 = vector.load %arg6[%c0_11, %c0_12] : memref<8x24xf32, #tpu.memory_space<vmem>>, vector<8x24xf32>
    tpu.vector_store %arg6[%c0_11, %c0_12], %12 {strides = array<i32>} : memref<8x24xf32, #tpu.memory_space<vmem>>, vector<8x24xf32>,
    return
  }
  func.func @transform_0(%arg0: i32) -> (i32, i32) {
    %c0_i32 = arith.constant 0 : i32
    %c0_i32_0 = arith.constant 0 : i32
    %c0_i32_1 = arith.constant 0 : i32
    return %c0_i32, %c0_i32_0 : i32, i32
  }
  func.func @transform_1(%arg0: i32) -> (i32, i32) {
    %c0_i32 = arith.constant 0 : i32
    %c0_i32_0 = arith.constant 0 : i32
    %c0_i32_1 = arith.constant 0 : i32
    return %c0_i32, %c0_i32_0 : i32, i32
  }
  func.func @transform_2(%arg0: i32) -> (i32, i32) {
    %c0_i32 = arith.constant 0 : i32
    %c0_i32_0 = arith.constant 0 : i32
    %c0_i32_1 = arith.constant 0 : i32
    return %c0_i32, %c0_i32_0 : i32, i32
  }
  func.func @transform_3(%arg0: i32) -> (i32, i32) {
    %c0_i32 = arith.constant 0 : i32
    %c0_i32_0 = arith.constant 0 : i32
    %c0_i32_1 = arith.constant 0 : i32
    return %c0_i32, %c0_i32_0 : i32, i32
  }
  func.func @transform_4(%arg0: i32) -> (i32, i32) {
    %c0_i32 = arith.constant 0 : i32
    %c0_i32_0 = arith.constant 0 : i32
    %c0_i32_1 = arith.constant 0 : i32
    return %c0_i32, %c0_i32_0 : i32, i32
  }
  func.func @transform_5(%arg0: i32) -> (i32, i32) {
    %c0_i32 = arith.constant 0 : i32
    %c0_i32_0 = arith.constant 0 : i32
    %c0_i32_1 = arith.constant 0 : i32
    return %c0_i32, %c0_i32_0 : i32, i32
  }
}

</mosaic_0001>

<llo_original>
// kernel: cross_talk_conv_net_forward.3
$region0: #{cross_talk_conv_net_forward.3}
  #allocation0 [shape = 'u32[]', space=smem, size = 0x4, offset = 0x4, fixed_abs, tag = 'smem constant byte address 0x4 - core index']
  #allocation1 [shape = 'u32[144,128]{1,0:T(1,128)}', space=vmem, size = 0x12000, scoped, tag = 'internal scratch']
  %s0 = inlined_call_operand.vmem [shape: bf16[128,512], index: 0, kind: input, shape index: {}]
  %s1 = inlined_call_operand.vmem [shape: bf16[2,512,1152], index: 1, kind: input, shape index: {}]
  %s2 = inlined_call_operand.vmem [shape: f32[16,1], index: 2, kind: input, shape index: {}]
  %s3 = inlined_call_operand.vmem [shape: f32[16,2304], index: 3, kind: output, shape index: {}]
  %s4 = sld [smem:[#allocation0]]
  $region64: #{cross_talk_conv_net_forward.3} parent=0
    _
  %s6 = ssub.s32 1, %s4
  %s7 = scalar_select 0, %s6, %s4
  $region1: #{cross_talk_conv_net_forward.3} parent=0
    #allocation2 [shape = 'u8[147456]{0}', space=vmem, size = 0x24000, scoped, tag = 'output window, operand 0']
    loop: start=0, step=1, limit=4
    $region2: #{cross_talk_conv_net_forward.3} parent=1 // loop_pre_header
      _
    $region3: #{cross_talk_conv_net_forward.3} parent=1 // loop_header
      %s9 = sphi 0, %s13
      %p10 = scmp.ge.s32.totalorder %s9, 4
      %s17 = sphi 0, %s17
      %s19 = sphi 0, %s17
      %s20 = sphi 0, %s19
      %s34 = sphi 0, %s20
      %s40 = sphi 0, %s42
      %s43 = sphi 0, %s40
      %s44 = sphi 0, %s43
      %s60 = sphi 0, %s44
      %s64 = sphi 0, %s64
      %s66 = sphi 0, %s64
      %s67 = sphi 0, %s66
      %s81 = sphi 0, %s67
      %s87 = sphi 0, %s89
      %s90 = sphi 0, %s87
      %s91 = sphi 0, %s90
      %s107 = sphi 0, %s91
    $region4: #{cross_talk_conv_net_forward.3} parent=1 // loop_header_branch
      %12 = sbr.rel (%p10) target = $region8
    $region5: #{cross_talk_conv_net_forward.3} parent=1 // loop_body
      %s14 = ssub.s32 %s9, 1
      %s15 = ssub.s32 %s9, 2
      %s16 = sadd.s32 %s9, 1
      %s18 = sadd.s32 %s17, 1
      %p21 = scmp.eq.s32.totalorder %s9, 1
      %p22 = scmp.ne.s32.totalorder %s17, %s19
      %p23 = scmp.eq.s32.totalorder %s9, 0
      %p24 = por %p22, %p23
      %p25 = scmp.ne.s32.totalorder %s17, %s19
      %p26 = scmp.eq.s32.totalorder %s14, 1
      %p27 = por %p25, %p26
      %p28 = scmp.ne.s32.totalorder %s19, %s20
      %p29 = scmp.eq.s32.totalorder %s14, 0
      %p30 = por %p28, %p29
      %p31 = scmp.ne.s32.totalorder %s19, %s20
      %p32 = scmp.eq.s32.totalorder %s15, 1
      %p33 = por %p31, %p32
      %p35 = scmp.ne.s32.totalorder %s20, %s34
      %p36 = scmp.eq.s32.totalorder %s15, 0
      %p37 = por %p35, %p36
      %s38 = ssub.s32 %s9, %s16
      %p39 = scmp.eq.s32.totalorder %s38, 0
      %s41 = sadd.s32 %s40, 1
      %s42 = scalar_select %p39, %s40, %s41
      %p45 = pneg %p39
      %p46 = scmp.eq.s32.totalorder %s9, 1
      %p47 = por %p45, %p46
      %p48 = scmp.ne.s32.totalorder %s40, %s43
      %p49 = scmp.eq.s32.totalorder %s9, 0
      %p50 = por %p48, %p49
      %p51 = scmp.ne.s32.totalorder %s40, %s43
      %p52 = scmp.eq.s32.totalorder %s14, 1
      %p53 = por %p51, %p52
      %p54 = scmp.ne.s32.totalorder %s43, %s44
      %p55 = scmp.eq.s32.totalorder %s14, 0
      %p56 = por %p54, %p55
      %p57 = scmp.ne.s32.totalorder %s43, %s44
      %p58 = scmp.eq.s32.totalorder %s15, 1
      %p59 = por %p57, %p58
      %p61 = scmp.ne.s32.totalorder %s44, %s60
      %p62 = scmp.eq.s32.totalorder %s15, 0
      %p63 = por %p61, %p62
      %s65 = sadd.s32 %s64, 1
      %p68 = scmp.eq.s32.totalorder %s9, 1
      %p69 = scmp.ne.s32.totalorder %s64, %s66
      %p70 = scmp.eq.s32.totalorder %s9, 0
      %p71 = por %p69, %p70
      %p72 = scmp.ne.s32.totalorder %s64, %s66
      %p73 = scmp.eq.s32.totalorder %s14, 1
      %p74 = por %p72, %p73
      %p75 = scmp.ne.s32.totalorder %s66, %s67
      %p76 = scmp.eq.s32.totalorder %s14, 0
      %p77 = por %p75, %p76
      %p78 = scmp.ne.s32.totalorder %s66, %s67
      %p79 = scmp.eq.s32.totalorder %s15, 1
      %p80 = por %p78, %p79
      %p82 = scmp.ne.s32.totalorder %s67, %s81
      %p83 = scmp.eq.s32.totalorder %s15, 0
      %p84 = por %p82, %p83
      %s85 = ssub.s32 %s9, %s16
      %p86 = scmp.eq.s32.totalorder %s85, 0
      %s88 = sadd.s32 %s87, 1
      %s89 = scalar_select %p86, %s87, %s88
      %p92 = pneg %p86
      %p93 = scmp.eq.s32.totalorder %s9, 1
      %p94 = por %p92, %p93
      %p95 = scmp.ne.s32.totalorder %s87, %s90
      %p96 = scmp.eq.s32.totalorder %s9, 0
      %p97 = por %p95, %p96
      %p98 = scmp.ne.s32.totalorder %s87, %s90
      %p99 = scmp.eq.s32.totalorder %s14, 1
      %p100 = por %p98, %p99
      %p101 = scmp.ne.s32.totalorder %s90, %s91
      %p102 = scmp.eq.s32.totalorder %s14, 0
      %p103 = por %p101, %p102
      %p104 = scmp.ne.s32.totalorder %s90, %s91
      %p105 = scmp.eq.s32.totalorder %s15, 1
      %p106 = por %p104, %p105
      %p108 = scmp.ne.s32.totalorder %s91, %s107
      %p109 = scmp.eq.s32.totalorder %s15, 0
      %p110 = por %p108, %p109
      %p111 = scmp.le.s32.totalorder 1, %s9
      %p112 = scmp.lt.s32.totalorder %s9, 3
      %p113 = pnand %p111, %p112
      %p114 = pneg %p113
      // Predicated region
      $region9: #{cross_talk_conv_net_forward.3} parent=5 // pred_check
        _
      $region10: #{cross_talk_conv_net_forward.3} parent=5 // pred_check_branch
        %116 = sbr.rel (%p113) target = $region12
      $region11: #{cross_talk_conv_net_forward.3} parent=5 // pred_region
        %s117 = ssub.s32 %s9, 1
        // Predicated region
        $region13: #{cross_talk_conv_net_forward.3} parent=11 // pred_check
          %p118 = pneg %p30
        $region14: #{cross_talk_conv_net_forward.3} parent=11 // pred_check_branch
          %120 = sbr.rel (%p118) target = $region16
        $region15: #{cross_talk_conv_net_forward.3} parent=11 // pred_region
          _
        $region16: #{cross_talk_conv_net_forward.3} parent=11 // pred_fallthru
          _
        // Predicated region
        $region17: #{cross_talk_conv_net_forward.3} parent=11 // pred_check
          %p121 = pneg %p77
        $region18: #{cross_talk_conv_net_forward.3} parent=11 // pred_check_branch
          %123 = sbr.rel (%p121) target = $region20
        $region19: #{cross_talk_conv_net_forward.3} parent=11 // pred_region
          _
        $region20: #{cross_talk_conv_net_forward.3} parent=11 // pred_fallthru
          _
      $region12: #{cross_talk_conv_net_forward.3} parent=5 // pred_fallthru
        _
      %p124 = scmp.lt.s32.totalorder %s9, 2
      // Predicated region
      $region21: #{cross_talk_conv_net_forward.3} parent=5 // pred_check
        %p125 = pneg %p124
      $region22: #{cross_talk_conv_net_forward.3} parent=5 // pred_check_branch
        %127 = sbr.rel (%p125) target = $region24
      $region23: #{cross_talk_conv_net_forward.3} parent=5 // pred_region
        // Predicated region
        $region25: #{cross_talk_conv_net_forward.3} parent=23 // pred_check
          %p128 = pneg %p50
        $region26: #{cross_talk_conv_net_forward.3} parent=23 // pred_check_branch
          %130 = sbr.rel (%p128) target = $region28
        $region27: #{cross_talk_conv_net_forward.3} parent=23 // pred_region
          %p131 = scmp.lt.s32.totalorder %s9, 1
          %s132 = scalar_select %p131, %s9, 1
          %s133 = smul.addr %s132, 576
          %s134 = smul.addr %s133, 4
          %s135 = scalar_lea.vmem %s1, %s134
        $region28: #{cross_talk_conv_net_forward.3} parent=23 // pred_fallthru
          _
      $region24: #{cross_talk_conv_net_forward.3} parent=5 // pred_fallthru
        _
      %p136 = scmp.le.s32.totalorder 1, %s9
      %p137 = scmp.lt.s32.totalorder %s9, 3
      %p138 = pnand %p136, %p137
      %p139 = pneg %p138
      // Predicated region
      $region29: #{cross_talk_conv_net_forward.3} parent=5 // pred_check
        _
      $region30: #{cross_talk_conv_net_forward.3} parent=5 // pred_check_branch
        %141 = sbr.rel (%p138) target = $region32
      $region31: #{cross_talk_conv_net_forward.3} parent=5 // pred_region
        %s142 = ssub.s32 %s9, 1
        %p143 = pneg %p30
        %p144 = pneg %p27
        %p145 = scmp.lt.s32.totalorder %s14, 1
        %s146 = scalar_select %p145, %s14, 1
        %s147 = smul.addr %s146, 576
        %s148 = smul.addr %s147, 4
        %s149 = scalar_lea.vmem %s1, %s148
        %p150 = pneg %p56
        %p151 = pneg %p53
        %p152 = pneg %p77
        %p153 = pneg %p74
        %p154 = pneg %p103
        %p155 = pneg %p100
        %s156 = sand.u32 %s90, 1
        %s157 = sand.u32 %s90, 1
        %s158 = smul.addr %s157, 144
        %s159 = scalar_lea.vmem [#allocation2], %s158
        %p160 = scmp.lt.s32.totalorder %s14, 1
        %s161 = scalar_select %p160, %s14, 1
        %s162 = smul.addr %s161, 576
        %s163 = smul.addr %s162, 4
        %s164 = scalar_lea.vmem %s1, %s163
        %s165 = smul.u32 9, %s14
        %v167 = vld [vmem:[%s0] sm:$0xff]
        %v168 = vld [vmem:[%s0 + $0x8] sm:$0xff]
        %v169 = vld [vmem:[%s0 + $0x10] sm:$0xff]
        %v170 = vld [vmem:[%s0 + $0x18] sm:$0xff]
        %v171 = vld [vmem:[%s0 + $0x20] sm:$0xff]
        %v172 = vld [vmem:[%s0 + $0x28] sm:$0xff]
        %v173 = vld [vmem:[%s0 + $0x30] sm:$0xff]
        %v174 = vld [vmem:[%s0 + $0x38] sm:$0xff]
        %v175 = vld [vmem:[%s0 + $0x40] sm:$0xff]
        %v176 = vld [vmem:[%s0 + $0x48] sm:$0xff]
        %v177 = vld [vmem:[%s0 + $0x50] sm:$0xff]
        %v178 = vld [vmem:[%s0 + $0x58] sm:$0xff]
        %v179 = vld [vmem:[%s0 + $0x60] sm:$0xff]
        %v180 = vld [vmem:[%s0 + $0x68] sm:$0xff]
        %v181 = vld [vmem:[%s0 + $0x70] sm:$0xff]
        %v182 = vld [vmem:[%s0 + $0x78] sm:$0xff]
        %v183 = vld [vmem:[%s0 + $0x80] sm:$0xff]
        %v184 = vld [vmem:[%s0 + $0x88] sm:$0xff]
        %v185 = vld [vmem:[%s0 + $0x90] sm:$0xff]
        %v186 = vld [vmem:[%s0 + $0x98] sm:$0xff]
        %v187 = vld [vmem:[%s0 + $0xa0] sm:$0xff]
        %v188 = vld [vmem:[%s0 + $0xa8] sm:$0xff]
        %v189 = vld [vmem:[%s0 + $0xb0] sm:$0xff]
        %v190 = vld [vmem:[%s0 + $0xb8] sm:$0xff]
        %v191 = vld [vmem:[%s0 + $0xc0] sm:$0xff]
        %v192 = vld [vmem:[%s0 + $0xc8] sm:$0xff]
        %v193 = vld [vmem:[%s0 + $0xd0] sm:$0xff]
        %v194 = vld [vmem:[%s0 + $0xd8] sm:$0xff]
        %v195 = vld [vmem:[%s0 + $0xe0] sm:$0xff]
        %v196 = vld [vmem:[%s0 + $0xe8] sm:$0xff]
        %v197 = vld [vmem:[%s0 + $0xf0] sm:$0xff]
        %v198 = vld [vmem:[%s0 + $0xf8] sm:$0xff]
        %v199 = vld [vmem:[%s164] sm:$0xff]
        %v200 = vld [vmem:[%s164 + $0x8] sm:$0xff]
        %v201 = vld [vmem:[%s164 + $0x10] sm:$0xff]
        %v202 = vld [vmem:[%s164 + $0x18] sm:$0xff]
        %v203 = vld [vmem:[%s164 + $0x20] sm:$0xf]
        %v204 = vld [vmem:[%s164 + $0x24] sm:$0xff]
        %v205 = vld [vmem:[%s164 + $0x2c] sm:$0xff]
        %v206 = vld [vmem:[%s164 + $0x34] sm:$0xff]
        %v207 = vld [vmem:[%s164 + $0x3c] sm:$0xff]
        %v208 = vld [vmem:[%s164 + $0x44] sm:$0xf]
        %v209 = vld [vmem:[%s164 + $0x48] sm:$0xff]
        %v210 = vld [vmem:[%s164 + $0x50] sm:$0xff]
        %v211 = vld [vmem:[%s164 + $0x58] sm:$0xff]
        %v212 = vld [vmem:[%s164 + $0x60] sm:$0xff]
        %v213 = vld [vmem:[%s164 + $0x68] sm:$0xf]
        %v214 = vld [vmem:[%s164 + $0x6c] sm:$0xff]
        %v215 = vld [vmem:[%s164 + $0x74] sm:$0xff]
        %v216 = vld [vmem:[%s164 + $0x7c] sm:$0xff]
        %v217 = vld [vmem:[%s164 + $0x84] sm:$0xff]
        %v218 = vld [vmem:[%s164 + $0x8c] sm:$0xf]
        %v219 = vld [vmem:[%s164 + $0x90] sm:$0xff]
        %v220 = vld [vmem:[%s164 + $0x98] sm:$0xff]
        %v221 = vld [vmem:[%s164 + $0xa0] sm:$0xff]
        %v222 = vld [vmem:[%s164 + $0xa8] sm:$0xff]
        %v223 = vld [vmem:[%s164 + $0xb0] sm:$0xf]
        %v224 = vld [vmem:[%s164 + $0xb4] sm:$0xff]
        %v225 = vld [vmem:[%s164 + $0xbc] sm:$0xff]
        %v226 = vld [vmem:[%s164 + $0xc4] sm:$0xff]
        %v227 = vld [vmem:[%s164 + $0xcc] sm:$0xff]
        %v228 = vld [vmem:[%s164 + $0xd4] sm:$0xf]
        %v229 = vld [vmem:[%s164 + $0xd8] sm:$0xff]
        %v230 = vld [vmem:[%s164 + $0xe0] sm:$0xff]
        %v231 = vld [vmem:[%s164 + $0xe8] sm:$0xff]
        %v232 = vld [vmem:[%s164 + $0xf0] sm:$0xff]
        %v233 = vld [vmem:[%s164 + $0xf8] sm:$0xf]
        %v234 = vld [vmem:[%s164 + $0xfc] sm:$0xff]
        %v235 = vld [vmem:[%s164 + $0x104] sm:$0xff]
        %v236 = vld [vmem:[%s164 + $0x10c] sm:$0xff]
        %v237 = vld [vmem:[%s164 + $0x114] sm:$0xff]
        %v238 = vld [vmem:[%s164 + $0x11c] sm:$0xf]
        %v239 = vld [vmem:[%s164 + $0x120] sm:$0xff]
        %v240 = vld [vmem:[%s164 + $0x128] sm:$0xff]
        %v241 = vld [vmem:[%s164 + $0x130] sm:$0xff]
        %v242 = vld [vmem:[%s164 + $0x138] sm:$0xff]
        %v243 = vld [vmem:[%s164 + $0x140] sm:$0xf]
        %v244 = vld [vmem:[%s164 + $0x144] sm:$0xff]
        %v245 = vld [vmem:[%s164 + $0x14c] sm:$0xff]
        %v246 = vld [vmem:[%s164 + $0x154] sm:$0xff]
        %v247 = vld [vmem:[%s164 + $0x15c] sm:$0xff]
        %v248 = vld [vmem:[%s164 + $0x164] sm:$0xf]
        %v249 = vld [vmem:[%s164 + $0x168] sm:$0xff]
        %v250 = vld [vmem:[%s164 + $0x170] sm:$0xff]
        %v251 = vld [vmem:[%s164 + $0x178] sm:$0xff]
        %v252 = vld [vmem:[%s164 + $0x180] sm:$0xff]
        %v253 = vld [vmem:[%s164 + $0x188] sm:$0xf]
        %v254 = vld [vmem:[%s164 + $0x18c] sm:$0xff]
        %v255 = vld [vmem:[%s164 + $0x194] sm:$0xff]
        %v256 = vld [vmem:[%s164 + $0x19c] sm:$0xff]
        %v257 = vld [vmem:[%s164 + $0x1a4] sm:$0xff]
        %v258 = vld [vmem:[%s164 + $0x1ac] sm:$0xf]
        %v259 = vld [vmem:[%s164 + $0x1b0] sm:$0xff]
        %v260 = vld [vmem:[%s164 + $0x1b8] sm:$0xff]
        %v261 = vld [vmem:[%s164 + $0x1c0] sm:$0xff]
        %v262 = vld [vmem:[%s164 + $0x1c8] sm:$0xff]
        %v263 = vld [vmem:[%s164 + $0x1d0] sm:$0xf]
        %v264 = vld [vmem:[%s164 + $0x1d4] sm:$0xff]
        %v265 = vld [vmem:[%s164 + $0x1dc] sm:$0xff]
        %v266 = vld [vmem:[%s164 + $0x1e4] sm:$0xff]
        %v267 = vld [vmem:[%s164 + $0x1ec] sm:$0xff]
        %v268 = vld [vmem:[%s164 + $0x1f4] sm:$0xf]
        %v269 = vld [vmem:[%s164 + $0x1f8] sm:$0xff]
        %v270 = vld [vmem:[%s164 + $0x200] sm:$0xff]
        %v271 = vld [vmem:[%s164 + $0x208] sm:$0xff]
        %v272 = vld [vmem:[%s164 + $0x210] sm:$0xff]
        %v273 = vld [vmem:[%s164 + $0x218] sm:$0xf]
        %v274 = vld [vmem:[%s164 + $0x21c] sm:$0xff]
        %v275 = vld [vmem:[%s164 + $0x224] sm:$0xff]
        %v276 = vld [vmem:[%s164 + $0x22c] sm:$0xff]
        %v277 = vld [vmem:[%s164 + $0x234] sm:$0xff]
        %v278 = vld [vmem:[%s164 + $0x23c] sm:$0xf]
        %v279 = vld [vmem:[%s164 + $0x240] sm:$0xff]
        %v280 = vld [vmem:[%s164 + $0x248] sm:$0xff]
        %v281 = vld [vmem:[%s164 + $0x250] sm:$0xff]
        %v282 = vld [vmem:[%s164 + $0x258] sm:$0xff]
        %v283 = vld [vmem:[%s164 + $0x260] sm:$0xf]
        %v284 = vld [vmem:[%s164 + $0x264] sm:$0xff]
        %v285 = vld [vmem:[%s164 + $0x26c] sm:$0xff]
        %v286 = vld [vmem:[%s164 + $0x274] sm:$0xff]
        %v287 = vld [vmem:[%s164 + $0x27c] sm:$0xff]
        %v288 = vld [vmem:[%s164 + $0x284] sm:$0xf]
        %v289 = vld [vmem:[%s164 + $0x288] sm:$0xff]
        %v290 = vld [vmem:[%s164 + $0x290] sm:$0xff]
        %v291 = vld [vmem:[%s164 + $0x298] sm:$0xff]
        %v292 = vld [vmem:[%s164 + $0x2a0] sm:$0xff]
        %v293 = vld [vmem:[%s164 + $0x2a8] sm:$0xf]
        %v294 = vld [vmem:[%s164 + $0x2ac] sm:$0xff]
        %v295 = vld [vmem:[%s164 + $0x2b4] sm:$0xff]
        %v296 = vld [vmem:[%s164 + $0x2bc] sm:$0xff]
        %v297 = vld [vmem:[%s164 + $0x2c4] sm:$0xff]
        %v298 = vld [vmem:[%s164 + $0x2cc] sm:$0xf]
        %v299 = vld [vmem:[%s164 + $0x2d0] sm:$0xff]
        %v300 = vld [vmem:[%s164 + $0x2d8] sm:$0xff]
        %v301 = vld [vmem:[%s164 + $0x2e0] sm:$0xff]
        %v302 = vld [vmem:[%s164 + $0x2e8] sm:$0xff]
        %v303 = vld [vmem:[%s164 + $0x2f0] sm:$0xf]
        %v304 = vld [vmem:[%s164 + $0x2f4] sm:$0xff]
        %v305 = vld [vmem:[%s164 + $0x2fc] sm:$0xff]
        %v306 = vld [vmem:[%s164 + $0x304] sm:$0xff]
        %v307 = vld [vmem:[%s164 + $0x30c] sm:$0xff]
        %v308 = vld [vmem:[%s164 + $0x314] sm:$0xf]
        %v309 = vld [vmem:[%s164 + $0x318] sm:$0xff]
        %v310 = vld [vmem:[%s164 + $0x320] sm:$0xff]
        %v311 = vld [vmem:[%s164 + $0x328] sm:$0xff]
        %v312 = vld [vmem:[%s164 + $0x330] sm:$0xff]
        %v313 = vld [vmem:[%s164 + $0x338] sm:$0xf]
        %v314 = vld [vmem:[%s164 + $0x33c] sm:$0xff]
        %v315 = vld [vmem:[%s164 + $0x344] sm:$0xff]
        %v316 = vld [vmem:[%s164 + $0x34c] sm:$0xff]
        %v317 = vld [vmem:[%s164 + $0x354] sm:$0xff]
        %v318 = vld [vmem:[%s164 + $0x35c] sm:$0xf]
        %v319 = vld [vmem:[%s164 + $0x360] sm:$0xff]
        %v320 = vld [vmem:[%s164 + $0x368] sm:$0xff]
        %v321 = vld [vmem:[%s164 + $0x370] sm:$0xff]
        %v322 = vld [vmem:[%s164 + $0x378] sm:$0xff]
        %v323 = vld [vmem:[%s164 + $0x380] sm:$0xf]
        %v324 = vld [vmem:[%s164 + $0x384] sm:$0xff]
        %v325 = vld [vmem:[%s164 + $0x38c] sm:$0xff]
        %v326 = vld [vmem:[%s164 + $0x394] sm:$0xff]
        %v327 = vld [vmem:[%s164 + $0x39c] sm:$0xff]
        %v328 = vld [vmem:[%s164 + $0x3a4] sm:$0xf]
        %v329 = vld [vmem:[%s164 + $0x3a8] sm:$0xff]
        %v330 = vld [vmem:[%s164 + $0x3b0] sm:$0xff]
        %v331 = vld [vmem:[%s164 + $0x3b8] sm:$0xff]
        %v332 = vld [vmem:[%s164 + $0x3c0] sm:$0xff]
        %v333 = vld [vmem:[%s164 + $0x3c8] sm:$0xf]
        %v334 = vld [vmem:[%s164 + $0x3cc] sm:$0xff]
        %v335 = vld [vmem:[%s164 + $0x3d4] sm:$0xff]
        %v336 = vld [vmem:[%s164 + $0x3dc] sm:$0xff]
        %v337 = vld [vmem:[%s164 + $0x3e4] sm:$0xff]
        %v338 = vld [vmem:[%s164 + $0x3ec] sm:$0xf]
        %v339 = vld [vmem:[%s164 + $0x3f0] sm:$0xff]
        %v340 = vld [vmem:[%s164 + $0x3f8] sm:$0xff]
        %v341 = vld [vmem:[%s164 + $0x400] sm:$0xff]
        %v342 = vld [vmem:[%s164 + $0x408] sm:$0xff]
        %v343 = vld [vmem:[%s164 + $0x410] sm:$0xf]
        %v344 = vld [vmem:[%s164 + $0x414] sm:$0xff]
        %v345 = vld [vmem:[%s164 + $0x41c] sm:$0xff]
        %v346 = vld [vmem:[%s164 + $0x424] sm:$0xff]
        %v347 = vld [vmem:[%s164 + $0x42c] sm:$0xff]
        %v348 = vld [vmem:[%s164 + $0x434] sm:$0xf]
        %v349 = vld [vmem:[%s164 + $0x438] sm:$0xff]
        %v350 = vld [vmem:[%s164 + $0x440] sm:$0xff]
        %v351 = vld [vmem:[%s164 + $0x448] sm:$0xff]
        %v352 = vld [vmem:[%s164 + $0x450] sm:$0xff]
        %v353 = vld [vmem:[%s164 + $0x458] sm:$0xf]
        %v354 = vld [vmem:[%s164 + $0x45c] sm:$0xff]
        %v355 = vld [vmem:[%s164 + $0x464] sm:$0xff]
        %v356 = vld [vmem:[%s164 + $0x46c] sm:$0xff]
        %v357 = vld [vmem:[%s164 + $0x474] sm:$0xff]
        %v358 = vld [vmem:[%s164 + $0x47c] sm:$0xf]
        %v359 = vld [vmem:[%s164 + $0x480] sm:$0xff]
        %v360 = vld [vmem:[%s164 + $0x488] sm:$0xff]
        %v361 = vld [vmem:[%s164 + $0x490] sm:$0xff]
        %v362 = vld [vmem:[%s164 + $0x498] sm:$0xff]
        %v363 = vld [vmem:[%s164 + $0x4a0] sm:$0xf]
        %v364 = vld [vmem:[%s164 + $0x4a4] sm:$0xff]
        %v365 = vld [vmem:[%s164 + $0x4ac] sm:$0xff]
        %v366 = vld [vmem:[%s164 + $0x4b4] sm:$0xff]
        %v367 = vld [vmem:[%s164 + $0x4bc] sm:$0xff]
        %v368 = vld [vmem:[%s164 + $0x4c4] sm:$0xf]
        %v369 = vld [vmem:[%s164 + $0x4c8] sm:$0xff]
        %v370 = vld [vmem:[%s164 + $0x4d0] sm:$0xff]
        %v371 = vld [vmem:[%s164 + $0x4d8] sm:$0xff]
        %v372 = vld [vmem:[%s164 + $0x4e0] sm:$0xff]
        %v373 = vld [vmem:[%s164 + $0x4e8] sm:$0xf]
        %v374 = vld [vmem:[%s164 + $0x4ec] sm:$0xff]
        %v375 = vld [vmem:[%s164 + $0x4f4] sm:$0xff]
        %v376 = vld [vmem:[%s164 + $0x4fc] sm:$0xff]
        %v377 = vld [vmem:[%s164 + $0x504] sm:$0xff]
        %v378 = vld [vmem:[%s164 + $0x50c] sm:$0xf]
        %v379 = vld [vmem:[%s164 + $0x510] sm:$0xff]
        %v380 = vld [vmem:[%s164 + $0x518] sm:$0xff]
        %v381 = vld [vmem:[%s164 + $0x520] sm:$0xff]
        %v382 = vld [vmem:[%s164 + $0x528] sm:$0xff]
        %v383 = vld [vmem:[%s164 + $0x530] sm:$0xf]
        %v384 = vld [vmem:[%s164 + $0x534] sm:$0xff]
        %v385 = vld [vmem:[%s164 + $0x53c] sm:$0xff]
        %v386 = vld [vmem:[%s164 + $0x544] sm:$0xff]
        %v387 = vld [vmem:[%s164 + $0x54c] sm:$0xff]
        %v388 = vld [vmem:[%s164 + $0x554] sm:$0xf]
        %v389 = vld [vmem:[%s164 + $0x558] sm:$0xff]
        %v390 = vld [vmem:[%s164 + $0x560] sm:$0xff]
        %v391 = vld [vmem:[%s164 + $0x568] sm:$0xff]
        %v392 = vld [vmem:[%s164 + $0x570] sm:$0xff]
        %v393 = vld [vmem:[%s164 + $0x578] sm:$0xf]
        %v394 = vld [vmem:[%s164 + $0x57c] sm:$0xff]
        %v395 = vld [vmem:[%s164 + $0x584] sm:$0xff]
        %v396 = vld [vmem:[%s164 + $0x58c] sm:$0xff]
        %v397 = vld [vmem:[%s164 + $0x594] sm:$0xff]
        %v398 = vld [vmem:[%s164 + $0x59c] sm:$0xf]
        %v399 = vld [vmem:[%s164 + $0x5a0] sm:$0xff]
        %v400 = vld [vmem:[%s164 + $0x5a8] sm:$0xff]
        %v401 = vld [vmem:[%s164 + $0x5b0] sm:$0xff]
        %v402 = vld [vmem:[%s164 + $0x5b8] sm:$0xff]
        %v403 = vld [vmem:[%s164 + $0x5c0] sm:$0xf]
        %v404 = vld [vmem:[%s164 + $0x5c4] sm:$0xff]
        %v405 = vld [vmem:[%s164 + $0x5cc] sm:$0xff]
        %v406 = vld [vmem:[%s164 + $0x5d4] sm:$0xff]
        %v407 = vld [vmem:[%s164 + $0x5dc] sm:$0xff]
        %v408 = vld [vmem:[%s164 + $0x5e4] sm:$0xf]
        %v409 = vld [vmem:[%s164 + $0x5e8] sm:$0xff]
        %v410 = vld [vmem:[%s164 + $0x5f0] sm:$0xff]
        %v411 = vld [vmem:[%s164 + $0x5f8] sm:$0xff]
        %v412 = vld [vmem:[%s164 + $0x600] sm:$0xff]
        %v413 = vld [vmem:[%s164 + $0x608] sm:$0xf]
        %v414 = vld [vmem:[%s164 + $0x60c] sm:$0xff]
        %v415 = vld [vmem:[%s164 + $0x614] sm:$0xff]
        %v416 = vld [vmem:[%s164 + $0x61c] sm:$0xff]
        %v417 = vld [vmem:[%s164 + $0x624] sm:$0xff]
        %v418 = vld [vmem:[%s164 + $0x62c] sm:$0xf]
        %v419 = vld [vmem:[%s164 + $0x630] sm:$0xff]
        %v420 = vld [vmem:[%s164 + $0x638] sm:$0xff]
        %v421 = vld [vmem:[%s164 + $0x640] sm:$0xff]
        %v422 = vld [vmem:[%s164 + $0x648] sm:$0xff]
        %v423 = vld [vmem:[%s164 + $0x650] sm:$0xf]
        %v424 = vld [vmem:[%s164 + $0x654] sm:$0xff]
        %v425 = vld [vmem:[%s164 + $0x65c] sm:$0xff]
        %v426 = vld [vmem:[%s164 + $0x664] sm:$0xff]
        %v427 = vld [vmem:[%s164 + $0x66c] sm:$0xff]
        %v428 = vld [vmem:[%s164 + $0x674] sm:$0xf]
        %v429 = vld [vmem:[%s164 + $0x678] sm:$0xff]
        %v430 = vld [vmem:[%s164 + $0x680] sm:$0xff]
        %v431 = vld [vmem:[%s164 + $0x688] sm:$0xff]
        %v432 = vld [vmem:[%s164 + $0x690] sm:$0xff]
        %v433 = vld [vmem:[%s164 + $0x698] sm:$0xf]
        %v434 = vld [vmem:[%s164 + $0x69c] sm:$0xff]
        %v435 = vld [vmem:[%s164 + $0x6a4] sm:$0xff]
        %v436 = vld [vmem:[%s164 + $0x6ac] sm:$0xff]
        %v437 = vld [vmem:[%s164 + $0x6b4] sm:$0xff]
        %v438 = vld [vmem:[%s164 + $0x6bc] sm:$0xf]
        %v439 = vld [vmem:[%s164 + $0x6c0] sm:$0xff]
        %v440 = vld [vmem:[%s164 + $0x6c8] sm:$0xff]
        %v441 = vld [vmem:[%s164 + $0x6d0] sm:$0xff]
        %v442 = vld [vmem:[%s164 + $0x6d8] sm:$0xff]
        %v443 = vld [vmem:[%s164 + $0x6e0] sm:$0xf]
        %v444 = vld [vmem:[%s164 + $0x6e4] sm:$0xff]
        %v445 = vld [vmem:[%s164 + $0x6ec] sm:$0xff]
        %v446 = vld [vmem:[%s164 + $0x6f4] sm:$0xff]
        %v447 = vld [vmem:[%s164 + $0x6fc] sm:$0xff]
        %v448 = vld [vmem:[%s164 + $0x704] sm:$0xf]
        %v449 = vld [vmem:[%s164 + $0x708] sm:$0xff]
        %v450 = vld [vmem:[%s164 + $0x710] sm:$0xff]
        %v451 = vld [vmem:[%s164 + $0x718] sm:$0xff]
        %v452 = vld [vmem:[%s164 + $0x720] sm:$0xff]
        %v453 = vld [vmem:[%s164 + $0x728] sm:$0xf]
        %v454 = vld [vmem:[%s164 + $0x72c] sm:$0xff]
        %v455 = vld [vmem:[%s164 + $0x734] sm:$0xff]
        %v456 = vld [vmem:[%s164 + $0x73c] sm:$0xff]
        %v457 = vld [vmem:[%s164 + $0x744] sm:$0xff]
        %v458 = vld [vmem:[%s164 + $0x74c] sm:$0xf]
        %v459 = vld [vmem:[%s164 + $0x750] sm:$0xff]
        %v460 = vld [vmem:[%s164 + $0x758] sm:$0xff]
        %v461 = vld [vmem:[%s164 + $0x760] sm:$0xff]
        %v462 = vld [vmem:[%s164 + $0x768] sm:$0xff]
        %v463 = vld [vmem:[%s164 + $0x770] sm:$0xf]
        %v464 = vld [vmem:[%s164 + $0x774] sm:$0xff]
        %v465 = vld [vmem:[%s164 + $0x77c] sm:$0xff]
        %v466 = vld [vmem:[%s164 + $0x784] sm:$0xff]
        %v467 = vld [vmem:[%s164 + $0x78c] sm:$0xff]
        %v468 = vld [vmem:[%s164 + $0x794] sm:$0xf]
        %v469 = vld [vmem:[%s164 + $0x798] sm:$0xff]
        %v470 = vld [vmem:[%s164 + $0x7a0] sm:$0xff]
        %v471 = vld [vmem:[%s164 + $0x7a8] sm:$0xff]
        %v472 = vld [vmem:[%s164 + $0x7b0] sm:$0xff]
        %v473 = vld [vmem:[%s164 + $0x7b8] sm:$0xf]
        %v474 = vld [vmem:[%s164 + $0x7bc] sm:$0xff]
        %v475 = vld [vmem:[%s164 + $0x7c4] sm:$0xff]
        %v476 = vld [vmem:[%s164 + $0x7cc] sm:$0xff]
        %v477 = vld [vmem:[%s164 + $0x7d4] sm:$0xff]
        %v478 = vld [vmem:[%s164 + $0x7dc] sm:$0xf]
        %v479 = vld [vmem:[%s164 + $0x7e0] sm:$0xff]
        %v480 = vld [vmem:[%s164 + $0x7e8] sm:$0xff]
        %v481 = vld [vmem:[%s164 + $0x7f0] sm:$0xff]
        %v482 = vld [vmem:[%s164 + $0x7f8] sm:$0xff]
        %v483 = vld [vmem:[%s164 + $0x800] sm:$0xf]
        %v484 = vld [vmem:[%s164 + $0x804] sm:$0xff]
        %v485 = vld [vmem:[%s164 + $0x80c] sm:$0xff]
        %v486 = vld [vmem:[%s164 + $0x814] sm:$0xff]
        %v487 = vld [vmem:[%s164 + $0x81c] sm:$0xff]
        %v488 = vld [vmem:[%s164 + $0x824] sm:$0xf]
        %v489 = vld [vmem:[%s164 + $0x828] sm:$0xff]
        %v490 = vld [vmem:[%s164 + $0x830] sm:$0xff]
        %v491 = vld [vmem:[%s164 + $0x838] sm:$0xff]
        %v492 = vld [vmem:[%s164 + $0x840] sm:$0xff]
        %v493 = vld [vmem:[%s164 + $0x848] sm:$0xf]
        %v494 = vld [vmem:[%s164 + $0x84c] sm:$0xff]
        %v495 = vld [vmem:[%s164 + $0x854] sm:$0xff]
        %v496 = vld [vmem:[%s164 + $0x85c] sm:$0xff]
        %v497 = vld [vmem:[%s164 + $0x864] sm:$0xff]
        %v498 = vld [vmem:[%s164 + $0x86c] sm:$0xf]
        %v499 = vld [vmem:[%s164 + $0x870] sm:$0xff]
        %v500 = vld [vmem:[%s164 + $0x878] sm:$0xff]
        %v501 = vld [vmem:[%s164 + $0x880] sm:$0xff]
        %v502 = vld [vmem:[%s164 + $0x888] sm:$0xff]
        %v503 = vld [vmem:[%s164 + $0x890] sm:$0xf]
        %v504 = vld [vmem:[%s164 + $0x894] sm:$0xff]
        %v505 = vld [vmem:[%s164 + $0x89c] sm:$0xff]
        %v506 = vld [vmem:[%s164 + $0x8a4] sm:$0xff]
        %v507 = vld [vmem:[%s164 + $0x8ac] sm:$0xff]
        %v508 = vld [vmem:[%s164 + $0x8b4] sm:$0xf]
        %v509 = vld [vmem:[%s164 + $0x8b8] sm:$0xff]
        %v510 = vld [vmem:[%s164 + $0x8c0] sm:$0xff]
        %v511 = vld [vmem:[%s164 + $0x8c8] sm:$0xff]
        %v512 = vld [vmem:[%s164 + $0x8d0] sm:$0xff]
        %v513 = vld [vmem:[%s164 + $0x8d8] sm:$0xf]
        %v514 = vld [vmem:[%s164 + $0x8dc] sm:$0xff]
        %v515 = vld [vmem:[%s164 + $0x8e4] sm:$0xff]
        %v516 = vld [vmem:[%s164 + $0x8ec] sm:$0xff]
        %v517 = vld [vmem:[%s164 + $0x8f4] sm:$0xff]
        %v518 = vld [vmem:[%s164 + $0x8fc] sm:$0xf]
        %v551 = vunpack.c.l.b16 %v167
        %v552 = vunpack.c.h.b16 %v167
        %v553 = vunpack.c.l.b16 %v168
        %v554 = vunpack.c.h.b16 %v168
        %v555 = vunpack.c.l.b16 %v169
        %v556 = vunpack.c.h.b16 %v169
        %v557 = vunpack.c.l.b16 %v170
        %v558 = vunpack.c.h.b16 %v170
        %v559 = vunpack.c.l.b16 %v171
        %v560 = vunpack.c.h.b16 %v171
        %v561 = vunpack.c.l.b16 %v172
        %v562 = vunpack.c.h.b16 %v172
        %v563 = vunpack.c.l.b16 %v173
        %v564 = vunpack.c.h.b16 %v173
        %v565 = vunpack.c.l.b16 %v174
        %v566 = vunpack.c.h.b16 %v174
        %v567 = vunpack.c.l.b16 %v175
        %v568 = vunpack.c.h.b16 %v175
        %v569 = vunpack.c.l.b16 %v176
        %v570 = vunpack.c.h.b16 %v176
        %v571 = vunpack.c.l.b16 %v177
        %v572 = vunpack.c.h.b16 %v177
        %v573 = vunpack.c.l.b16 %v178
        %v574 = vunpack.c.h.b16 %v178
        %v575 = vunpack.c.l.b16 %v179
        %v576 = vunpack.c.h.b16 %v179
        %v577 = vunpack.c.l.b16 %v180
        %v578 = vunpack.c.h.b16 %v180
        %v579 = vunpack.c.l.b16 %v181
        %v580 = vunpack.c.h.b16 %v181
        %v581 = vunpack.c.l.b16 %v182
        %v582 = vunpack.c.h.b16 %v182
        %v583 = vunpack.c.l.b16 %v183
        %v584 = vunpack.c.h.b16 %v183
        %v585 = vunpack.c.l.b16 %v184
        %v586 = vunpack.c.h.b16 %v184
        %v587 = vunpack.c.l.b16 %v185
        %v588 = vunpack.c.h.b16 %v185
        %v589 = vunpack.c.l.b16 %v186
        %v590 = vunpack.c.h.b16 %v186
        %v591 = vunpack.c.l.b16 %v187
        %v592 = vunpack.c.h.b16 %v187
        %v593 = vunpack.c.l.b16 %v188
        %v594 = vunpack.c.h.b16 %v188
        %v595 = vunpack.c.l.b16 %v189
        %v596 = vunpack.c.h.b16 %v189
        %v597 = vunpack.c.l.b16 %v190
        %v598 = vunpack.c.h.b16 %v190
        %v599 = vunpack.c.l.b16 %v191
        %v600 = vunpack.c.h.b16 %v191
        %v601 = vunpack.c.l.b16 %v192
        %v602 = vunpack.c.h.b16 %v192
        %v603 = vunpack.c.l.b16 %v193
        %v604 = vunpack.c.h.b16 %v193
        %v605 = vunpack.c.l.b16 %v194
        %v606 = vunpack.c.h.b16 %v194
        %v607 = vunpack.c.l.b16 %v195
        %v608 = vunpack.c.h.b16 %v195
        %v609 = vunpack.c.l.b16 %v196
        %v610 = vunpack.c.h.b16 %v196
        %v611 = vunpack.c.l.b16 %v197
        %v612 = vunpack.c.h.b16 %v197
        %v613 = vunpack.c.l.b16 %v198
        %v614 = vunpack.c.h.b16 %v198
        %v615 = vpack.c.b16 %v555, %v551
        %v616 = vpack.c.b16 %v556, %v552
        %v617 = vpack.c.b16 %v557, %v553
        %v618 = vpack.c.b16 %v558, %v554
        %v619 = vpack.c.b16 %v563, %v559
        %v620 = vpack.c.b16 %v564, %v560
        %v621 = vpack.c.b16 %v565, %v561
        %v622 = vpack.c.b16 %v566, %v562
        %v623 = vpack.c.b16 %v571, %v567
        %v624 = vpack.c.b16 %v572, %v568
        %v625 = vpack.c.b16 %v573, %v569
        %v626 = vpack.c.b16 %v574, %v570
        %v627 = vpack.c.b16 %v579, %v575
        %v628 = vpack.c.b16 %v580, %v576
        %v629 = vpack.c.b16 %v581, %v577
        %v630 = vpack.c.b16 %v582, %v578
        %v631 = vpack.c.b16 %v587, %v583
        %v632 = vpack.c.b16 %v588, %v584
        %v633 = vpack.c.b16 %v589, %v585
        %v634 = vpack.c.b16 %v590, %v586
        %v635 = vpack.c.b16 %v595, %v591
        %v636 = vpack.c.b16 %v596, %v592
        %v637 = vpack.c.b16 %v597, %v593
        %v638 = vpack.c.b16 %v598, %v594
        %v639 = vpack.c.b16 %v603, %v599
        %v640 = vpack.c.b16 %v604, %v600
        %v641 = vpack.c.b16 %v605, %v601
        %v642 = vpack.c.b16 %v606, %v602
        %v643 = vpack.c.b16 %v611, %v607
        %v644 = vpack.c.b16 %v612, %v608
        %v645 = vpack.c.b16 %v613, %v609
        %v646 = vpack.c.b16 %v614, %v610
        %v999 = vunpack.c.l.b16 %v199
        %v1000 = vunpack.c.h.b16 %v199
        %v1001 = vunpack.c.l.b16 %v200
        %v1002 = vunpack.c.h.b16 %v200
        %v1003 = vunpack.c.l.b16 %v201
        %v1004 = vunpack.c.h.b16 %v201
        %v1005 = vunpack.c.l.b16 %v202
        %v1006 = vunpack.c.h.b16 %v202
        %v1007 = vunpack.c.l.b16 %v203
        %v1008 = vunpack.c.l.b16 %v204
        %v1009 = vunpack.c.h.b16 %v204
        %v1010 = vunpack.c.l.b16 %v205
        %v1011 = vunpack.c.h.b16 %v205
        %v1012 = vunpack.c.l.b16 %v206
        %v1013 = vunpack.c.h.b16 %v206
        %v1014 = vunpack.c.l.b16 %v207
        %v1015 = vunpack.c.h.b16 %v207
        %v1016 = vunpack.c.l.b16 %v208
        %v1017 = vunpack.c.l.b16 %v209
        %v1018 = vunpack.c.h.b16 %v209
        %v1019 = vunpack.c.l.b16 %v210
        %v1020 = vunpack.c.h.b16 %v210
        %v1021 = vunpack.c.l.b16 %v211
        %v1022 = vunpack.c.h.b16 %v211
        %v1023 = vunpack.c.l.b16 %v212
        %v1024 = vunpack.c.h.b16 %v212
        %v1025 = vunpack.c.l.b16 %v213
        %v1026 = vunpack.c.l.b16 %v214
        %v1027 = vunpack.c.h.b16 %v214
        %v1028 = vunpack.c.l.b16 %v215
        %v1029 = vunpack.c.h.b16 %v215
        %v1030 = vunpack.c.l.b16 %v216
        %v1031 = vunpack.c.h.b16 %v216
        %v1032 = vunpack.c.l.b16 %v217
        %v1033 = vunpack.c.h.b16 %v217
        %v1034 = vunpack.c.l.b16 %v218
        %v1035 = vunpack.c.l.b16 %v219
        %v1036 = vunpack.c.h.b16 %v219
        %v1037 = vunpack.c.l.b16 %v220
        %v1038 = vunpack.c.h.b16 %v220
        %v1039 = vunpack.c.l.b16 %v221
        %v1040 = vunpack.c.h.b16 %v221
        %v1041 = vunpack.c.l.b16 %v222
        %v1042 = vunpack.c.h.b16 %v222
        %v1043 = vunpack.c.l.b16 %v223
        %v1044 = vunpack.c.l.b16 %v224
        %v1045 = vunpack.c.h.b16 %v224
        %v1046 = vunpack.c.l.b16 %v225
        %v1047 = vunpack.c.h.b16 %v225
        %v1048 = vunpack.c.l.b16 %v226
        %v1049 = vunpack.c.h.b16 %v226
        %v1050 = vunpack.c.l.b16 %v227
        %v1051 = vunpack.c.h.b16 %v227
        %v1052 = vunpack.c.l.b16 %v228
        %v1053 = vunpack.c.l.b16 %v229
        %v1054 = vunpack.c.h.b16 %v229
        %v1055 = vunpack.c.l.b16 %v230
        %v1056 = vunpack.c.h.b16 %v230
        %v1057 = vunpack.c.l.b16 %v231
        %v1058 = vunpack.c.h.b16 %v231
        %v1059 = vunpack.c.l.b16 %v232
        %v1060 = vunpack.c.h.b16 %v232
        %v1061 = vunpack.c.l.b16 %v233
        %v1062 = vunpack.c.l.b16 %v234
        %v1063 = vunpack.c.h.b16 %v234
        %v1064 = vunpack.c.l.b16 %v235
        %v1065 = vunpack.c.h.b16 %v235
        %v1066 = vunpack.c.l.b16 %v236
        %v1067 = vunpack.c.h.b16 %v236
        %v1068 = vunpack.c.l.b16 %v237
        %v1069 = vunpack.c.h.b16 %v237
        %v1070 = vunpack.c.l.b16 %v238
        %v1071 = vunpack.c.l.b16 %v239
        %v1072 = vunpack.c.h.b16 %v239
        %v1073 = vunpack.c.l.b16 %v240
        %v1074 = vunpack.c.h.b16 %v240
        %v1075 = vunpack.c.l.b16 %v241
        %v1076 = vunpack.c.h.b16 %v241
        %v1077 = vunpack.c.l.b16 %v242
        %v1078 = vunpack.c.h.b16 %v242
        %v1079 = vunpack.c.l.b16 %v243
        %v1080 = vunpack.c.l.b16 %v244
        %v1081 = vunpack.c.h.b16 %v244
        %v1082 = vunpack.c.l.b16 %v245
        %v1083 = vunpack.c.h.b16 %v245
        %v1084 = vunpack.c.l.b16 %v246
        %v1085 = vunpack.c.h.b16 %v246
        %v1086 = vunpack.c.l.b16 %v247
        %v1087 = vunpack.c.h.b16 %v247
        %v1088 = vunpack.c.l.b16 %v248
        %v1089 = vunpack.c.l.b16 %v249
        %v1090 = vunpack.c.h.b16 %v249
        %v1091 = vunpack.c.l.b16 %v250
        %v1092 = vunpack.c.h.b16 %v250
        %v1093 = vunpack.c.l.b16 %v251
        %v1094 = vunpack.c.h.b16 %v251
        %v1095 = vunpack.c.l.b16 %v252
        %v1096 = vunpack.c.h.b16 %v252
        %v1097 = vunpack.c.l.b16 %v253
        %v1098 = vunpack.c.l.b16 %v254
        %v1099 = vunpack.c.h.b16 %v254
        %v1100 = vunpack.c.l.b16 %v255
        %v1101 = vunpack.c.h.b16 %v255
        %v1102 = vunpack.c.l.b16 %v256
        %v1103 = vunpack.c.h.b16 %v256
        %v1104 = vunpack.c.l.b16 %v257
        %v1105 = vunpack.c.h.b16 %v257
        %v1106 = vunpack.c.l.b16 %v258
        %v1107 = vunpack.c.l.b16 %v259
        %v1108 = vunpack.c.h.b16 %v259
        %v1109 = vunpack.c.l.b16 %v260
        %v1110 = vunpack.c.h.b16 %v260
        %v1111 = vunpack.c.l.b16 %v261
        %v1112 = vunpack.c.h.b16 %v261
        %v1113 = vunpack.c.l.b16 %v262
        %v1114 = vunpack.c.h.b16 %v262
        %v1115 = vunpack.c.l.b16 %v263
        %v1116 = vunpack.c.l.b16 %v264
        %v1117 = vunpack.c.h.b16 %v264
        %v1118 = vunpack.c.l.b16 %v265
        %v1119 = vunpack.c.h.b16 %v265
        %v1120 = vunpack.c.l.b16 %v266
        %v1121 = vunpack.c.h.b16 %v266
        %v1122 = vunpack.c.l.b16 %v267
        %v1123 = vunpack.c.h.b16 %v267
        %v1124 = vunpack.c.l.b16 %v268
        %v1125 = vunpack.c.l.b16 %v269
        %v1126 = vunpack.c.h.b16 %v269
        %v1127 = vunpack.c.l.b16 %v270
        %v1128 = vunpack.c.h.b16 %v270
        %v1129 = vunpack.c.l.b16 %v271
        %v1130 = vunpack.c.h.b16 %v271
        %v1131 = vunpack.c.l.b16 %v272
        %v1132 = vunpack.c.h.b16 %v272
        %v1133 = vunpack.c.l.b16 %v273
        %v1134 = vunpack.c.l.b16 %v274
        %v1135 = vunpack.c.h.b16 %v274
        %v1136 = vunpack.c.l.b16 %v275
        %v1137 = vunpack.c.h.b16 %v275
        %v1138 = vunpack.c.l.b16 %v276
        %v1139 = vunpack.c.h.b16 %v276
        %v1140 = vunpack.c.l.b16 %v277
        %v1141 = vunpack.c.h.b16 %v277
        %v1142 = vunpack.c.l.b16 %v278
        %v1143 = vunpack.c.l.b16 %v279
        %v1144 = vunpack.c.h.b16 %v279
        %v1145 = vunpack.c.l.b16 %v280
        %v1146 = vunpack.c.h.b16 %v280
        %v1147 = vunpack.c.l.b16 %v281
        %v1148 = vunpack.c.h.b16 %v281
        %v1149 = vunpack.c.l.b16 %v282
        %v1150 = vunpack.c.h.b16 %v282
        %v1151 = vunpack.c.l.b16 %v283
        %v1152 = vunpack.c.l.b16 %v284
        %v1153 = vunpack.c.h.b16 %v284
        %v1154 = vunpack.c.l.b16 %v285
        %v1155 = vunpack.c.h.b16 %v285
        %v1156 = vunpack.c.l.b16 %v286
        %v1157 = vunpack.c.h.b16 %v286
        %v1158 = vunpack.c.l.b16 %v287
        %v1159 = vunpack.c.h.b16 %v287
        %v1160 = vunpack.c.l.b16 %v288
        %v1161 = vunpack.c.l.b16 %v289
        %v1162 = vunpack.c.h.b16 %v289
        %v1163 = vunpack.c.l.b16 %v290
        %v1164 = vunpack.c.h.b16 %v290
        %v1165 = vunpack.c.l.b16 %v291
        %v1166 = vunpack.c.h.b16 %v291
        %v1167 = vunpack.c.l.b16 %v292
        %v1168 = vunpack.c.h.b16 %v292
        %v1169 = vunpack.c.l.b16 %v293
        %v1170 = vunpack.c.l.b16 %v294
        %v1171 = vunpack.c.h.b16 %v294
        %v1172 = vunpack.c.l.b16 %v295
        %v1173 = vunpack.c.h.b16 %v295
        %v1174 = vunpack.c.l.b16 %v296
        %v1175 = vunpack.c.h.b16 %v296
        %v1176 = vunpack.c.l.b16 %v297
        %v1177 = vunpack.c.h.b16 %v297
        %v1178 = vunpack.c.l.b16 %v298
        %v1179 = vunpack.c.l.b16 %v299
        %v1180 = vunpack.c.h.b16 %v299
        %v1181 = vunpack.c.l.b16 %v300
        %v1182 = vunpack.c.h.b16 %v300
        %v1183 = vunpack.c.l.b16 %v301
        %v1184 = vunpack.c.h.b16 %v301
        %v1185 = vunpack.c.l.b16 %v302
        %v1186 = vunpack.c.h.b16 %v302
        %v1187 = vunpack.c.l.b16 %v303
        %v1188 = vunpack.c.l.b16 %v304
        %v1189 = vunpack.c.h.b16 %v304
        %v1190 = vunpack.c.l.b16 %v305
        %v1191 = vunpack.c.h.b16 %v305
        %v1192 = vunpack.c.l.b16 %v306
        %v1193 = vunpack.c.h.b16 %v306
        %v1194 = vunpack.c.l.b16 %v307
        %v1195 = vunpack.c.h.b16 %v307
        %v1196 = vunpack.c.l.b16 %v308
        %v1197 = vunpack.c.l.b16 %v309
        %v1198 = vunpack.c.h.b16 %v309
        %v1199 = vunpack.c.l.b16 %v310
        %v1200 = vunpack.c.h.b16 %v310
        %v1201 = vunpack.c.l.b16 %v311
        %v1202 = vunpack.c.h.b16 %v311
        %v1203 = vunpack.c.l.b16 %v312
        %v1204 = vunpack.c.h.b16 %v312
        %v1205 = vunpack.c.l.b16 %v313
        %v1206 = vunpack.c.l.b16 %v314
        %v1207 = vunpack.c.h.b16 %v314
        %v1208 = vunpack.c.l.b16 %v315
        %v1209 = vunpack.c.h.b16 %v315
        %v1210 = vunpack.c.l.b16 %v316
        %v1211 = vunpack.c.h.b16 %v316
        %v1212 = vunpack.c.l.b16 %v317
        %v1213 = vunpack.c.h.b16 %v317
        %v1214 = vunpack.c.l.b16 %v318
        %v1215 = vunpack.c.l.b16 %v319
        %v1216 = vunpack.c.h.b16 %v319
        %v1217 = vunpack.c.l.b16 %v320
        %v1218 = vunpack.c.h.b16 %v320
        %v1219 = vunpack.c.l.b16 %v321
        %v1220 = vunpack.c.h.b16 %v321
        %v1221 = vunpack.c.l.b16 %v322
        %v1222 = vunpack.c.h.b16 %v322
        %v1223 = vunpack.c.l.b16 %v323
        %v1224 = vunpack.c.l.b16 %v324
        %v1225 = vunpack.c.h.b16 %v324
        %v1226 = vunpack.c.l.b16 %v325
        %v1227 = vunpack.c.h.b16 %v325
        %v1228 = vunpack.c.l.b16 %v326
        %v1229 = vunpack.c.h.b16 %v326
        %v1230 = vunpack.c.l.b16 %v327
        %v1231 = vunpack.c.h.b16 %v327
        %v1232 = vunpack.c.l.b16 %v328
        %v1233 = vunpack.c.l.b16 %v329
        %v1234 = vunpack.c.h.b16 %v329
        %v1235 = vunpack.c.l.b16 %v330
        %v1236 = vunpack.c.h.b16 %v330
        %v1237 = vunpack.c.l.b16 %v331
        %v1238 = vunpack.c.h.b16 %v331
        %v1239 = vunpack.c.l.b16 %v332
        %v1240 = vunpack.c.h.b16 %v332
        %v1241 = vunpack.c.l.b16 %v333
        %v1242 = vunpack.c.l.b16 %v334
        %v1243 = vunpack.c.h.b16 %v334
        %v1244 = vunpack.c.l.b16 %v335
        %v1245 = vunpack.c.h.b16 %v335
        %v1246 = vunpack.c.l.b16 %v336
        %v1247 = vunpack.c.h.b16 %v336
        %v1248 = vunpack.c.l.b16 %v337
        %v1249 = vunpack.c.h.b16 %v337
        %v1250 = vunpack.c.l.b16 %v338
        %v1251 = vunpack.c.l.b16 %v339
        %v1252 = vunpack.c.h.b16 %v339
        %v1253 = vunpack.c.l.b16 %v340
        %v1254 = vunpack.c.h.b16 %v340
        %v1255 = vunpack.c.l.b16 %v341
        %v1256 = vunpack.c.h.b16 %v341
        %v1257 = vunpack.c.l.b16 %v342
        %v1258 = vunpack.c.h.b16 %v342
        %v1259 = vunpack.c.l.b16 %v343
        %v1260 = vunpack.c.l.b16 %v344
        %v1261 = vunpack.c.h.b16 %v344
        %v1262 = vunpack.c.l.b16 %v345
        %v1263 = vunpack.c.h.b16 %v345
        %v1264 = vunpack.c.l.b16 %v346
        %v1265 = vunpack.c.h.b16 %v346
        %v1266 = vunpack.c.l.b16 %v347
        %v1267 = vunpack.c.h.b16 %v347
        %v1268 = vunpack.c.l.b16 %v348
        %v1269 = vunpack.c.l.b16 %v349
        %v1270 = vunpack.c.h.b16 %v349
        %v1271 = vunpack.c.l.b16 %v350
        %v1272 = vunpack.c.h.b16 %v350
        %v1273 = vunpack.c.l.b16 %v351
        %v1274 = vunpack.c.h.b16 %v351
        %v1275 = vunpack.c.l.b16 %v352
        %v1276 = vunpack.c.h.b16 %v352
        %v1277 = vunpack.c.l.b16 %v353
        %v1278 = vunpack.c.l.b16 %v354
        %v1279 = vunpack.c.h.b16 %v354
        %v1280 = vunpack.c.l.b16 %v355
        %v1281 = vunpack.c.h.b16 %v355
        %v1282 = vunpack.c.l.b16 %v356
        %v1283 = vunpack.c.h.b16 %v356
        %v1284 = vunpack.c.l.b16 %v357
        %v1285 = vunpack.c.h.b16 %v357
        %v1286 = vunpack.c.l.b16 %v358
        %v1287 = vunpack.c.l.b16 %v359
        %v1288 = vunpack.c.h.b16 %v359
        %v1289 = vunpack.c.l.b16 %v360
        %v1290 = vunpack.c.h.b16 %v360
        %v1291 = vunpack.c.l.b16 %v361
        %v1292 = vunpack.c.h.b16 %v361
        %v1293 = vunpack.c.l.b16 %v362
        %v1294 = vunpack.c.h.b16 %v362
        %v1295 = vunpack.c.l.b16 %v363
        %v1296 = vunpack.c.l.b16 %v364
        %v1297 = vunpack.c.h.b16 %v364
        %v1298 = vunpack.c.l.b16 %v365
        %v1299 = vunpack.c.h.b16 %v365
        %v1300 = vunpack.c.l.b16 %v366
        %v1301 = vunpack.c.h.b16 %v366
        %v1302 = vunpack.c.l.b16 %v367
        %v1303 = vunpack.c.h.b16 %v367
        %v1304 = vunpack.c.l.b16 %v368
        %v1305 = vunpack.c.l.b16 %v369
        %v1306 = vunpack.c.h.b16 %v369
        %v1307 = vunpack.c.l.b16 %v370
        %v1308 = vunpack.c.h.b16 %v370
        %v1309 = vunpack.c.l.b16 %v371
        %v1310 = vunpack.c.h.b16 %v371
        %v1311 = vunpack.c.l.b16 %v372
        %v1312 = vunpack.c.h.b16 %v372
        %v1313 = vunpack.c.l.b16 %v373
        %v1314 = vunpack.c.l.b16 %v374
        %v1315 = vunpack.c.h.b16 %v374
        %v1316 = vunpack.c.l.b16 %v375
        %v1317 = vunpack.c.h.b16 %v375
        %v1318 = vunpack.c.l.b16 %v376
        %v1319 = vunpack.c.h.b16 %v376
        %v1320 = vunpack.c.l.b16 %v377
        %v1321 = vunpack.c.h.b16 %v377
        %v1322 = vunpack.c.l.b16 %v378
        %v1323 = vunpack.c.l.b16 %v379
        %v1324 = vunpack.c.h.b16 %v379
        %v1325 = vunpack.c.l.b16 %v380
        %v1326 = vunpack.c.h.b16 %v380
        %v1327 = vunpack.c.l.b16 %v381
        %v1328 = vunpack.c.h.b16 %v381
        %v1329 = vunpack.c.l.b16 %v382
        %v1330 = vunpack.c.h.b16 %v382
        %v1331 = vunpack.c.l.b16 %v383
        %v1332 = vunpack.c.l.b16 %v384
        %v1333 = vunpack.c.h.b16 %v384
        %v1334 = vunpack.c.l.b16 %v385
        %v1335 = vunpack.c.h.b16 %v385
        %v1336 = vunpack.c.l.b16 %v386
        %v1337 = vunpack.c.h.b16 %v386
        %v1338 = vunpack.c.l.b16 %v387
        %v1339 = vunpack.c.h.b16 %v387
        %v1340 = vunpack.c.l.b16 %v388
        %v1341 = vunpack.c.l.b16 %v389
        %v1342 = vunpack.c.h.b16 %v389
        %v1343 = vunpack.c.l.b16 %v390
        %v1344 = vunpack.c.h.b16 %v390
        %v1345 = vunpack.c.l.b16 %v391
        %v1346 = vunpack.c.h.b16 %v391
        %v1347 = vunpack.c.l.b16 %v392
        %v1348 = vunpack.c.h.b16 %v392
        %v1349 = vunpack.c.l.b16 %v393
        %v1350 = vunpack.c.l.b16 %v394
        %v1351 = vunpack.c.h.b16 %v394
        %v1352 = vunpack.c.l.b16 %v395
        %v1353 = vunpack.c.h.b16 %v395
        %v1354 = vunpack.c.l.b16 %v396
        %v1355 = vunpack.c.h.b16 %v396
        %v1356 = vunpack.c.l.b16 %v397
        %v1357 = vunpack.c.h.b16 %v397
        %v1358 = vunpack.c.l.b16 %v398
        %v1359 = vunpack.c.l.b16 %v399
        %v1360 = vunpack.c.h.b16 %v399
        %v1361 = vunpack.c.l.b16 %v400
        %v1362 = vunpack.c.h.b16 %v400
        %v1363 = vunpack.c.l.b16 %v401
        %v1364 = vunpack.c.h.b16 %v401
        %v1365 = vunpack.c.l.b16 %v402
        %v1366 = vunpack.c.h.b16 %v402
        %v1367 = vunpack.c.l.b16 %v403
        %v1368 = vunpack.c.l.b16 %v404
        %v1369 = vunpack.c.h.b16 %v404
        %v1370 = vunpack.c.l.b16 %v405
        %v1371 = vunpack.c.h.b16 %v405
        %v1372 = vunpack.c.l.b16 %v406
        %v1373 = vunpack.c.h.b16 %v406
        %v1374 = vunpack.c.l.b16 %v407
        %v1375 = vunpack.c.h.b16 %v407
        %v1376 = vunpack.c.l.b16 %v408
        %v1377 = vunpack.c.l.b16 %v409
        %v1378 = vunpack.c.h.b16 %v409
        %v1379 = vunpack.c.l.b16 %v410
        %v1380 = vunpack.c.h.b16 %v410
        %v1381 = vunpack.c.l.b16 %v411
        %v1382 = vunpack.c.h.b16 %v411
        %v1383 = vunpack.c.l.b16 %v412
        %v1384 = vunpack.c.h.b16 %v412
        %v1385 = vunpack.c.l.b16 %v413
        %v1386 = vunpack.c.l.b16 %v414
        %v1387 = vunpack.c.h.b16 %v414
        %v1388 = vunpack.c.l.b16 %v415
        %v1389 = vunpack.c.h.b16 %v415
        %v1390 = vunpack.c.l.b16 %v416
        %v1391 = vunpack.c.h.b16 %v416
        %v1392 = vunpack.c.l.b16 %v417
        %v1393 = vunpack.c.h.b16 %v417
        %v1394 = vunpack.c.l.b16 %v418
        %v1395 = vunpack.c.l.b16 %v419
        %v1396 = vunpack.c.h.b16 %v419
        %v1397 = vunpack.c.l.b16 %v420
        %v1398 = vunpack.c.h.b16 %v420
        %v1399 = vunpack.c.l.b16 %v421
        %v1400 = vunpack.c.h.b16 %v421
        %v1401 = vunpack.c.l.b16 %v422
        %v1402 = vunpack.c.h.b16 %v422
        %v1403 = vunpack.c.l.b16 %v423
        %v1404 = vunpack.c.l.b16 %v424
        %v1405 = vunpack.c.h.b16 %v424
        %v1406 = vunpack.c.l.b16 %v425
        %v1407 = vunpack.c.h.b16 %v425
        %v1408 = vunpack.c.l.b16 %v426
        %v1409 = vunpack.c.h.b16 %v426
        %v1410 = vunpack.c.l.b16 %v427
        %v1411 = vunpack.c.h.b16 %v427
        %v1412 = vunpack.c.l.b16 %v428
        %v1413 = vunpack.c.l.b16 %v429
        %v1414 = vunpack.c.h.b16 %v429
        %v1415 = vunpack.c.l.b16 %v430
        %v1416 = vunpack.c.h.b16 %v430
        %v1417 = vunpack.c.l.b16 %v431
        %v1418 = vunpack.c.h.b16 %v431
        %v1419 = vunpack.c.l.b16 %v432
        %v1420 = vunpack.c.h.b16 %v432
        %v1421 = vunpack.c.l.b16 %v433
        %v1422 = vunpack.c.l.b16 %v434
        %v1423 = vunpack.c.h.b16 %v434
        %v1424 = vunpack.c.l.b16 %v435
        %v1425 = vunpack.c.h.b16 %v435
        %v1426 = vunpack.c.l.b16 %v436
        %v1427 = vunpack.c.h.b16 %v436
        %v1428 = vunpack.c.l.b16 %v437
        %v1429 = vunpack.c.h.b16 %v437
        %v1430 = vunpack.c.l.b16 %v438
        %v1431 = vunpack.c.l.b16 %v439
        %v1432 = vunpack.c.h.b16 %v439
        %v1433 = vunpack.c.l.b16 %v440
        %v1434 = vunpack.c.h.b16 %v440
        %v1435 = vunpack.c.l.b16 %v441
        %v1436 = vunpack.c.h.b16 %v441
        %v1437 = vunpack.c.l.b16 %v442
        %v1438 = vunpack.c.h.b16 %v442
        %v1439 = vunpack.c.l.b16 %v443
        %v1440 = vunpack.c.l.b16 %v444
        %v1441 = vunpack.c.h.b16 %v444
        %v1442 = vunpack.c.l.b16 %v445
        %v1443 = vunpack.c.h.b16 %v445
        %v1444 = vunpack.c.l.b16 %v446
        %v1445 = vunpack.c.h.b16 %v446
        %v1446 = vunpack.c.l.b16 %v447
        %v1447 = vunpack.c.h.b16 %v447
        %v1448 = vunpack.c.l.b16 %v448
        %v1449 = vunpack.c.l.b16 %v449
        %v1450 = vunpack.c.h.b16 %v449
        %v1451 = vunpack.c.l.b16 %v450
        %v1452 = vunpack.c.h.b16 %v450
        %v1453 = vunpack.c.l.b16 %v451
        %v1454 = vunpack.c.h.b16 %v451
        %v1455 = vunpack.c.l.b16 %v452
        %v1456 = vunpack.c.h.b16 %v452
        %v1457 = vunpack.c.l.b16 %v453
        %v1458 = vunpack.c.l.b16 %v454
        %v1459 = vunpack.c.h.b16 %v454
        %v1460 = vunpack.c.l.b16 %v455
        %v1461 = vunpack.c.h.b16 %v455
        %v1462 = vunpack.c.l.b16 %v456
        %v1463 = vunpack.c.h.b16 %v456
        %v1464 = vunpack.c.l.b16 %v457
        %v1465 = vunpack.c.h.b16 %v457
        %v1466 = vunpack.c.l.b16 %v458
        %v1467 = vunpack.c.l.b16 %v459
        %v1468 = vunpack.c.h.b16 %v459
        %v1469 = vunpack.c.l.b16 %v460
        %v1470 = vunpack.c.h.b16 %v460
        %v1471 = vunpack.c.l.b16 %v461
        %v1472 = vunpack.c.h.b16 %v461
        %v1473 = vunpack.c.l.b16 %v462
        %v1474 = vunpack.c.h.b16 %v462
        %v1475 = vunpack.c.l.b16 %v463
        %v1476 = vunpack.c.l.b16 %v464
        %v1477 = vunpack.c.h.b16 %v464
        %v1478 = vunpack.c.l.b16 %v465
        %v1479 = vunpack.c.h.b16 %v465
        %v1480 = vunpack.c.l.b16 %v466
        %v1481 = vunpack.c.h.b16 %v466
        %v1482 = vunpack.c.l.b16 %v467
        %v1483 = vunpack.c.h.b16 %v467
        %v1484 = vunpack.c.l.b16 %v468
        %v1485 = vunpack.c.l.b16 %v469
        %v1486 = vunpack.c.h.b16 %v469
        %v1487 = vunpack.c.l.b16 %v470
        %v1488 = vunpack.c.h.b16 %v470
        %v1489 = vunpack.c.l.b16 %v471
        %v1490 = vunpack.c.h.b16 %v471
        %v1491 = vunpack.c.l.b16 %v472
        %v1492 = vunpack.c.h.b16 %v472
        %v1493 = vunpack.c.l.b16 %v473
        %v1494 = vunpack.c.l.b16 %v474
        %v1495 = vunpack.c.h.b16 %v474
        %v1496 = vunpack.c.l.b16 %v475
        %v1497 = vunpack.c.h.b16 %v475
        %v1498 = vunpack.c.l.b16 %v476
        %v1499 = vunpack.c.h.b16 %v476
        %v1500 = vunpack.c.l.b16 %v477
        %v1501 = vunpack.c.h.b16 %v477
        %v1502 = vunpack.c.l.b16 %v478
        %v1503 = vunpack.c.l.b16 %v479
        %v1504 = vunpack.c.h.b16 %v479
        %v1505 = vunpack.c.l.b16 %v480
        %v1506 = vunpack.c.h.b16 %v480
        %v1507 = vunpack.c.l.b16 %v481
        %v1508 = vunpack.c.h.b16 %v481
        %v1509 = vunpack.c.l.b16 %v482
        %v1510 = vunpack.c.h.b16 %v482
        %v1511 = vunpack.c.l.b16 %v483
        %v1512 = vunpack.c.l.b16 %v484
        %v1513 = vunpack.c.h.b16 %v484
        %v1514 = vunpack.c.l.b16 %v485
        %v1515 = vunpack.c.h.b16 %v485
        %v1516 = vunpack.c.l.b16 %v486
        %v1517 = vunpack.c.h.b16 %v486
        %v1518 = vunpack.c.l.b16 %v487
        %v1519 = vunpack.c.h.b16 %v487
        %v1520 = vunpack.c.l.b16 %v488
        %v1521 = vunpack.c.l.b16 %v489
        %v1522 = vunpack.c.h.b16 %v489
        %v1523 = vunpack.c.l.b16 %v490
        %v1524 = vunpack.c.h.b16 %v490
        %v1525 = vunpack.c.l.b16 %v491
        %v1526 = vunpack.c.h.b16 %v491
        %v1527 = vunpack.c.l.b16 %v492
        %v1528 = vunpack.c.h.b16 %v492
        %v1529 = vunpack.c.l.b16 %v493
        %v1530 = vunpack.c.l.b16 %v494
        %v1531 = vunpack.c.h.b16 %v494
        %v1532 = vunpack.c.l.b16 %v495
        %v1533 = vunpack.c.h.b16 %v495
        %v1534 = vunpack.c.l.b16 %v496
        %v1535 = vunpack.c.h.b16 %v496
        %v1536 = vunpack.c.l.b16 %v497
        %v1537 = vunpack.c.h.b16 %v497
        %v1538 = vunpack.c.l.b16 %v498
        %v1539 = vunpack.c.l.b16 %v499
        %v1540 = vunpack.c.h.b16 %v499
        %v1541 = vunpack.c.l.b16 %v500
        %v1542 = vunpack.c.h.b16 %v500
        %v1543 = vunpack.c.l.b16 %v501
        %v1544 = vunpack.c.h.b16 %v501
        %v1545 = vunpack.c.l.b16 %v502
        %v1546 = vunpack.c.h.b16 %v502
        %v1547 = vunpack.c.l.b16 %v503
        %v1548 = vunpack.c.l.b16 %v504
        %v1549 = vunpack.c.h.b16 %v504
        %v1550 = vunpack.c.l.b16 %v505
        %v1551 = vunpack.c.h.b16 %v505
        %v1552 = vunpack.c.l.b16 %v506
        %v1553 = vunpack.c.h.b16 %v506
        %v1554 = vunpack.c.l.b16 %v507
        %v1555 = vunpack.c.h.b16 %v507
        %v1556 = vunpack.c.l.b16 %v508
        %v1557 = vunpack.c.l.b16 %v509
        %v1558 = vunpack.c.h.b16 %v509
        %v1559 = vunpack.c.l.b16 %v510
        %v1560 = vunpack.c.h.b16 %v510
        %v1561 = vunpack.c.l.b16 %v511
        %v1562 = vunpack.c.h.b16 %v511
        %v1563 = vunpack.c.l.b16 %v512
        %v1564 = vunpack.c.h.b16 %v512
        %v1565 = vunpack.c.l.b16 %v513
        %v1566 = vunpack.c.l.b16 %v514
        %v1567 = vunpack.c.h.b16 %v514
        %v1568 = vunpack.c.l.b16 %v515
        %v1569 = vunpack.c.h.b16 %v515
        %v1570 = vunpack.c.l.b16 %v516
        %v1571 = vunpack.c.h.b16 %v516
        %v1572 = vunpack.c.l.b16 %v517
        %v1573 = vunpack.c.h.b16 %v517
        %v1574 = vunpack.c.l.b16 %v518
        %v1575 = vpack.c.b16 %v1008, %v999
        %v1576 = vpack.c.b16 %v1009, %v1000
        %v1577 = vpack.c.b16 %v1010, %v1001
        %v1578 = vpack.c.b16 %v1011, %v1002
        %v1579 = vpack.c.b16 %v1012, %v1003
        %v1580 = vpack.c.b16 %v1013, %v1004
        %v1581 = vpack.c.b16 %v1014, %v1005
        %v1582 = vpack.c.b16 %v1015, %v1006
        %v1583 = vpack.c.b16 %v1016, %v1007
        %v1584 = vpack.c.b16 %v1026, %v1017
        %v1585 = vpack.c.b16 %v1027, %v1018
        %v1586 = vpack.c.b16 %v1028, %v1019
        %v1587 = vpack.c.b16 %v1029, %v1020
        %v1588 = vpack.c.b16 %v1030, %v1021
        %v1589 = vpack.c.b16 %v1031, %v1022
        %v1590 = vpack.c.b16 %v1032, %v1023
        %v1591 = vpack.c.b16 %v1033, %v1024
        %v1592 = vpack.c.b16 %v1034, %v1025
        %v1593 = vpack.c.b16 %v1044, %v1035
        %v1594 = vpack.c.b16 %v1045, %v1036
        %v1595 = vpack.c.b16 %v1046, %v1037
        %v1596 = vpack.c.b16 %v1047, %v1038
        %v1597 = vpack.c.b16 %v1048, %v1039
        %v1598 = vpack.c.b16 %v1049, %v1040
        %v1599 = vpack.c.b16 %v1050, %v1041
        %v1600 = vpack.c.b16 %v1051, %v1042
        %v1601 = vpack.c.b16 %v1052, %v1043
        %v1602 = vpack.c.b16 %v1062, %v1053
        %v1603 = vpack.c.b16 %v1063, %v1054
        %v1604 = vpack.c.b16 %v1064, %v1055
        %v1605 = vpack.c.b16 %v1065, %v1056
        %v1606 = vpack.c.b16 %v1066, %v1057
        %v1607 = vpack.c.b16 %v1067, %v1058
        %v1608 = vpack.c.b16 %v1068, %v1059
        %v1609 = vpack.c.b16 %v1069, %v1060
        %v1610 = vpack.c.b16 %v1070, %v1061
        %v1611 = vpack.c.b16 %v1080, %v1071
        %v1612 = vpack.c.b16 %v1081, %v1072
        %v1613 = vpack.c.b16 %v1082, %v1073
        %v1614 = vpack.c.b16 %v1083, %v1074
        %v1615 = vpack.c.b16 %v1084, %v1075
        %v1616 = vpack.c.b16 %v1085, %v1076
        %v1617 = vpack.c.b16 %v1086, %v1077
        %v1618 = vpack.c.b16 %v1087, %v1078
        %v1619 = vpack.c.b16 %v1088, %v1079
        %v1620 = vpack.c.b16 %v1098, %v1089
        %v1621 = vpack.c.b16 %v1099, %v1090
        %v1622 = vpack.c.b16 %v1100, %v1091
        %v1623 = vpack.c.b16 %v1101, %v1092
        %v1624 = vpack.c.b16 %v1102, %v1093
        %v1625 = vpack.c.b16 %v1103, %v1094
        %v1626 = vpack.c.b16 %v1104, %v1095
        %v1627 = vpack.c.b16 %v1105, %v1096
        %v1628 = vpack.c.b16 %v1106, %v1097
        %v1629 = vpack.c.b16 %v1116, %v1107
        %v1630 = vpack.c.b16 %v1117, %v1108
        %v1631 = vpack.c.b16 %v1118, %v1109
        %v1632 = vpack.c.b16 %v1119, %v1110
        %v1633 = vpack.c.b16 %v1120, %v1111
        %v1634 = vpack.c.b16 %v1121, %v1112
        %v1635 = vpack.c.b16 %v1122, %v1113
        %v1636 = vpack.c.b16 %v1123, %v1114
        %v1637 = vpack.c.b16 %v1124, %v1115
        %v1638 = vpack.c.b16 %v1134, %v1125
        %v1639 = vpack.c.b16 %v1135, %v1126
        %v1640 = vpack.c.b16 %v1136, %v1127
        %v1641 = vpack.c.b16 %v1137, %v1128
        %v1642 = vpack.c.b16 %v1138, %v1129
        %v1643 = vpack.c.b16 %v1139, %v1130
        %v1644 = vpack.c.b16 %v1140, %v1131
        %v1645 = vpack.c.b16 %v1141, %v1132
        %v1646 = vpack.c.b16 %v1142, %v1133
        %v1647 = vpack.c.b16 %v1152, %v1143
        %v1648 = vpack.c.b16 %v1153, %v1144
        %v1649 = vpack.c.b16 %v1154, %v1145
        %v1650 = vpack.c.b16 %v1155, %v1146
        %v1651 = vpack.c.b16 %v1156, %v1147
        %v1652 = vpack.c.b16 %v1157, %v1148
        %v1653 = vpack.c.b16 %v1158, %v1149
        %v1654 = vpack.c.b16 %v1159, %v1150
        %v1655 = vpack.c.b16 %v1160, %v1151
        %v1656 = vpack.c.b16 %v1170, %v1161
        %v1657 = vpack.c.b16 %v1171, %v1162
        %v1658 = vpack.c.b16 %v1172, %v1163
        %v1659 = vpack.c.b16 %v1173, %v1164
        %v1660 = vpack.c.b16 %v1174, %v1165
        %v1661 = vpack.c.b16 %v1175, %v1166
        %v1662 = vpack.c.b16 %v1176, %v1167
        %v1663 = vpack.c.b16 %v1177, %v1168
        %v1664 = vpack.c.b16 %v1178, %v1169
        %v1665 = vpack.c.b16 %v1188, %v1179
        %v1666 = vpack.c.b16 %v1189, %v1180
        %v1667 = vpack.c.b16 %v1190, %v1181
        %v1668 = vpack.c.b16 %v1191, %v1182
        %v1669 = vpack.c.b16 %v1192, %v1183
        %v1670 = vpack.c.b16 %v1193, %v1184
        %v1671 = vpack.c.b16 %v1194, %v1185
        %v1672 = vpack.c.b16 %v1195, %v1186
        %v1673 = vpack.c.b16 %v1196, %v1187
        %v1674 = vpack.c.b16 %v1206, %v1197
        %v1675 = vpack.c.b16 %v1207, %v1198
        %v1676 = vpack.c.b16 %v1208, %v1199
        %v1677 = vpack.c.b16 %v1209, %v1200
        %v1678 = vpack.c.b16 %v1210, %v1201
        %v1679 = vpack.c.b16 %v1211, %v1202
        %v1680 = vpack.c.b16 %v1212, %v1203
        %v1681 = vpack.c.b16 %v1213, %v1204
        %v1682 = vpack.c.b16 %v1214, %v1205
        %v1683 = vpack.c.b16 %v1224, %v1215
        %v1684 = vpack.c.b16 %v1225, %v1216
        %v1685 = vpack.c.b16 %v1226, %v1217
        %v1686 = vpack.c.b16 %v1227, %v1218
        %v1687 = vpack.c.b16 %v1228, %v1219
        %v1688 = vpack.c.b16 %v1229, %v1220
        %v1689 = vpack.c.b16 %v1230, %v1221
        %v1690 = vpack.c.b16 %v1231, %v1222
        %v1691 = vpack.c.b16 %v1232, %v1223
        %v1692 = vpack.c.b16 %v1242, %v1233
        %v1693 = vpack.c.b16 %v1243, %v1234
        %v1694 = vpack.c.b16 %v1244, %v1235
        %v1695 = vpack.c.b16 %v1245, %v1236
        %v1696 = vpack.c.b16 %v1246, %v1237
        %v1697 = vpack.c.b16 %v1247, %v1238
        %v1698 = vpack.c.b16 %v1248, %v1239
        %v1699 = vpack.c.b16 %v1249, %v1240
        %v1700 = vpack.c.b16 %v1250, %v1241
        %v1701 = vpack.c.b16 %v1260, %v1251
        %v1702 = vpack.c.b16 %v1261, %v1252
        %v1703 = vpack.c.b16 %v1262, %v1253
        %v1704 = vpack.c.b16 %v1263, %v1254
        %v1705 = vpack.c.b16 %v1264, %v1255
        %v1706 = vpack.c.b16 %v1265, %v1256
        %v1707 = vpack.c.b16 %v1266, %v1257
        %v1708 = vpack.c.b16 %v1267, %v1258
        %v1709 = vpack.c.b16 %v1268, %v1259
        %v1710 = vpack.c.b16 %v1278, %v1269
        %v1711 = vpack.c.b16 %v1279, %v1270
        %v1712 = vpack.c.b16 %v1280, %v1271
        %v1713 = vpack.c.b16 %v1281, %v1272
        %v1714 = vpack.c.b16 %v1282, %v1273
        %v1715 = vpack.c.b16 %v1283, %v1274
        %v1716 = vpack.c.b16 %v1284, %v1275
        %v1717 = vpack.c.b16 %v1285, %v1276
        %v1718 = vpack.c.b16 %v1286, %v1277
        %v1719 = vpack.c.b16 %v1296, %v1287
        %v1720 = vpack.c.b16 %v1297, %v1288
        %v1721 = vpack.c.b16 %v1298, %v1289
        %v1722 = vpack.c.b16 %v1299, %v1290
        %v1723 = vpack.c.b16 %v1300, %v1291
        %v1724 = vpack.c.b16 %v1301, %v1292
        %v1725 = vpack.c.b16 %v1302, %v1293
        %v1726 = vpack.c.b16 %v1303, %v1294
        %v1727 = vpack.c.b16 %v1304, %v1295
        %v1728 = vpack.c.b16 %v1314, %v1305
        %v1729 = vpack.c.b16 %v1315, %v1306
        %v1730 = vpack.c.b16 %v1316, %v1307
        %v1731 = vpack.c.b16 %v1317, %v1308
        %v1732 = vpack.c.b16 %v1318, %v1309
        %v1733 = vpack.c.b16 %v1319, %v1310
        %v1734 = vpack.c.b16 %v1320, %v1311
        %v1735 = vpack.c.b16 %v1321, %v1312
        %v1736 = vpack.c.b16 %v1322, %v1313
        %v1737 = vpack.c.b16 %v1332, %v1323
        %v1738 = vpack.c.b16 %v1333, %v1324
        %v1739 = vpack.c.b16 %v1334, %v1325
        %v1740 = vpack.c.b16 %v1335, %v1326
        %v1741 = vpack.c.b16 %v1336, %v1327
        %v1742 = vpack.c.b16 %v1337, %v1328
        %v1743 = vpack.c.b16 %v1338, %v1329
        %v1744 = vpack.c.b16 %v1339, %v1330
        %v1745 = vpack.c.b16 %v1340, %v1331
        %v1746 = vpack.c.b16 %v1350, %v1341
        %v1747 = vpack.c.b16 %v1351, %v1342
        %v1748 = vpack.c.b16 %v1352, %v1343
        %v1749 = vpack.c.b16 %v1353, %v1344
        %v1750 = vpack.c.b16 %v1354, %v1345
        %v1751 = vpack.c.b16 %v1355, %v1346
        %v1752 = vpack.c.b16 %v1356, %v1347
        %v1753 = vpack.c.b16 %v1357, %v1348
        %v1754 = vpack.c.b16 %v1358, %v1349
        %v1755 = vpack.c.b16 %v1368, %v1359
        %v1756 = vpack.c.b16 %v1369, %v1360
        %v1757 = vpack.c.b16 %v1370, %v1361
        %v1758 = vpack.c.b16 %v1371, %v1362
        %v1759 = vpack.c.b16 %v1372, %v1363
        %v1760 = vpack.c.b16 %v1373, %v1364
        %v1761 = vpack.c.b16 %v1374, %v1365
        %v1762 = vpack.c.b16 %v1375, %v1366
        %v1763 = vpack.c.b16 %v1376, %v1367
        %v1764 = vpack.c.b16 %v1386, %v1377
        %v1765 = vpack.c.b16 %v1387, %v1378
        %v1766 = vpack.c.b16 %v1388, %v1379
        %v1767 = vpack.c.b16 %v1389, %v1380
        %v1768 = vpack.c.b16 %v1390, %v1381
        %v1769 = vpack.c.b16 %v1391, %v1382
        %v1770 = vpack.c.b16 %v1392, %v1383
        %v1771 = vpack.c.b16 %v1393, %v1384
        %v1772 = vpack.c.b16 %v1394, %v1385
        %v1773 = vpack.c.b16 %v1404, %v1395
        %v1774 = vpack.c.b16 %v1405, %v1396
        %v1775 = vpack.c.b16 %v1406, %v1397
        %v1776 = vpack.c.b16 %v1407, %v1398
        %v1777 = vpack.c.b16 %v1408, %v1399
        %v1778 = vpack.c.b16 %v1409, %v1400
        %v1779 = vpack.c.b16 %v1410, %v1401
        %v1780 = vpack.c.b16 %v1411, %v1402
        %v1781 = vpack.c.b16 %v1412, %v1403
        %v1782 = vpack.c.b16 %v1422, %v1413
        %v1783 = vpack.c.b16 %v1423, %v1414
        %v1784 = vpack.c.b16 %v1424, %v1415
        %v1785 = vpack.c.b16 %v1425, %v1416
        %v1786 = vpack.c.b16 %v1426, %v1417
        %v1787 = vpack.c.b16 %v1427, %v1418
        %v1788 = vpack.c.b16 %v1428, %v1419
        %v1789 = vpack.c.b16 %v1429, %v1420
        %v1790 = vpack.c.b16 %v1430, %v1421
        %v1791 = vpack.c.b16 %v1440, %v1431
        %v1792 = vpack.c.b16 %v1441, %v1432
        %v1793 = vpack.c.b16 %v1442, %v1433
        %v1794 = vpack.c.b16 %v1443, %v1434
        %v1795 = vpack.c.b16 %v1444, %v1435
        %v1796 = vpack.c.b16 %v1445, %v1436
        %v1797 = vpack.c.b16 %v1446, %v1437
        %v1798 = vpack.c.b16 %v1447, %v1438
        %v1799 = vpack.c.b16 %v1448, %v1439
        %v1800 = vpack.c.b16 %v1458, %v1449
        %v1801 = vpack.c.b16 %v1459, %v1450
        %v1802 = vpack.c.b16 %v1460, %v1451
        %v1803 = vpack.c.b16 %v1461, %v1452
        %v1804 = vpack.c.b16 %v1462, %v1453
        %v1805 = vpack.c.b16 %v1463, %v1454
        %v1806 = vpack.c.b16 %v1464, %v1455
        %v1807 = vpack.c.b16 %v1465, %v1456
        %v1808 = vpack.c.b16 %v1466, %v1457
        %v1809 = vpack.c.b16 %v1476, %v1467
        %v1810 = vpack.c.b16 %v1477, %v1468
        %v1811 = vpack.c.b16 %v1478, %v1469
        %v1812 = vpack.c.b16 %v1479, %v1470
        %v1813 = vpack.c.b16 %v1480, %v1471
        %v1814 = vpack.c.b16 %v1481, %v1472
        %v1815 = vpack.c.b16 %v1482, %v1473
        %v1816 = vpack.c.b16 %v1483, %v1474
        %v1817 = vpack.c.b16 %v1484, %v1475
        %v1818 = vpack.c.b16 %v1494, %v1485
        %v1819 = vpack.c.b16 %v1495, %v1486
        %v1820 = vpack.c.b16 %v1496, %v1487
        %v1821 = vpack.c.b16 %v1497, %v1488
        %v1822 = vpack.c.b16 %v1498, %v1489
        %v1823 = vpack.c.b16 %v1499, %v1490
        %v1824 = vpack.c.b16 %v1500, %v1491
        %v1825 = vpack.c.b16 %v1501, %v1492
        %v1826 = vpack.c.b16 %v1502, %v1493
        %v1827 = vpack.c.b16 %v1512, %v1503
        %v1828 = vpack.c.b16 %v1513, %v1504
        %v1829 = vpack.c.b16 %v1514, %v1505
        %v1830 = vpack.c.b16 %v1515, %v1506
        %v1831 = vpack.c.b16 %v1516, %v1507
        %v1832 = vpack.c.b16 %v1517, %v1508
        %v1833 = vpack.c.b16 %v1518, %v1509
        %v1834 = vpack.c.b16 %v1519, %v1510
        %v1835 = vpack.c.b16 %v1520, %v1511
        %v1836 = vpack.c.b16 %v1530, %v1521
        %v1837 = vpack.c.b16 %v1531, %v1522
        %v1838 = vpack.c.b16 %v1532, %v1523
        %v1839 = vpack.c.b16 %v1533, %v1524
        %v1840 = vpack.c.b16 %v1534, %v1525
        %v1841 = vpack.c.b16 %v1535, %v1526
        %v1842 = vpack.c.b16 %v1536, %v1527
        %v1843 = vpack.c.b16 %v1537, %v1528
        %v1844 = vpack.c.b16 %v1538, %v1529
        %v1845 = vpack.c.b16 %v1548, %v1539
        %v1846 = vpack.c.b16 %v1549, %v1540
        %v1847 = vpack.c.b16 %v1550, %v1541
        %v1848 = vpack.c.b16 %v1551, %v1542
        %v1849 = vpack.c.b16 %v1552, %v1543
        %v1850 = vpack.c.b16 %v1553, %v1544
        %v1851 = vpack.c.b16 %v1554, %v1545
        %v1852 = vpack.c.b16 %v1555, %v1546
        %v1853 = vpack.c.b16 %v1556, %v1547
        %v1854 = vpack.c.b16 %v1566, %v1557
        %v1855 = vpack.c.b16 %v1567, %v1558
        %v1856 = vpack.c.b16 %v1568, %v1559
        %v1857 = vpack.c.b16 %v1569, %v1560
        %v1858 = vpack.c.b16 %v1570, %v1561
        %v1859 = vpack.c.b16 %v1571, %v1562
        %v1860 = vpack.c.b16 %v1572, %v1563
        %v1861 = vpack.c.b16 %v1573, %v1564
        %v1862 = vpack.c.b16 %v1574, %v1565
        %2151 = vmatprep.subr.bf16.mxu0 %v1576
        %2152 = vmatpush1.bf16.msra.mxu0 %v1575
        %2153 = vmatprep.subr.bf16.mxu0 %v1585
        %2154 = vmatpush1.bf16.msra.mxu0 %v1584
        %2155 = vmatprep.subr.bf16.mxu0 %v1594
        %2156 = vmatpush1.bf16.msra.mxu0 %v1593
        %2157 = vmatprep.subr.bf16.mxu0 %v1603
        %2158 = vmatpush1.bf16.msra.mxu0 %v1602
        %2159 = vmatprep.subr.bf16.mxu0 %v1612
        %2160 = vmatpush1.bf16.msra.mxu0 %v1611
        %2161 = vmatprep.subr.bf16.mxu0 %v1621
        %2162 = vmatpush1.bf16.msra.mxu0 %v1620
        %2163 = vmatprep.subr.bf16.mxu0 %v1630
        %2164 = vmatpush1.bf16.msra.mxu0 %v1629
        %2165 = vmatprep.subr.bf16.mxu0 %v1639
        %2166 = vmatpush1.bf16.msra.mxu0 %v1638
        %2167 = vmatprep.subr.bf16.mxu0 %v1648
        %2168 = vmatpush1.bf16.msra.mxu0 %v1647
        %2169 = vmatprep.subr.bf16.mxu0 %v1657
        %2170 = vmatpush1.bf16.msra.mxu0 %v1656
        %2171 = vmatprep.subr.bf16.mxu0 %v1666
        %2172 = vmatpush1.bf16.msra.mxu0 %v1665
        %2173 = vmatprep.subr.bf16.mxu0 %v1675
        %2174 = vmatpush1.bf16.msra.mxu0 %v1674
        %2175 = vmatprep.subr.bf16.mxu0 %v1684
        %2176 = vmatpush1.bf16.msra.mxu0 %v1683
        %2177 = vmatprep.subr.bf16.mxu0 %v1693
        %2178 = vmatpush1.bf16.msra.mxu0 %v1692
        %2179 = vmatprep.subr.bf16.mxu0 %v1702
        %2180 = vmatpush1.bf16.msra.mxu0 %v1701
        %2181 = vmatprep.subr.bf16.mxu0 %v1711
        %2182 = vmatpush1.bf16.msra.mxu0 %v1710
        %2183 = vmatprep.mubr.bf16.mxu0 %v616
        %2184 = vmatmul.mubr.bf16.gmra.mrb[0].mxu0 %v615
        %v2185 = vpop.f32.mrb[0].mxu0
        %v2186 = vadd.f32 0.0, %v2185
        %v2187 = vpop.f32.mrb[0].mxu0
        %v2188 = vadd.f32 0.0, %v2187
        %v2189 = vpop.f32.mrb[0].mxu0
        %v2190 = vadd.f32 0.0, %v2189
        %v2191 = vpop.f32.mrb[0].mxu0
        %v2192 = vadd.f32 0.0, %v2191
        %2193 = vmatprep.mubr.bf16.mxu0 %v620
        %2194 = vmatmul.mubr.bf16.gmra.mrb[0].mxu0 %v619
        %v2195 = vpop.f32.mrb[0].mxu0
        %v2196 = vadd.f32 0.0, %v2195
        %v2197 = vpop.f32.mrb[0].mxu0
        %v2198 = vadd.f32 0.0, %v2197
        %v2199 = vpop.f32.mrb[0].mxu0
        %v2200 = vadd.f32 0.0, %v2199
        %v2201 = vpop.f32.mrb[0].mxu0
        %v2202 = vadd.f32 0.0, %v2201
        %2203 = vmatprep.mubr.bf16.mxu0 %v624
        %2204 = vmatmul.mubr.bf16.gmra.mrb[0].mxu0 %v623
        %v2205 = vpop.f32.mrb[0].mxu0
        %v2206 = vadd.f32 0.0, %v2205
        %v2207 = vpop.f32.mrb[0].mxu0
        %v2208 = vadd.f32 0.0, %v2207
        %v2209 = vpop.f32.mrb[0].mxu0
        %v2210 = vadd.f32 0.0, %v2209
        %v2211 = vpop.f32.mrb[0].mxu0
        %v2212 = vadd.f32 0.0, %v2211
        %2213 = vmatprep.mubr.bf16.mxu0 %v628
        %2214 = vmatmul.mubr.bf16.gmra.mrb[0].mxu0 %v627
        %v2215 = vpop.f32.mrb[0].mxu0
        %v2216 = vadd.f32 0.0, %v2215
        %v2217 = vpop.f32.mrb[0].mxu0
        %v2218 = vadd.f32 0.0, %v2217
        %v2219 = vpop.f32.mrb[0].mxu0
        %v2220 = vadd.f32 0.0, %v2219
        %v2221 = vpop.f32.mrb[0].mxu0
        %v2222 = vadd.f32 0.0, %v2221
        %2223 = vmatprep.mubr.bf16.mxu0 %v632
        %2224 = vmatmul.mubr.bf16.gmra.mrb[0].mxu0 %v631
        %v2225 = vpop.f32.mrb[0].mxu0
        %v2226 = vadd.f32 0.0, %v2225
        %v2227 = vpop.f32.mrb[0].mxu0
        %v2228 = vadd.f32 0.0, %v2227
        %v2229 = vpop.f32.mrb[0].mxu0
        %v2230 = vadd.f32 0.0, %v2229
        %v2231 = vpop.f32.mrb[0].mxu0
        %v2232 = vadd.f32 0.0, %v2231
        %2233 = vmatprep.mubr.bf16.mxu0 %v636
        %2234 = vmatmul.mubr.bf16.gmra.mrb[0].mxu0 %v635
        %v2235 = vpop.f32.mrb[0].mxu0
        %v2236 = vadd.f32 0.0, %v2235
        %v2237 = vpop.f32.mrb[0].mxu0
        %v2238 = vadd.f32 0.0, %v2237
        %v2239 = vpop.f32.mrb[0].mxu0
        %v2240 = vadd.f32 0.0, %v2239
        %v2241 = vpop.f32.mrb[0].mxu0
        %v2242 = vadd.f32 0.0, %v2241
        %2243 = vmatprep.mubr.bf16.mxu0 %v640
        %2244 = vmatmul.mubr.bf16.gmra.mrb[0].mxu0 %v639
        %v2245 = vpop.f32.mrb[0].mxu0
        %v2246 = vadd.f32 0.0, %v2245
        %v2247 = vpop.f32.mrb[0].mxu0
        %v2248 = vadd.f32 0.0, %v2247
        %v2249 = vpop.f32.mrb[0].mxu0
        %v2250 = vadd.f32 0.0, %v2249
        %v2251 = vpop.f32.mrb[0].mxu0
        %v2252 = vadd.f32 0.0, %v2251
        %2253 = vmatprep.mubr.bf16.mxu0 %v644
        %2254 = vmatmul.mubr.bf16.gmra.mrb[0].mxu0 %v643
        %v2255 = vpop.f32.mrb[0].mxu0
        %v2256 = vadd.f32 0.0, %v2255
        %v2257 = vpop.f32.mrb[0].mxu0
        %v2258 = vadd.f32 0.0, %v2257
        %v2259 = vpop.f32.mrb[0].mxu0
        %v2260 = vadd.f32 0.0, %v2259
        %v2261 = vpop.f32.mrb[0].mxu0
        %v2262 = vadd.f32 0.0, %v2261
        %2263 = vdwg.mxu0
        %2264 = vmatprep.subr.bf16.mxu0 %v1720
        %2265 = vmatpush1.bf16.msra.mxu0 %v1719
        %2266 = vmatprep.subr.bf16.mxu0 %v1729
        %2267 = vmatpush1.bf16.msra.mxu0 %v1728
        %2268 = vmatprep.subr.bf16.mxu0 %v1738
        %2269 = vmatpush1.bf16.msra.mxu0 %v1737
        %2270 = vmatprep.subr.bf16.mxu0 %v1747
        %2271 = vmatpush1.bf16.msra.mxu0 %v1746
        %2272 = vmatprep.subr.bf16.mxu0 %v1756
        %2273 = vmatpush1.bf16.msra.mxu0 %v1755
        %2274 = vmatprep.subr.bf16.mxu0 %v1765
        %2275 = vmatpush1.bf16.msra.mxu0 %v1764
        %2276 = vmatprep.subr.bf16.mxu0 %v1774
        %2277 = vmatpush1.bf16.msra.mxu0 %v1773
        %2278 = vmatprep.subr.bf16.mxu0 %v1783
        %2279 = vmatpush1.bf16.msra.mxu0 %v1782
        %2280 = vmatprep.subr.bf16.mxu0 %v1792
        %2281 = vmatpush1.bf16.msra.mxu0 %v1791
        %2282 = vmatprep.subr.bf16.mxu0 %v1801
        %2283 = vmatpush1.bf16.msra.mxu0 %v1800
        %2284 = vmatprep.subr.bf16.mxu0 %v1810
        %2285 = vmatpush1.bf16.msra.mxu0 %v1809
        %2286 = vmatprep.subr.bf16.mxu0 %v1819
        %2287 = vmatpush1.bf16.msra.mxu0 %v1818
        %2288 = vmatprep.subr.bf16.mxu0 %v1828
        %2289 = vmatpush1.bf16.msra.mxu0 %v1827
        %2290 = vmatprep.subr.bf16.mxu0 %v1837
        %2291 = vmatpush1.bf16.msra.mxu0 %v1836
        %2292 = vmatprep.subr.bf16.mxu0 %v1846
        %2293 = vmatpush1.bf16.msra.mxu0 %v1845
        %2294 = vmatprep.subr.bf16.mxu0 %v1855
        %2295 = vmatpush1.bf16.msra.mxu0 %v1854
        %2296 = vmatprep.mubr.bf16.mxu0 %v618
        %2297 = vmatmul.mubr.bf16.gmra.mrb[0].mxu0 %v617
        %v2298 = vpop.f32.mrb[0].mxu0
        %v2299 = vadd.f32 %v2186, %v2298
        %v2300 = vpop.f32.mrb[0].mxu0
        %v2301 = vadd.f32 %v2188, %v2300
        %v2302 = vpop.f32.mrb[0].mxu0
        %v2303 = vadd.f32 %v2190, %v2302
        %v2304 = vpop.f32.mrb[0].mxu0
        %v2305 = vadd.f32 %v2192, %v2304
        %2306 = vmatprep.mubr.bf16.mxu0 %v622
        %2307 = vmatmul.mubr.bf16.gmra.mrb[0].mxu0 %v621
        %v2308 = vpop.f32.mrb[0].mxu0
        %v2309 = vadd.f32 %v2196, %v2308
        %v2310 = vpop.f32.mrb[0].mxu0
        %v2311 = vadd.f32 %v2198, %v2310
        %v2312 = vpop.f32.mrb[0].mxu0
        %v2313 = vadd.f32 %v2200, %v2312
        %v2314 = vpop.f32.mrb[0].mxu0
        %v2315 = vadd.f32 %v2202, %v2314
        %2316 = vmatprep.mubr.bf16.mxu0 %v626
        %2317 = vmatmul.mubr.bf16.gmra.mrb[0].mxu0 %v625
        %v2318 = vpop.f32.mrb[0].mxu0
        %v2319 = vadd.f32 %v2206, %v2318
        %v2320 = vpop.f32.mrb[0].mxu0
        %v2321 = vadd.f32 %v2208, %v2320
        %v2322 = vpop.f32.mrb[0].mxu0
        %v2323 = vadd.f32 %v2210, %v2322
        %v2324 = vpop.f32.mrb[0].mxu0
        %v2325 = vadd.f32 %v2212, %v2324
        %2326 = vmatprep.mubr.bf16.mxu0 %v630
        %2327 = vmatmul.mubr.bf16.gmra.mrb[0].mxu0 %v629
        %v2328 = vpop.f32.mrb[0].mxu0
        %v2329 = vadd.f32 %v2216, %v2328
        %v2330 = vpop.f32.mrb[0].mxu0
        %v2331 = vadd.f32 %v2218, %v2330
        %v2332 = vpop.f32.mrb[0].mxu0
        %v2333 = vadd.f32 %v2220, %v2332
        %v2334 = vpop.f32.mrb[0].mxu0
        %v2335 = vadd.f32 %v2222, %v2334
        %2336 = vmatprep.mubr.bf16.mxu0 %v634
        %2337 = vmatmul.mubr.bf16.gmra.mrb[0].mxu0 %v633
        %v2338 = vpop.f32.mrb[0].mxu0
        %v2339 = vadd.f32 %v2226, %v2338
        %v2340 = vpop.f32.mrb[0].mxu0
        %v2341 = vadd.f32 %v2228, %v2340
        %v2342 = vpop.f32.mrb[0].mxu0
        %v2343 = vadd.f32 %v2230, %v2342
        %v2344 = vpop.f32.mrb[0].mxu0
        %v2345 = vadd.f32 %v2232, %v2344
        %2346 = vmatprep.mubr.bf16.mxu0 %v638
        %2347 = vmatmul.mubr.bf16.gmra.mrb[0].mxu0 %v637
        %v2348 = vpop.f32.mrb[0].mxu0
        %v2349 = vadd.f32 %v2236, %v2348
        %v2350 = vpop.f32.mrb[0].mxu0
        %v2351 = vadd.f32 %v2238, %v2350
        %v2352 = vpop.f32.mrb[0].mxu0
        %v2353 = vadd.f32 %v2240, %v2352
        %v2354 = vpop.f32.mrb[0].mxu0
        %v2355 = vadd.f32 %v2242, %v2354
        %2356 = vmatprep.mubr.bf16.mxu0 %v642
        %2357 = vmatmul.mubr.bf16.gmra.mrb[0].mxu0 %v641
        %v2358 = vpop.f32.mrb[0].mxu0
        %v2359 = vadd.f32 %v2246, %v2358
        %v2360 = vpop.f32.mrb[0].mxu0
        %v2361 = vadd.f32 %v2248, %v2360
        %v2362 = vpop.f32.mrb[0].mxu0
        %v2363 = vadd.f32 %v2250, %v2362
        %v2364 = vpop.f32.mrb[0].mxu0
        %v2365 = vadd.f32 %v2252, %v2364
        %2366 = vmatprep.mubr.bf16.mxu0 %v646
        %2367 = vmatmul.mubr.bf16.gmra.mrb[0].mxu0 %v645
        %v2368 = vpop.f32.mrb[0].mxu0
        %v2369 = vadd.f32 %v2256, %v2368
        %v2370 = vpop.f32.mrb[0].mxu0
        %v2371 = vadd.f32 %v2258, %v2370
        %v2372 = vpop.f32.mrb[0].mxu0
        %v2373 = vadd.f32 %v2260, %v2372
        %v2374 = vpop.f32.mrb[0].mxu0
        %v2375 = vadd.f32 %v2262, %v2374
        %2376 = vdwg.mxu0
        %2377 = vmatprep.subr.bf16.mxu0 %v1578
        %2378 = vmatpush1.bf16.msra.mxu0 %v1577
        %2379 = vmatprep.subr.bf16.mxu0 %v1587
        %2380 = vmatpush1.bf16.msra.mxu0 %v1586
        %2381 = vmatprep.subr.bf16.mxu0 %v1596
        %2382 = vmatpush1.bf16.msra.mxu0 %v1595
        %2383 = vmatprep.subr.bf16.mxu0 %v1605
        %2384 = vmatpush1.bf16.msra.mxu0 %v1604
        %2385 = vmatprep.subr.bf16.mxu0 %v1614
        %2386 = vmatpush1.bf16.msra.mxu0 %v1613
        %2387 = vmatprep.subr.bf16.mxu0 %v1623
        %2388 = vmatpush1.bf16.msra.mxu0 %v1622
        %2389 = vmatprep.subr.bf16.mxu0 %v1632
        %2390 = vmatpush1.bf16.msra.mxu0 %v1631
        %2391 = vmatprep.subr.bf16.mxu0 %v1641
        %2392 = vmatpush1.bf16.msra.mxu0 %v1640
        %2393 = vmatprep.subr.bf16.mxu0 %v1650
        %2394 = vmatpush1.bf16.msra.mxu0 %v1649
        %2395 = vmatprep.subr.bf16.mxu0 %v1659
        %2396 = vmatpush1.bf16.msra.mxu0 %v1658
        %2397 = vmatprep.subr.bf16.mxu0 %v1668
        %2398 = vmatpush1.bf16.msra.mxu0 %v1667
        %2399 = vmatprep.subr.bf16.mxu0 %v1677
        %2400 = vmatpush1.bf16.msra.mxu0 %v1676
        %2401 = vmatprep.subr.bf16.mxu0 %v1686
        %2402 = vmatpush1.bf16.msra.mxu0 %v1685
        %2403 = vmatprep.subr.bf16.mxu0 %v1695
        %2404 = vmatpush1.bf16.msra.mxu0 %v1694
        %2405 = vmatprep.subr.bf16.mxu0 %v1704
        %2406 = vmatpush1.bf16.msra.mxu0 %v1703
        %2407 = vmatprep.subr.bf16.mxu0 %v1713
        %2408 = vmatpush1.bf16.msra.mxu0 %v1712
        %2409 = vmatprep.mubr.bf16.mxu0 %v616
        %2410 = vmatmul.mubr.bf16.gmra.mrb[0].mxu0 %v615
        %v2411 = vpop.f32.mrb[0].mxu0
        %v2412 = vadd.f32 0.0, %v2411
        %v2413 = vpop.f32.mrb[0].mxu0
        %v2414 = vadd.f32 0.0, %v2413
        %v2415 = vpop.f32.mrb[0].mxu0
        %v2416 = vadd.f32 0.0, %v2415
        %v2417 = vpop.f32.mrb[0].mxu0
        %v2418 = vadd.f32 0.0, %v2417
        %2419 = vmatprep.mubr.bf16.mxu0 %v620
        %2420 = vmatmul.mubr.bf16.gmra.mrb[0].mxu0 %v619
        %v2421 = vpop.f32.mrb[0].mxu0
        %v2422 = vadd.f32 0.0, %v2421
        %v2423 = vpop.f32.mrb[0].mxu0
        %v2424 = vadd.f32 0.0, %v2423
        %v2425 = vpop.f32.mrb[0].mxu0
        %v2426 = vadd.f32 0.0, %v2425
        %v2427 = vpop.f32.mrb[0].mxu0
        %v2428 = vadd.f32 0.0, %v2427
        %2429 = vmatprep.mubr.bf16.mxu0 %v624
        %2430 = vmatmul.mubr.bf16.gmra.mrb[0].mxu0 %v623
        %v2431 = vpop.f32.mrb[0].mxu0
        %v2432 = vadd.f32 0.0, %v2431
        %v2433 = vpop.f32.mrb[0].mxu0
        %v2434 = vadd.f32 0.0, %v2433
        %v2435 = vpop.f32.mrb[0].mxu0
        %v2436 = vadd.f32 0.0, %v2435
        %v2437 = vpop.f32.mrb[0].mxu0
        %v2438 = vadd.f32 0.0, %v2437
        %2439 = vmatprep.mubr.bf16.mxu0 %v628
        %2440 = vmatmul.mubr.bf16.gmra.mrb[0].mxu0 %v627
        %v2441 = vpop.f32.mrb[0].mxu0
        %v2442 = vadd.f32 0.0, %v2441
        %v2443 = vpop.f32.mrb[0].mxu0
        %v2444 = vadd.f32 0.0, %v2443
        %v2445 = vpop.f32.mrb[0].mxu0
        %v2446 = vadd.f32 0.0, %v2445
        %v2447 = vpop.f32.mrb[0].mxu0
        %v2448 = vadd.f32 0.0, %v2447
        %2449 = vmatprep.mubr.bf16.mxu0 %v632
        %2450 = vmatmul.mubr.bf16.gmra.mrb[0].mxu0 %v631
        %v2451 = vpop.f32.mrb[0].mxu0
        %v2452 = vadd.f32 0.0, %v2451
        %v2453 = vpop.f32.mrb[0].mxu0
        %v2454 = vadd.f32 0.0, %v2453
        %v2455 = vpop.f32.mrb[0].mxu0
        %v2456 = vadd.f32 0.0, %v2455
        %v2457 = vpop.f32.mrb[0].mxu0
        %v2458 = vadd.f32 0.0, %v2457
        %2459 = vmatprep.mubr.bf16.mxu0 %v636
        %2460 = vmatmul.mubr.bf16.gmra.mrb[0].mxu0 %v635
        %v2461 = vpop.f32.mrb[0].mxu0
        %v2462 = vadd.f32 0.0, %v2461
        %v2463 = vpop.f32.mrb[0].mxu0
        %v2464 = vadd.f32 0.0, %v2463
        %v2465 = vpop.f32.mrb[0].mxu0
        %v2466 = vadd.f32 0.0, %v2465
        %v2467 = vpop.f32.mrb[0].mxu0
        %v2468 = vadd.f32 0.0, %v2467
        %2469 = vmatprep.mubr.bf16.mxu0 %v640
        %2470 = vmatmul.mubr.bf16.gmra.mrb[0].mxu0 %v639
        %v2471 = vpop.f32.mrb[0].mxu0
        %v2472 = vadd.f32 0.0, %v2471
        %v2473 = vpop.f32.mrb[0].mxu0
        %v2474 = vadd.f32 0.0, %v2473
        %v2475 = vpop.f32.mrb[0].mxu0
        %v2476 = vadd.f32 0.0, %v2475
        %v2477 = vpop.f32.mrb[0].mxu0
        %v2478 = vadd.f32 0.0, %v2477
        %2479 = vmatprep.mubr.bf16.mxu0 %v644
        %2480 = vmatmul.mubr.bf16.gmra.mrb[0].mxu0 %v643
        %v2481 = vpop.f32.mrb[0].mxu0
        %v2482 = vadd.f32 0.0, %v2481
        %v2483 = vpop.f32.mrb[0].mxu0
        %v2484 = vadd.f32 0.0, %v2483
        %v2485 = vpop.f32.mrb[0].mxu0
        %v2486 = vadd.f32 0.0, %v2485
        %v2487 = vpop.f32.mrb[0].mxu0
        %v2488 = vadd.f32 0.0, %v2487
        %2489 = vdwg.mxu0
        %2490 = vmatprep.subr.bf16.mxu0 %v1722
        %2491 = vmatpush1.bf16.msra.mxu0 %v1721
        %2492 = vmatprep.subr.bf16.mxu0 %v1731
        %2493 = vmatpush1.bf16.msra.mxu0 %v1730
        %2494 = vmatprep.subr.bf16.mxu0 %v1740
        %2495 = vmatpush1.bf16.msra.mxu0 %v1739
        %2496 = vmatprep.subr.bf16.mxu0 %v1749
        %2497 = vmatpush1.bf16.msra.mxu0 %v1748
        %2498 = vmatprep.subr.bf16.mxu0 %v1758
        %2499 = vmatpush1.bf16.msra.mxu0 %v1757
        %2500 = vmatprep.subr.bf16.mxu0 %v1767
        %2501 = vmatpush1.bf16.msra.mxu0 %v1766
        %2502 = vmatprep.subr.bf16.mxu0 %v1776
        %2503 = vmatpush1.bf16.msra.mxu0 %v1775
        %2504 = vmatprep.subr.bf16.mxu0 %v1785
        %2505 = vmatpush1.bf16.msra.mxu0 %v1784
        %2506 = vmatprep.subr.bf16.mxu0 %v1794
        %2507 = vmatpush1.bf16.msra.mxu0 %v1793
        %2508 = vmatprep.subr.bf16.mxu0 %v1803
        %2509 = vmatpush1.bf16.msra.mxu0 %v1802
        %2510 = vmatprep.subr.bf16.mxu0 %v1812
        %2511 = vmatpush1.bf16.msra.mxu0 %v1811
        %2512 = vmatprep.subr.bf16.mxu0 %v1821
        %2513 = vmatpush1.bf16.msra.mxu0 %v1820
        %2514 = vmatprep.subr.bf16.mxu0 %v1830
        %2515 = vmatpush1.bf16.msra.mxu0 %v1829
        %2516 = vmatprep.subr.bf16.mxu0 %v1839
        %2517 = vmatpush1.bf16.msra.mxu0 %v1838
        %2518 = vmatprep.subr.bf16.mxu0 %v1848
        %2519 = vmatpush1.bf16.msra.mxu0 %v1847
        %2520 = vmatprep.subr.bf16.mxu0 %v1857
        %2521 = vmatpush1.bf16.msra.mxu0 %v1856
        %2522 = vmatprep.mubr.bf16.mxu0 %v618
        %2523 = vmatmul.mubr.bf16.gmra.mrb[0].mxu0 %v617
        %v2524 = vpop.f32.mrb[0].mxu0
        %v2525 = vadd.f32 %v2412, %v2524
        %v2526 = vpop.f32.mrb[0].mxu0
        %v2527 = vadd.f32 %v2414, %v2526
        %v2528 = vpop.f32.mrb[0].mxu0
        %v2529 = vadd.f32 %v2416, %v2528
        %v2530 = vpop.f32.mrb[0].mxu0
        %v2531 = vadd.f32 %v2418, %v2530
        %2532 = vmatprep.mubr.bf16.mxu0 %v622
        %2533 = vmatmul.mubr.bf16.gmra.mrb[0].mxu0 %v621
        %v2534 = vpop.f32.mrb[0].mxu0
        %v2535 = vadd.f32 %v2422, %v2534
        %v2536 = vpop.f32.mrb[0].mxu0
        %v2537 = vadd.f32 %v2424, %v2536
        %v2538 = vpop.f32.mrb[0].mxu0
        %v2539 = vadd.f32 %v2426, %v2538
        %v2540 = vpop.f32.mrb[0].mxu0
        %v2541 = vadd.f32 %v2428, %v2540
        %2542 = vmatprep.mubr.bf16.mxu0 %v626
        %2543 = vmatmul.mubr.bf16.gmra.mrb[0].mxu0 %v625
        %v2544 = vpop.f32.mrb[0].mxu0
        %v2545 = vadd.f32 %v2432, %v2544
        %v2546 = vpop.f32.mrb[0].mxu0
        %v2547 = vadd.f32 %v2434, %v2546
        %v2548 = vpop.f32.mrb[0].mxu0
        %v2549 = vadd.f32 %v2436, %v2548
        %v2550 = vpop.f32.mrb[0].mxu0
        %v2551 = vadd.f32 %v2438, %v2550
        %2552 = vmatprep.mubr.bf16.mxu0 %v630
        %2553 = vmatmul.mubr.bf16.gmra.mrb[0].mxu0 %v629
        %v2554 = vpop.f32.mrb[0].mxu0
        %v2555 = vadd.f32 %v2442, %v2554
        %v2556 = vpop.f32.mrb[0].mxu0
        %v2557 = vadd.f32 %v2444, %v2556
        %v2558 = vpop.f32.mrb[0].mxu0
        %v2559 = vadd.f32 %v2446, %v2558
        %v2560 = vpop.f32.mrb[0].mxu0
        %v2561 = vadd.f32 %v2448, %v2560
        %2562 = vmatprep.mubr.bf16.mxu0 %v634
        %2563 = vmatmul.mubr.bf16.gmra.mrb[0].mxu0 %v633
        %v2564 = vpop.f32.mrb[0].mxu0
        %v2565 = vadd.f32 %v2452, %v2564
        %v2566 = vpop.f32.mrb[0].mxu0
        %v2567 = vadd.f32 %v2454, %v2566
        %v2568 = vpop.f32.mrb[0].mxu0
        %v2569 = vadd.f32 %v2456, %v2568
        %v2570 = vpop.f32.mrb[0].mxu0
        %v2571 = vadd.f32 %v2458, %v2570
        %2572 = vmatprep.mubr.bf16.mxu0 %v638
        %2573 = vmatmul.mubr.bf16.gmra.mrb[0].mxu0 %v637
        %v2574 = vpop.f32.mrb[0].mxu0
        %v2575 = vadd.f32 %v2462, %v2574
        %v2576 = vpop.f32.mrb[0].mxu0
        %v2577 = vadd.f32 %v2464, %v2576
        %v2578 = vpop.f32.mrb[0].mxu0
        %v2579 = vadd.f32 %v2466, %v2578
        %v2580 = vpop.f32.mrb[0].mxu0
        %v2581 = vadd.f32 %v2468, %v2580
        %2582 = vmatprep.mubr.bf16.mxu0 %v642
        %2583 = vmatmul.mubr.bf16.gmra.mrb[0].mxu0 %v641
        %v2584 = vpop.f32.mrb[0].mxu0
        %v2585 = vadd.f32 %v2472, %v2584
        %v2586 = vpop.f32.mrb[0].mxu0
        %v2587 = vadd.f32 %v2474, %v2586
        %v2588 = vpop.f32.mrb[0].mxu0
        %v2589 = vadd.f32 %v2476, %v2588
        %v2590 = vpop.f32.mrb[0].mxu0
        %v2591 = vadd.f32 %v2478, %v2590
        %2592 = vmatprep.mubr.bf16.mxu0 %v646
        %2593 = vmatmul.mubr.bf16.gmra.mrb[0].mxu0 %v645
        %v2594 = vpop.f32.mrb[0].mxu0
        %v2595 = vadd.f32 %v2482, %v2594
        %v2596 = vpop.f32.mrb[0].mxu0
        %v2597 = vadd.f32 %v2484, %v2596
        %v2598 = vpop.f32.mrb[0].mxu0
        %v2599 = vadd.f32 %v2486, %v2598
        %v2600 = vpop.f32.mrb[0].mxu0
        %v2601 = vadd.f32 %v2488, %v2600
        %2602 = vdwg.mxu0
        %2603 = vmatprep.subr.bf16.mxu0 %v1580
        %2604 = vmatpush1.bf16.msra.mxu0 %v1579
        %2605 = vmatprep.subr.bf16.mxu0 %v1589
        %2606 = vmatpush1.bf16.msra.mxu0 %v1588
        %2607 = vmatprep.subr.bf16.mxu0 %v1598
        %2608 = vmatpush1.bf16.msra.mxu0 %v1597
        %2609 = vmatprep.subr.bf16.mxu0 %v1607
        %2610 = vmatpush1.bf16.msra.mxu0 %v1606
        %2611 = vmatprep.subr.bf16.mxu0 %v1616
        %2612 = vmatpush1.bf16.msra.mxu0 %v1615
        %2613 = vmatprep.subr.bf16.mxu0 %v1625
        %2614 = vmatpush1.bf16.msra.mxu0 %v1624
        %2615 = vmatprep.subr.bf16.mxu0 %v1634
        %2616 = vmatpush1.bf16.msra.mxu0 %v1633
        %2617 = vmatprep.subr.bf16.mxu0 %v1643
        %2618 = vmatpush1.bf16.msra.mxu0 %v1642
        %2619 = vmatprep.subr.bf16.mxu0 %v1652
        %2620 = vmatpush1.bf16.msra.mxu0 %v1651
        %2621 = vmatprep.subr.bf16.mxu0 %v1661
        %2622 = vmatpush1.bf16.msra.mxu0 %v1660
        %2623 = vmatprep.subr.bf16.mxu0 %v1670
        %2624 = vmatpush1.bf16.msra.mxu0 %v1669
        %2625 = vmatprep.subr.bf16.mxu0 %v1679
        %2626 = vmatpush1.bf16.msra.mxu0 %v1678
        %2627 = vmatprep.subr.bf16.mxu0 %v1688
        %2628 = vmatpush1.bf16.msra.mxu0 %v1687
        %2629 = vmatprep.subr.bf16.mxu0 %v1697
        %2630 = vmatpush1.bf16.msra.mxu0 %v1696
        %2631 = vmatprep.subr.bf16.mxu0 %v1706
        %2632 = vmatpush1.bf16.msra.mxu0 %v1705
        %2633 = vmatprep.subr.bf16.mxu0 %v1715
        %2634 = vmatpush1.bf16.msra.mxu0 %v1714
        %2635 = vmatprep.mubr.bf16.mxu0 %v616
        %2636 = vmatmul.mubr.bf16.gmra.mrb[0].mxu0 %v615
        %v2637 = vpop.f32.mrb[0].mxu0
        %v2638 = vadd.f32 0.0, %v2637
        %v2639 = vpop.f32.mrb[0].mxu0
        %v2640 = vadd.f32 0.0, %v2639
        %v2641 = vpop.f32.mrb[0].mxu0
        %v2642 = vadd.f32 0.0, %v2641
        %v2643 = vpop.f32.mrb[0].mxu0
        %v2644 = vadd.f32 0.0, %v2643
        %2645 = vmatprep.mubr.bf16.mxu0 %v620
        %2646 = vmatmul.mubr.bf16.gmra.mrb[0].mxu0 %v619
        %v2647 = vpop.f32.mrb[0].mxu0
        %v2648 = vadd.f32 0.0, %v2647
        %v2649 = vpop.f32.mrb[0].mxu0
        %v2650 = vadd.f32 0.0, %v2649
        %v2651 = vpop.f32.mrb[0].mxu0
        %v2652 = vadd.f32 0.0, %v2651
        %v2653 = vpop.f32.mrb[0].mxu0
        %v2654 = vadd.f32 0.0, %v2653
        %2655 = vmatprep.mubr.bf16.mxu0 %v624
        %2656 = vmatmul.mubr.bf16.gmra.mrb[0].mxu0 %v623
        %v2657 = vpop.f32.mrb[0].mxu0
        %v2658 = vadd.f32 0.0, %v2657
        %v2659 = vpop.f32.mrb[0].mxu0
        %v2660 = vadd.f32 0.0, %v2659
        %v2661 = vpop.f32.mrb[0].mxu0
        %v2662 = vadd.f32 0.0, %v2661
        %v2663 = vpop.f32.mrb[0].mxu0
        %v2664 = vadd.f32 0.0, %v2663
        %2665 = vmatprep.mubr.bf16.mxu0 %v628
        %2666 = vmatmul.mubr.bf16.gmra.mrb[0].mxu0 %v627
        %v2667 = vpop.f32.mrb[0].mxu0
        %v2668 = vadd.f32 0.0, %v2667
        %v2669 = vpop.f32.mrb[0].mxu0
        %v2670 = vadd.f32 0.0, %v2669
        %v2671 = vpop.f32.mrb[0].mxu0
        %v2672 = vadd.f32 0.0, %v2671
        %v2673 = vpop.f32.mrb[0].mxu0
        %v2674 = vadd.f32 0.0, %v2673
        %2675 = vmatprep.mubr.bf16.mxu0 %v632
        %2676 = vmatmul.mubr.bf16.gmra.mrb[0].mxu0 %v631
        %v2677 = vpop.f32.mrb[0].mxu0
        %v2678 = vadd.f32 0.0, %v2677
        %v2679 = vpop.f32.mrb[0].mxu0
        %v2680 = vadd.f32 0.0, %v2679
        %v2681 = vpop.f32.mrb[0].mxu0
        %v2682 = vadd.f32 0.0, %v2681
        %v2683 = vpop.f32.mrb[0].mxu0
        %v2684 = vadd.f32 0.0, %v2683
        %2685 = vmatprep.mubr.bf16.mxu0 %v636
        %2686 = vmatmul.mubr.bf16.gmra.mrb[0].mxu0 %v635
        %v2687 = vpop.f32.mrb[0].mxu0
        %v2688 = vadd.f32 0.0, %v2687
        %v2689 = vpop.f32.mrb[0].mxu0
        %v2690 = vadd.f32 0.0, %v2689
        %v2691 = vpop.f32.mrb[0].mxu0
        %v2692 = vadd.f32 0.0, %v2691
        %v2693 = vpop.f32.mrb[0].mxu0
        %v2694 = vadd.f32 0.0, %v2693
        %2695 = vmatprep.mubr.bf16.mxu0 %v640
        %2696 = vmatmul.mubr.bf16.gmra.mrb[0].mxu0 %v639
        %v2697 = vpop.f32.mrb[0].mxu0
        %v2698 = vadd.f32 0.0, %v2697
        %v2699 = vpop.f32.mrb[0].mxu0
        %v2700 = vadd.f32 0.0, %v2699
        %v2701 = vpop.f32.mrb[0].mxu0
        %v2702 = vadd.f32 0.0, %v2701
        %v2703 = vpop.f32.mrb[0].mxu0
        %v2704 = vadd.f32 0.0, %v2703
        %2705 = vmatprep.mubr.bf16.mxu0 %v644
        %2706 = vmatmul.mubr.bf16.gmra.mrb[0].mxu0 %v643
        %v2707 = vpop.f32.mrb[0].mxu0
        %v2708 = vadd.f32 0.0, %v2707
        %v2709 = vpop.f32.mrb[0].mxu0
        %v2710 = vadd.f32 0.0, %v2709
        %v2711 = vpop.f32.mrb[0].mxu0
        %v2712 = vadd.f32 0.0, %v2711
        %v2713 = vpop.f32.mrb[0].mxu0
        %v2714 = vadd.f32 0.0, %v2713
        %2715 = vdwg.mxu0
        %2716 = vmatprep.subr.bf16.mxu0 %v1724
        %2717 = vmatpush1.bf16.msra.mxu0 %v1723
        %2718 = vmatprep.subr.bf16.mxu0 %v1733
        %2719 = vmatpush1.bf16.msra.mxu0 %v1732
        %2720 = vmatprep.subr.bf16.mxu0 %v1742
        %2721 = vmatpush1.bf16.msra.mxu0 %v1741
        %2722 = vmatprep.subr.bf16.mxu0 %v1751
        %2723 = vmatpush1.bf16.msra.mxu0 %v1750
        %2724 = vmatprep.subr.bf16.mxu0 %v1760
        %2725 = vmatpush1.bf16.msra.mxu0 %v1759
        %2726 = vmatprep.subr.bf16.mxu0 %v1769
        %2727 = vmatpush1.bf16.msra.mxu0 %v1768
        %2728 = vmatprep.subr.bf16.mxu0 %v1778
        %2729 = vmatpush1.bf16.msra.mxu0 %v1777
        %2730 = vmatprep.subr.bf16.mxu0 %v1787
        %2731 = vmatpush1.bf16.msra.mxu0 %v1786
        %2732 = vmatprep.subr.bf16.mxu0 %v1796
        %2733 = vmatpush1.bf16.msra.mxu0 %v1795
        %2734 = vmatprep.subr.bf16.mxu0 %v1805
        %2735 = vmatpush1.bf16.msra.mxu0 %v1804
        %2736 = vmatprep.subr.bf16.mxu0 %v1814
        %2737 = vmatpush1.bf16.msra.mxu0 %v1813
        %2738 = vmatprep.subr.bf16.mxu0 %v1823
        %2739 = vmatpush1.bf16.msra.mxu0 %v1822
        %2740 = vmatprep.subr.bf16.mxu0 %v1832
        %2741 = vmatpush1.bf16.msra.mxu0 %v1831
        %2742 = vmatprep.subr.bf16.mxu0 %v1841
        %2743 = vmatpush1.bf16.msra.mxu0 %v1840
        %2744 = vmatprep.subr.bf16.mxu0 %v1850
        %2745 = vmatpush1.bf16.msra.mxu0 %v1849
        %2746 = vmatprep.subr.bf16.mxu0 %v1859
        %2747 = vmatpush1.bf16.msra.mxu0 %v1858
        %2748 = vmatprep.mubr.bf16.mxu0 %v618
        %2749 = vmatmul.mubr.bf16.gmra.mrb[0].mxu0 %v617
        %v2750 = vpop.f32.mrb[0].mxu0
        %v2751 = vadd.f32 %v2638, %v2750
        %v2752 = vpop.f32.mrb[0].mxu0
        %v2753 = vadd.f32 %v2640, %v2752
        %v2754 = vpop.f32.mrb[0].mxu0
        %v2755 = vadd.f32 %v2642, %v2754
        %v2756 = vpop.f32.mrb[0].mxu0
        %v2757 = vadd.f32 %v2644, %v2756
        %2758 = vmatprep.mubr.bf16.mxu0 %v622
        %2759 = vmatmul.mubr.bf16.gmra.mrb[0].mxu0 %v621
        %v2760 = vpop.f32.mrb[0].mxu0
        %v2761 = vadd.f32 %v2648, %v2760
        %v2762 = vpop.f32.mrb[0].mxu0
        %v2763 = vadd.f32 %v2650, %v2762
        %v2764 = vpop.f32.mrb[0].mxu0
        %v2765 = vadd.f32 %v2652, %v2764
        %v2766 = vpop.f32.mrb[0].mxu0
        %v2767 = vadd.f32 %v2654, %v2766
        %2768 = vmatprep.mubr.bf16.mxu0 %v626
        %2769 = vmatmul.mubr.bf16.gmra.mrb[0].mxu0 %v625
        %v2770 = vpop.f32.mrb[0].mxu0
        %v2771 = vadd.f32 %v2658, %v2770
        %v2772 = vpop.f32.mrb[0].mxu0
        %v2773 = vadd.f32 %v2660, %v2772
        %v2774 = vpop.f32.mrb[0].mxu0
        %v2775 = vadd.f32 %v2662, %v2774
        %v2776 = vpop.f32.mrb[0].mxu0
        %v2777 = vadd.f32 %v2664, %v2776
        %2778 = vmatprep.mubr.bf16.mxu0 %v630
        %2779 = vmatmul.mubr.bf16.gmra.mrb[0].mxu0 %v629
        %v2780 = vpop.f32.mrb[0].mxu0
        %v2781 = vadd.f32 %v2668, %v2780
        %v2782 = vpop.f32.mrb[0].mxu0
        %v2783 = vadd.f32 %v2670, %v2782
        %v2784 = vpop.f32.mrb[0].mxu0
        %v2785 = vadd.f32 %v2672, %v2784
        %v2786 = vpop.f32.mrb[0].mxu0
        %v2787 = vadd.f32 %v2674, %v2786
        %2788 = vmatprep.mubr.bf16.mxu0 %v634
        %2789 = vmatmul.mubr.bf16.gmra.mrb[0].mxu0 %v633
        %v2790 = vpop.f32.mrb[0].mxu0
        %v2791 = vadd.f32 %v2678, %v2790
        %v2792 = vpop.f32.mrb[0].mxu0
        %v2793 = vadd.f32 %v2680, %v2792
        %v2794 = vpop.f32.mrb[0].mxu0
        %v2795 = vadd.f32 %v2682, %v2794
        %v2796 = vpop.f32.mrb[0].mxu0
        %v2797 = vadd.f32 %v2684, %v2796
        %2798 = vmatprep.mubr.bf16.mxu0 %v638
        %2799 = vmatmul.mubr.bf16.gmra.mrb[0].mxu0 %v637
        %v2800 = vpop.f32.mrb[0].mxu0
        %v2801 = vadd.f32 %v2688, %v2800
        %v2802 = vpop.f32.mrb[0].mxu0
        %v2803 = vadd.f32 %v2690, %v2802
        %v2804 = vpop.f32.mrb[0].mxu0
        %v2805 = vadd.f32 %v2692, %v2804
        %v2806 = vpop.f32.mrb[0].mxu0
        %v2807 = vadd.f32 %v2694, %v2806
        %2808 = vmatprep.mubr.bf16.mxu0 %v642
        %2809 = vmatmul.mubr.bf16.gmra.mrb[0].mxu0 %v641
        %v2810 = vpop.f32.mrb[0].mxu0
        %v2811 = vadd.f32 %v2698, %v2810
        %v2812 = vpop.f32.mrb[0].mxu0
        %v2813 = vadd.f32 %v2700, %v2812
        %v2814 = vpop.f32.mrb[0].mxu0
        %v2815 = vadd.f32 %v2702, %v2814
        %v2816 = vpop.f32.mrb[0].mxu0
        %v2817 = vadd.f32 %v2704, %v2816
        %2818 = vmatprep.mubr.bf16.mxu0 %v646
        %2819 = vmatmul.mubr.bf16.gmra.mrb[0].mxu0 %v645
        %v2820 = vpop.f32.mrb[0].mxu0
        %v2821 = vadd.f32 %v2708, %v2820
        %v2822 = vpop.f32.mrb[0].mxu0
        %v2823 = vadd.f32 %v2710, %v2822
        %v2824 = vpop.f32.mrb[0].mxu0
        %v2825 = vadd.f32 %v2712, %v2824
        %v2826 = vpop.f32.mrb[0].mxu0
        %v2827 = vadd.f32 %v2714, %v2826
        %2828 = vdwg.mxu0
        %2829 = vmatprep.subr.bf16.mxu0 %v1582
        %2830 = vmatpush1.bf16.msra.mxu0 %v1581
        %2831 = vmatprep.subr.bf16.mxu0 %v1591
        %2832 = vmatpush1.bf16.msra.mxu0 %v1590
        %2833 = vmatprep.subr.bf16.mxu0 %v1600
        %2834 = vmatpush1.bf16.msra.mxu0 %v1599
        %2835 = vmatprep.subr.bf16.mxu0 %v1609
        %2836 = vmatpush1.bf16.msra.mxu0 %v1608
        %2837 = vmatprep.subr.bf16.mxu0 %v1618
        %2838 = vmatpush1.bf16.msra.mxu0 %v1617
        %2839 = vmatprep.subr.bf16.mxu0 %v1627
        %2840 = vmatpush1.bf16.msra.mxu0 %v1626
        %2841 = vmatprep.subr.bf16.mxu0 %v1636
        %2842 = vmatpush1.bf16.msra.mxu0 %v1635
        %2843 = vmatprep.subr.bf16.mxu0 %v1645
        %2844 = vmatpush1.bf16.msra.mxu0 %v1644
        %2845 = vmatprep.subr.bf16.mxu0 %v1654
        %2846 = vmatpush1.bf16.msra.mxu0 %v1653
        %2847 = vmatprep.subr.bf16.mxu0 %v1663
        %2848 = vmatpush1.bf16.msra.mxu0 %v1662
        %2849 = vmatprep.subr.bf16.mxu0 %v1672
        %2850 = vmatpush1.bf16.msra.mxu0 %v1671
        %2851 = vmatprep.subr.bf16.mxu0 %v1681
        %2852 = vmatpush1.bf16.msra.mxu0 %v1680
        %2853 = vmatprep.subr.bf16.mxu0 %v1690
        %2854 = vmatpush1.bf16.msra.mxu0 %v1689
        %2855 = vmatprep.subr.bf16.mxu0 %v1699
        %2856 = vmatpush1.bf16.msra.mxu0 %v1698
        %2857 = vmatprep.subr.bf16.mxu0 %v1708
        %2858 = vmatpush1.bf16.msra.mxu0 %v1707
        %2859 = vmatprep.subr.bf16.mxu0 %v1717
        %2860 = vmatpush1.bf16.msra.mxu0 %v1716
        %2861 = vmatprep.mubr.bf16.mxu0 %v616
        %2862 = vmatmul.mubr.bf16.gmra.mrb[0].mxu0 %v615
        %v2863 = vpop.f32.mrb[0].mxu0
        %v2864 = vadd.f32 0.0, %v2863
        %v2865 = vpop.f32.mrb[0].mxu0
        %v2866 = vadd.f32 0.0, %v2865
        %v2867 = vpop.f32.mrb[0].mxu0
        %v2868 = vadd.f32 0.0, %v2867
        %v2869 = vpop.f32.mrb[0].mxu0
        %v2870 = vadd.f32 0.0, %v2869
        %2871 = vmatprep.mubr.bf16.mxu0 %v620
        %2872 = vmatmul.mubr.bf16.gmra.mrb[0].mxu0 %v619
        %v2873 = vpop.f32.mrb[0].mxu0
        %v2874 = vadd.f32 0.0, %v2873
        %v2875 = vpop.f32.mrb[0].mxu0
        %v2876 = vadd.f32 0.0, %v2875
        %v2877 = vpop.f32.mrb[0].mxu0
        %v2878 = vadd.f32 0.0, %v2877
        %v2879 = vpop.f32.mrb[0].mxu0
        %v2880 = vadd.f32 0.0, %v2879
        %2881 = vmatprep.mubr.bf16.mxu0 %v624
        %2882 = vmatmul.mubr.bf16.gmra.mrb[0].mxu0 %v623
        %v2883 = vpop.f32.mrb[0].mxu0
        %v2884 = vadd.f32 0.0, %v2883
        %v2885 = vpop.f32.mrb[0].mxu0
        %v2886 = vadd.f32 0.0, %v2885
        %v2887 = vpop.f32.mrb[0].mxu0
        %v2888 = vadd.f32 0.0, %v2887
        %v2889 = vpop.f32.mrb[0].mxu0
        %v2890 = vadd.f32 0.0, %v2889
        %2891 = vmatprep.mubr.bf16.mxu0 %v628
        %2892 = vmatmul.mubr.bf16.gmra.mrb[0].mxu0 %v627
        %v2893 = vpop.f32.mrb[0].mxu0
        %v2894 = vadd.f32 0.0, %v2893
        %v2895 = vpop.f32.mrb[0].mxu0
        %v2896 = vadd.f32 0.0, %v2895
        %v2897 = vpop.f32.mrb[0].mxu0
        %v2898 = vadd.f32 0.0, %v2897
        %v2899 = vpop.f32.mrb[0].mxu0
        %v2900 = vadd.f32 0.0, %v2899
        %2901 = vmatprep.mubr.bf16.mxu0 %v632
        %2902 = vmatmul.mubr.bf16.gmra.mrb[0].mxu0 %v631
        %v2903 = vpop.f32.mrb[0].mxu0
        %v2904 = vadd.f32 0.0, %v2903
        %v2905 = vpop.f32.mrb[0].mxu0
        %v2906 = vadd.f32 0.0, %v2905
        %v2907 = vpop.f32.mrb[0].mxu0
        %v2908 = vadd.f32 0.0, %v2907
        %v2909 = vpop.f32.mrb[0].mxu0
        %v2910 = vadd.f32 0.0, %v2909
        %2911 = vmatprep.mubr.bf16.mxu0 %v636
        %2912 = vmatmul.mubr.bf16.gmra.mrb[0].mxu0 %v635
        %v2913 = vpop.f32.mrb[0].mxu0
        %v2914 = vadd.f32 0.0, %v2913
        %v2915 = vpop.f32.mrb[0].mxu0
        %v2916 = vadd.f32 0.0, %v2915
        %v2917 = vpop.f32.mrb[0].mxu0
        %v2918 = vadd.f32 0.0, %v2917
        %v2919 = vpop.f32.mrb[0].mxu0
        %v2920 = vadd.f32 0.0, %v2919
        %2921 = vmatprep.mubr.bf16.mxu0 %v640
        %2922 = vmatmul.mubr.bf16.gmra.mrb[0].mxu0 %v639
        %v2923 = vpop.f32.mrb[0].mxu0
        %v2924 = vadd.f32 0.0, %v2923
        %v2925 = vpop.f32.mrb[0].mxu0
        %v2926 = vadd.f32 0.0, %v2925
        %v2927 = vpop.f32.mrb[0].mxu0
        %v2928 = vadd.f32 0.0, %v2927
        %v2929 = vpop.f32.mrb[0].mxu0
        %v2930 = vadd.f32 0.0, %v2929
        %2931 = vmatprep.mubr.bf16.mxu0 %v644
        %2932 = vmatmul.mubr.bf16.gmra.mrb[0].mxu0 %v643
        %v2933 = vpop.f32.mrb[0].mxu0
        %v2934 = vadd.f32 0.0, %v2933
        %v2935 = vpop.f32.mrb[0].mxu0
        %v2936 = vadd.f32 0.0, %v2935
        %v2937 = vpop.f32.mrb[0].mxu0
        %v2938 = vadd.f32 0.0, %v2937
        %v2939 = vpop.f32.mrb[0].mxu0
        %v2940 = vadd.f32 0.0, %v2939
        %2941 = vdwg.mxu0
        %2942 = vmatprep.subr.bf16.mxu0 %v1726
        %2943 = vmatpush1.bf16.msra.mxu0 %v1725
        %2944 = vmatprep.subr.bf16.mxu0 %v1735
        %2945 = vmatpush1.bf16.msra.mxu0 %v1734
        %2946 = vmatprep.subr.bf16.mxu0 %v1744
        %2947 = vmatpush1.bf16.msra.mxu0 %v1743
        %2948 = vmatprep.subr.bf16.mxu0 %v1753
        %2949 = vmatpush1.bf16.msra.mxu0 %v1752
        %2950 = vmatprep.subr.bf16.mxu0 %v1762
        %2951 = vmatpush1.bf16.msra.mxu0 %v1761
        %2952 = vmatprep.subr.bf16.mxu0 %v1771
        %2953 = vmatpush1.bf16.msra.mxu0 %v1770
        %2954 = vmatprep.subr.bf16.mxu0 %v1780
        %2955 = vmatpush1.bf16.msra.mxu0 %v1779
        %2956 = vmatprep.subr.bf16.mxu0 %v1789
        %2957 = vmatpush1.bf16.msra.mxu0 %v1788
        %2958 = vmatprep.subr.bf16.mxu0 %v1798
        %2959 = vmatpush1.bf16.msra.mxu0 %v1797
        %2960 = vmatprep.subr.bf16.mxu0 %v1807
        %2961 = vmatpush1.bf16.msra.mxu0 %v1806
        %2962 = vmatprep.subr.bf16.mxu0 %v1816
        %2963 = vmatpush1.bf16.msra.mxu0 %v1815
        %2964 = vmatprep.subr.bf16.mxu0 %v1825
        %2965 = vmatpush1.bf16.msra.mxu0 %v1824
        %2966 = vmatprep.subr.bf16.mxu0 %v1834
        %2967 = vmatpush1.bf16.msra.mxu0 %v1833
        %2968 = vmatprep.subr.bf16.mxu0 %v1843
        %2969 = vmatpush1.bf16.msra.mxu0 %v1842
        %2970 = vmatprep.subr.bf16.mxu0 %v1852
        %2971 = vmatpush1.bf16.msra.mxu0 %v1851
        %2972 = vmatprep.subr.bf16.mxu0 %v1861
        %2973 = vmatpush1.bf16.msra.mxu0 %v1860
        %2974 = vmatprep.mubr.bf16.mxu0 %v618
        %2975 = vmatmul.mubr.bf16.gmra.mrb[0].mxu0 %v617
        %v2976 = vpop.f32.mrb[0].mxu0
        %v2977 = vadd.f32 %v2864, %v2976
        %v2978 = vpop.f32.mrb[0].mxu0
        %v2979 = vadd.f32 %v2866, %v2978
        %v2980 = vpop.f32.mrb[0].mxu0
        %v2981 = vadd.f32 %v2868, %v2980
        %v2982 = vpop.f32.mrb[0].mxu0
        %v2983 = vadd.f32 %v2870, %v2982
        %2984 = vmatprep.mubr.bf16.mxu0 %v622
        %2985 = vmatmul.mubr.bf16.gmra.mrb[0].mxu0 %v621
        %v2986 = vpop.f32.mrb[0].mxu0
        %v2987 = vadd.f32 %v2874, %v2986
        %v2988 = vpop.f32.mrb[0].mxu0
        %v2989 = vadd.f32 %v2876, %v2988
        %v2990 = vpop.f32.mrb[0].mxu0
        %v2991 = vadd.f32 %v2878, %v2990
        %v2992 = vpop.f32.mrb[0].mxu0
        %v2993 = vadd.f32 %v2880, %v2992
        %2994 = vmatprep.mubr.bf16.mxu0 %v626
        %2995 = vmatmul.mubr.bf16.gmra.mrb[0].mxu0 %v625
        %v2996 = vpop.f32.mrb[0].mxu0
        %v2997 = vadd.f32 %v2884, %v2996
        %v2998 = vpop.f32.mrb[0].mxu0
        %v2999 = vadd.f32 %v2886, %v2998
        %v3000 = vpop.f32.mrb[0].mxu0
        %v3001 = vadd.f32 %v2888, %v3000
        %v3002 = vpop.f32.mrb[0].mxu0
        %v3003 = vadd.f32 %v2890, %v3002
        %3004 = vmatprep.mubr.bf16.mxu0 %v630
        %3005 = vmatmul.mubr.bf16.gmra.mrb[0].mxu0 %v629
        %v3006 = vpop.f32.mrb[0].mxu0
        %v3007 = vadd.f32 %v2894, %v3006
        %v3008 = vpop.f32.mrb[0].mxu0
        %v3009 = vadd.f32 %v2896, %v3008
        %v3010 = vpop.f32.mrb[0].mxu0
        %v3011 = vadd.f32 %v2898, %v3010
        %v3012 = vpop.f32.mrb[0].mxu0
        %v3013 = vadd.f32 %v2900, %v3012
        %3014 = vmatprep.mubr.bf16.mxu0 %v634
        %3015 = vmatmul.mubr.bf16.gmra.mrb[0].mxu0 %v633
        %v3016 = vpop.f32.mrb[0].mxu0
        %v3017 = vadd.f32 %v2904, %v3016
        %v3018 = vpop.f32.mrb[0].mxu0
        %v3019 = vadd.f32 %v2906, %v3018
        %v3020 = vpop.f32.mrb[0].mxu0
        %v3021 = vadd.f32 %v2908, %v3020
        %v3022 = vpop.f32.mrb[0].mxu0
        %v3023 = vadd.f32 %v2910, %v3022
        %3024 = vmatprep.mubr.bf16.mxu0 %v638
        %3025 = vmatmul.mubr.bf16.gmra.mrb[0].mxu0 %v637
        %v3026 = vpop.f32.mrb[0].mxu0
        %v3027 = vadd.f32 %v2914, %v3026
        %v3028 = vpop.f32.mrb[0].mxu0
        %v3029 = vadd.f32 %v2916, %v3028
        %v3030 = vpop.f32.mrb[0].mxu0
        %v3031 = vadd.f32 %v2918, %v3030
        %v3032 = vpop.f32.mrb[0].mxu0
        %v3033 = vadd.f32 %v2920, %v3032
        %3034 = vmatprep.mubr.bf16.mxu0 %v642
        %3035 = vmatmul.mubr.bf16.gmra.mrb[0].mxu0 %v641
        %v3036 = vpop.f32.mrb[0].mxu0
        %v3037 = vadd.f32 %v2924, %v3036
        %v3038 = vpop.f32.mrb[0].mxu0
        %v3039 = vadd.f32 %v2926, %v3038
        %v3040 = vpop.f32.mrb[0].mxu0
        %v3041 = vadd.f32 %v2928, %v3040
        %v3042 = vpop.f32.mrb[0].mxu0
        %v3043 = vadd.f32 %v2930, %v3042
        %3044 = vmatprep.mubr.bf16.mxu0 %v646
        %3045 = vmatmul.mubr.bf16.gmra.mrb[0].mxu0 %v645
        %v3046 = vpop.f32.mrb[0].mxu0
        %v3047 = vadd.f32 %v2934, %v3046
        %v3048 = vpop.f32.mrb[0].mxu0
        %v3049 = vadd.f32 %v2936, %v3048
        %v3050 = vpop.f32.mrb[0].mxu0
        %v3051 = vadd.f32 %v2938, %v3050
        %v3052 = vpop.f32.mrb[0].mxu0
        %v3053 = vadd.f32 %v2940, %v3052
        %3054 = vdwg.mxu0
        %3055 = vmatprep.subr.bf16.mxu0 0
        %3056 = vmatpush1.bf16.msra.mxu0 %v1583
        %3057 = vmatprep.subr.bf16.mxu0 0
        %3058 = vmatpush1.bf16.msra.mxu0 %v1592
        %3059 = vmatprep.subr.bf16.mxu0 0
        %3060 = vmatpush1.bf16.msra.mxu0 %v1601
        %3061 = vmatprep.subr.bf16.mxu0 0
        %3062 = vmatpush1.bf16.msra.mxu0 %v1610
        %3063 = vmatprep.subr.bf16.mxu0 0
        %3064 = vmatpush1.bf16.msra.mxu0 %v1619
        %3065 = vmatprep.subr.bf16.mxu0 0
        %3066 = vmatpush1.bf16.msra.mxu0 %v1628
        %3067 = vmatprep.subr.bf16.mxu0 0
        %3068 = vmatpush1.bf16.msra.mxu0 %v1637
        %3069 = vmatprep.subr.bf16.mxu0 0
        %3070 = vmatpush1.bf16.msra.mxu0 %v1646
        %3071 = vmatprep.subr.bf16.mxu0 0
        %3072 = vmatpush1.bf16.msra.mxu0 %v1655
        %3073 = vmatprep.subr.bf16.mxu0 0
        %3074 = vmatpush1.bf16.msra.mxu0 %v1664
        %3075 = vmatprep.subr.bf16.mxu0 0
        %3076 = vmatpush1.bf16.msra.mxu0 %v1673
        %3077 = vmatprep.subr.bf16.mxu0 0
        %3078 = vmatpush1.bf16.msra.mxu0 %v1682
        %3079 = vmatprep.subr.bf16.mxu0 0
        %3080 = vmatpush1.bf16.msra.mxu0 %v1691
        %3081 = vmatprep.subr.bf16.mxu0 0
        %3082 = vmatpush1.bf16.msra.mxu0 %v1700
        %3083 = vmatprep.subr.bf16.mxu0 0
        %3084 = vmatpush1.bf16.msra.mxu0 %v1709
        %3085 = vmatprep.subr.bf16.mxu0 0
        %3086 = vmatpush1.bf16.msra.mxu0 %v1718
        %3087 = vmatprep.mubr.bf16.mxu0 %v616
        %3088 = vmatmul.mubr.bf16.gmra.mrb[0].mxu0 %v615
        %v3089 = vpop.f32.mrb[0].mxu0
        %v3090 = vadd.f32 0.0, %v3089
        %v3091 = vpop.f32.mrb[0].mxu0
        %v3092 = vpop.f32.mrb[0].mxu0
        %v3093 = vadd.f32 0.0, %v3092
        %v3094 = vpop.f32.mrb[0].mxu0
        %3095 = vmatprep.mubr.bf16.mxu0 %v620
        %3096 = vmatmul.mubr.bf16.gmra.mrb[0].mxu0 %v619
        %v3097 = vpop.f32.mrb[0].mxu0
        %v3098 = vadd.f32 0.0, %v3097
        %v3099 = vpop.f32.mrb[0].mxu0
        %v3100 = vpop.f32.mrb[0].mxu0
        %v3101 = vadd.f32 0.0, %v3100
        %v3102 = vpop.f32.mrb[0].mxu0
        %3103 = vmatprep.mubr.bf16.mxu0 %v624
        %3104 = vmatmul.mubr.bf16.gmra.mrb[0].mxu0 %v623
        %v3105 = vpop.f32.mrb[0].mxu0
        %v3106 = vadd.f32 0.0, %v3105
        %v3107 = vpop.f32.mrb[0].mxu0
        %v3108 = vpop.f32.mrb[0].mxu0
        %v3109 = vadd.f32 0.0, %v3108
        %v3110 = vpop.f32.mrb[0].mxu0
        %3111 = vmatprep.mubr.bf16.mxu0 %v628
        %3112 = vmatmul.mubr.bf16.gmra.mrb[0].mxu0 %v627
        %v3113 = vpop.f32.mrb[0].mxu0
        %v3114 = vadd.f32 0.0, %v3113
        %v3115 = vpop.f32.mrb[0].mxu0
        %v3116 = vpop.f32.mrb[0].mxu0
        %v3117 = vadd.f32 0.0, %v3116
        %v3118 = vpop.f32.mrb[0].mxu0
        %3119 = vmatprep.mubr.bf16.mxu0 %v632
        %3120 = vmatmul.mubr.bf16.gmra.mrb[0].mxu0 %v631
        %v3121 = vpop.f32.mrb[0].mxu0
        %v3122 = vadd.f32 0.0, %v3121
        %v3123 = vpop.f32.mrb[0].mxu0
        %v3124 = vpop.f32.mrb[0].mxu0
        %v3125 = vadd.f32 0.0, %v3124
        %v3126 = vpop.f32.mrb[0].mxu0
        %3127 = vmatprep.mubr.bf16.mxu0 %v636
        %3128 = vmatmul.mubr.bf16.gmra.mrb[0].mxu0 %v635
        %v3129 = vpop.f32.mrb[0].mxu0
        %v3130 = vadd.f32 0.0, %v3129
        %v3131 = vpop.f32.mrb[0].mxu0
        %v3132 = vpop.f32.mrb[0].mxu0
        %v3133 = vadd.f32 0.0, %v3132
        %v3134 = vpop.f32.mrb[0].mxu0
        %3135 = vmatprep.mubr.bf16.mxu0 %v640
        %3136 = vmatmul.mubr.bf16.gmra.mrb[0].mxu0 %v639
        %v3137 = vpop.f32.mrb[0].mxu0
        %v3138 = vadd.f32 0.0, %v3137
        %v3139 = vpop.f32.mrb[0].mxu0
        %v3140 = vpop.f32.mrb[0].mxu0
        %v3141 = vadd.f32 0.0, %v3140
        %v3142 = vpop.f32.mrb[0].mxu0
        %3143 = vmatprep.mubr.bf16.mxu0 %v644
        %3144 = vmatmul.mubr.bf16.gmra.mrb[0].mxu0 %v643
        %v3145 = vpop.f32.mrb[0].mxu0
        %v3146 = vadd.f32 0.0, %v3145
        %v3147 = vpop.f32.mrb[0].mxu0
        %v3148 = vpop.f32.mrb[0].mxu0
        %v3149 = vadd.f32 0.0, %v3148
        %v3150 = vpop.f32.mrb[0].mxu0
        %3151 = vdwg.mxu0
        %3152 = vmatprep.subr.bf16.mxu0 0
        %3153 = vmatpush1.bf16.msra.mxu0 %v1727
        %3154 = vmatprep.subr.bf16.mxu0 0
        %3155 = vmatpush1.bf16.msra.mxu0 %v1736
        %3156 = vmatprep.subr.bf16.mxu0 0
        %3157 = vmatpush1.bf16.msra.mxu0 %v1745
        %3158 = vmatprep.subr.bf16.mxu0 0
        %3159 = vmatpush1.bf16.msra.mxu0 %v1754
        %3160 = vmatprep.subr.bf16.mxu0 0
        %3161 = vmatpush1.bf16.msra.mxu0 %v1763
        %3162 = vmatprep.subr.bf16.mxu0 0
        %3163 = vmatpush1.bf16.msra.mxu0 %v1772
        %3164 = vmatprep.subr.bf16.mxu0 0
        %3165 = vmatpush1.bf16.msra.mxu0 %v1781
        %3166 = vmatprep.subr.bf16.mxu0 0
        %3167 = vmatpush1.bf16.msra.mxu0 %v1790
        %3168 = vmatprep.subr.bf16.mxu0 0
        %3169 = vmatpush1.bf16.msra.mxu0 %v1799
        %3170 = vmatprep.subr.bf16.mxu0 0
        %3171 = vmatpush1.bf16.msra.mxu0 %v1808
        %3172 = vmatprep.subr.bf16.mxu0 0
        %3173 = vmatpush1.bf16.msra.mxu0 %v1817
        %3174 = vmatprep.subr.bf16.mxu0 0
        %3175 = vmatpush1.bf16.msra.mxu0 %v1826
        %3176 = vmatprep.subr.bf16.mxu0 0
        %3177 = vmatpush1.bf16.msra.mxu0 %v1835
        %3178 = vmatprep.subr.bf16.mxu0 0
        %3179 = vmatpush1.bf16.msra.mxu0 %v1844
        %3180 = vmatprep.subr.bf16.mxu0 0
        %3181 = vmatpush1.bf16.msra.mxu0 %v1853
        %3182 = vmatprep.subr.bf16.mxu0 0
        %3183 = vmatpush1.bf16.msra.mxu0 %v1862
        %3184 = vmatprep.mubr.bf16.mxu0 %v618
        %3185 = vmatmul.mubr.bf16.gmra.mrb[0].mxu0 %v617
        %v3186 = vpop.f32.mrb[0].mxu0
        %v3187 = vadd.f32 %v3090, %v3186
        %v3188 = vpop.f32.mrb[0].mxu0
        %v3189 = vpop.f32.mrb[0].mxu0
        %v3190 = vadd.f32 %v3093, %v3189
        %v3191 = vpop.f32.mrb[0].mxu0
        %3192 = vmatprep.mubr.bf16.mxu0 %v622
        %3193 = vmatmul.mubr.bf16.gmra.mrb[0].mxu0 %v621
        %v3194 = vpop.f32.mrb[0].mxu0
        %v3195 = vadd.f32 %v3098, %v3194
        %v3196 = vpop.f32.mrb[0].mxu0
        %v3197 = vpop.f32.mrb[0].mxu0
        %v3198 = vadd.f32 %v3101, %v3197
        %v3199 = vpop.f32.mrb[0].mxu0
        %3200 = vmatprep.mubr.bf16.mxu0 %v626
        %3201 = vmatmul.mubr.bf16.gmra.mrb[0].mxu0 %v625
        %v3202 = vpop.f32.mrb[0].mxu0
        %v3203 = vadd.f32 %v3106, %v3202
        %v3204 = vpop.f32.mrb[0].mxu0
        %v3205 = vpop.f32.mrb[0].mxu0
        %v3206 = vadd.f32 %v3109, %v3205
        %v3207 = vpop.f32.mrb[0].mxu0
        %3208 = vmatprep.mubr.bf16.mxu0 %v630
        %3209 = vmatmul.mubr.bf16.gmra.mrb[0].mxu0 %v629
        %v3210 = vpop.f32.mrb[0].mxu0
        %v3211 = vadd.f32 %v3114, %v3210
        %v3212 = vpop.f32.mrb[0].mxu0
        %v3213 = vpop.f32.mrb[0].mxu0
        %v3214 = vadd.f32 %v3117, %v3213
        %v3215 = vpop.f32.mrb[0].mxu0
        %3216 = vmatprep.mubr.bf16.mxu0 %v634
        %3217 = vmatmul.mubr.bf16.gmra.mrb[0].mxu0 %v633
        %v3218 = vpop.f32.mrb[0].mxu0
        %v3219 = vadd.f32 %v3122, %v3218
        %v3220 = vpop.f32.mrb[0].mxu0
        %v3221 = vpop.f32.mrb[0].mxu0
        %v3222 = vadd.f32 %v3125, %v3221
        %v3223 = vpop.f32.mrb[0].mxu0
        %3224 = vmatprep.mubr.bf16.mxu0 %v638
        %3225 = vmatmul.mubr.bf16.gmra.mrb[0].mxu0 %v637
        %v3226 = vpop.f32.mrb[0].mxu0
        %v3227 = vadd.f32 %v3130, %v3226
        %v3228 = vpop.f32.mrb[0].mxu0
        %v3229 = vpop.f32.mrb[0].mxu0
        %v3230 = vadd.f32 %v3133, %v3229
        %v3231 = vpop.f32.mrb[0].mxu0
        %3232 = vmatprep.mubr.bf16.mxu0 %v642
        %3233 = vmatmul.mubr.bf16.gmra.mrb[0].mxu0 %v641
        %v3234 = vpop.f32.mrb[0].mxu0
        %v3235 = vadd.f32 %v3138, %v3234
        %v3236 = vpop.f32.mrb[0].mxu0
        %v3237 = vpop.f32.mrb[0].mxu0
        %v3238 = vadd.f32 %v3141, %v3237
        %v3239 = vpop.f32.mrb[0].mxu0
        %3240 = vmatprep.mubr.bf16.mxu0 %v646
        %3241 = vmatmul.mubr.bf16.gmra.mrb[0].mxu0 %v645
        %v3242 = vpop.f32.mrb[0].mxu0
        %v3243 = vadd.f32 %v3146, %v3242
        %v3244 = vpop.f32.mrb[0].mxu0
        %v3245 = vpop.f32.mrb[0].mxu0
        %v3246 = vadd.f32 %v3149, %v3245
        %v3247 = vpop.f32.mrb[0].mxu0
        %3248 = vdwg.mxu0
        %3249 = vrot.lane.b32.xlu0 %v2309, 127
        %v3250 = vpop.permute.xlu0 %3249
        %3251 = vrot.lane.b32.xlu0 %v2313, 127
        %v3252 = vpop.permute.xlu0 %3251
        %3253 = vrot.lane.b32.xlu0 %v2311, 127
        %v3254 = vpop.permute.xlu0 %3253
        %3255 = vrot.lane.b32.xlu0 %v2315, 127
        %v3256 = vpop.permute.xlu0 %3255
        %3257 = vrot.lane.b32.xlu0 %v2535, 127
        %v3258 = vpop.permute.xlu0 %3257
        %3259 = vrot.lane.b32.xlu0 %v2539, 127
        %v3260 = vpop.permute.xlu0 %3259
        %3261 = vrot.lane.b32.xlu0 %v2537, 127
        %v3262 = vpop.permute.xlu0 %3261
        %3263 = vrot.lane.b32.xlu0 %v2541, 127
        %v3264 = vpop.permute.xlu0 %3263
        %3265 = vrot.lane.b32.xlu0 %v2761, 127
        %v3266 = vpop.permute.xlu0 %3265
        %3267 = vrot.lane.b32.xlu0 %v2765, 127
        %v3268 = vpop.permute.xlu0 %3267
        %3269 = vrot.lane.b32.xlu0 %v2763, 127
        %v3270 = vpop.permute.xlu0 %3269
        %3271 = vrot.lane.b32.xlu0 %v2767, 127
        %v3272 = vpop.permute.xlu0 %3271
        %3273 = vrot.lane.b32.xlu0 %v2987, 127
        %v3274 = vpop.permute.xlu0 %3273
        %3275 = vrot.lane.b32.xlu0 %v2991, 127
        %v3276 = vpop.permute.xlu0 %3275
        %3277 = vrot.lane.b32.xlu0 %v2989, 127
        %v3278 = vpop.permute.xlu0 %3277
        %3279 = vrot.lane.b32.xlu0 %v2993, 127
        %v3280 = vpop.permute.xlu0 %3279
        %3281 = vrot.lane.b32.xlu0 %v3195, 127
        %v3282 = vpop.permute.xlu0 %3281
        %3283 = vrot.lane.b32.xlu0 %v3198, 127
        %v3284 = vpop.permute.xlu0 %3283
        %v3285 = vlaneseq
        %v3286 = vand.u32 %v3285, 127
        %vm3287 = vcmp.lt.s32.totalorder %v3286, 127
        %v3288 = vsel %vm3287, %v3278, %v3282
        %v3289 = vsel %vm3287, %v3280, %v3284
        %v3290 = vsel %vm3287, %v3274, %v3278
        %v3291 = vsel %vm3287, %v3276, %v3280
        %v3292 = vsel %vm3287, %v3270, %v3274
        %v3293 = vsel %vm3287, %v3272, %v3276
        %v3294 = vsel %vm3287, %v3266, %v3270
        %v3295 = vsel %vm3287, %v3268, %v3272
        %v3296 = vsel %vm3287, %v3262, %v3266
        %v3297 = vsel %vm3287, %v3264, %v3268
        %v3298 = vsel %vm3287, %v3258, %v3262
        %v3299 = vsel %vm3287, %v3260, %v3264
        %v3300 = vsel %vm3287, %v3254, %v3258
        %v3301 = vsel %vm3287, %v3256, %v3260
        %v3302 = vsel %vm3287, %v3250, %v3254
        %v3303 = vsel %vm3287, %v3252, %v3256
        %v3304 = vsel %vm3287, %v3282, %v3250
        %v3305 = vsel %vm3287, %v3284, %v3252
        %v3306 = vadd.f32 %v2299, %v3302
        %v3307 = vadd.f32 %v2301, %v3300
        %v3308 = vadd.f32 %v2525, %v3298
        %v3309 = vadd.f32 %v2527, %v3296
        %v3310 = vadd.f32 %v2751, %v3294
        %v3311 = vadd.f32 %v2753, %v3292
        %v3312 = vadd.f32 %v2977, %v3290
        %v3313 = vadd.f32 %v2979, %v3288
        %v3314 = vadd.f32 %v3187, %v3304
        %v3315 = vadd.f32 %v2303, %v3303
        %v3316 = vadd.f32 %v2305, %v3301
        %v3317 = vadd.f32 %v2529, %v3299
        %v3318 = vadd.f32 %v2531, %v3297
        %v3319 = vadd.f32 %v2755, %v3295
        %v3320 = vadd.f32 %v2757, %v3293
        %v3321 = vadd.f32 %v2981, %v3291
        %v3322 = vadd.f32 %v2983, %v3289
        %v3323 = vadd.f32 %v3190, %v3305
        %3324 = vrot.lane.b32.xlu0 %v2319, 126
        %v3325 = vpop.permute.xlu0 %3324
        %3326 = vrot.lane.b32.xlu0 %v2323, 126
        %v3327 = vpop.permute.xlu0 %3326
        %3328 = vrot.lane.b32.xlu0 %v2321, 126
        %v3329 = vpop.permute.xlu0 %3328
        %3330 = vrot.lane.b32.xlu0 %v2325, 126
        %v3331 = vpop.permute.xlu0 %3330
        %3332 = vrot.lane.b32.xlu0 %v2545, 126
        %v3333 = vpop.permute.xlu0 %3332
        %3334 = vrot.lane.b32.xlu0 %v2549, 126
        %v3335 = vpop.permute.xlu0 %3334
        %3336 = vrot.lane.b32.xlu0 %v2547, 126
        %v3337 = vpop.permute.xlu0 %3336
        %3338 = vrot.lane.b32.xlu0 %v2551, 126
        %v3339 = vpop.permute.xlu0 %3338
        %3340 = vrot.lane.b32.xlu0 %v2771, 126
        %v3341 = vpop.permute.xlu0 %3340
        %3342 = vrot.lane.b32.xlu0 %v2775, 126
        %v3343 = vpop.permute.xlu0 %3342
        %3344 = vrot.lane.b32.xlu0 %v2773, 126
        %v3345 = vpop.permute.xlu0 %3344
        %3346 = vrot.lane.b32.xlu0 %v2777, 126
        %v3347 = vpop.permute.xlu0 %3346
        %3348 = vrot.lane.b32.xlu0 %v2997, 126
        %v3349 = vpop.permute.xlu0 %3348
        %3350 = vrot.lane.b32.xlu0 %v3001, 126
        %v3351 = vpop.permute.xlu0 %3350
        %3352 = vrot.lane.b32.xlu0 %v2999, 126
        %v3353 = vpop.permute.xlu0 %3352
        %3354 = vrot.lane.b32.xlu0 %v3003, 126
        %v3355 = vpop.permute.xlu0 %3354
        %3356 = vrot.lane.b32.xlu0 %v3203, 126
        %v3357 = vpop.permute.xlu0 %3356
        %3358 = vrot.lane.b32.xlu0 %v3206, 126
        %v3359 = vpop.permute.xlu0 %3358
        %vm3360 = vcmp.lt.s32.totalorder %v3286, 126
        %v3361 = vsel %vm3360, %v3353, %v3357
        %v3362 = vsel %vm3360, %v3355, %v3359
        %v3363 = vsel %vm3360, %v3349, %v3353
        %v3364 = vsel %vm3360, %v3351, %v3355
        %v3365 = vsel %vm3360, %v3345, %v3349
        %v3366 = vsel %vm3360, %v3347, %v3351
        %v3367 = vsel %vm3360, %v3341, %v3345
        %v3368 = vsel %vm3360, %v3343, %v3347
        %v3369 = vsel %vm3360, %v3337, %v3341
        %v3370 = vsel %vm3360, %v3339, %v3343
        %v3371 = vsel %vm3360, %v3333, %v3337
        %v3372 = vsel %vm3360, %v3335, %v3339
        %v3373 = vsel %vm3360, %v3329, %v3333
        %v3374 = vsel %vm3360, %v3331, %v3335
        %v3375 = vsel %vm3360, %v3325, %v3329
        %v3376 = vsel %vm3360, %v3327, %v3331
        %v3377 = vsel %vm3360, %v3357, %v3325
        %v3378 = vsel %vm3360, %v3359, %v3327
        %v3379 = vadd.f32 %v3306, %v3375
        %v3380 = vadd.f32 %v3307, %v3373
        %v3381 = vadd.f32 %v3308, %v3371
        %v3382 = vadd.f32 %v3309, %v3369
        %v3383 = vadd.f32 %v3310, %v3367
        %v3384 = vadd.f32 %v3311, %v3365
        %v3385 = vadd.f32 %v3312, %v3363
        %v3386 = vadd.f32 %v3313, %v3361
        %v3387 = vadd.f32 %v3314, %v3377
        %v3388 = vadd.f32 %v3315, %v3376
        %v3389 = vadd.f32 %v3316, %v3374
        %v3390 = vadd.f32 %v3317, %v3372
        %v3391 = vadd.f32 %v3318, %v3370
        %v3392 = vadd.f32 %v3319, %v3368
        %v3393 = vadd.f32 %v3320, %v3366
        %v3394 = vadd.f32 %v3321, %v3364
        %v3395 = vadd.f32 %v3322, %v3362
        %v3396 = vadd.f32 %v3323, %v3378
        %3397 = vrot.lane.b32.xlu0 %v2329, 125
        %v3398 = vpop.permute.xlu0 %3397
        %3399 = vrot.lane.b32.xlu0 %v2333, 125
        %v3400 = vpop.permute.xlu0 %3399
        %3401 = vrot.lane.b32.xlu0 %v2331, 125
        %v3402 = vpop.permute.xlu0 %3401
        %3403 = vrot.lane.b32.xlu0 %v2335, 125
        %v3404 = vpop.permute.xlu0 %3403
        %3405 = vrot.lane.b32.xlu0 %v2555, 125
        %v3406 = vpop.permute.xlu0 %3405
        %3407 = vrot.lane.b32.xlu0 %v2559, 125
        %v3408 = vpop.permute.xlu0 %3407
        %3409 = vrot.lane.b32.xlu0 %v2557, 125
        %v3410 = vpop.permute.xlu0 %3409
        %3411 = vrot.lane.b32.xlu0 %v2561, 125
        %v3412 = vpop.permute.xlu0 %3411
        %3413 = vrot.lane.b32.xlu0 %v2781, 125
        %v3414 = vpop.permute.xlu0 %3413
        %3415 = vrot.lane.b32.xlu0 %v2785, 125
        %v3416 = vpop.permute.xlu0 %3415
        %3417 = vrot.lane.b32.xlu0 %v2783, 125
        %v3418 = vpop.permute.xlu0 %3417
        %3419 = vrot.lane.b32.xlu0 %v2787, 125
        %v3420 = vpop.permute.xlu0 %3419
        %3421 = vrot.lane.b32.xlu0 %v3007, 125
        %v3422 = vpop.permute.xlu0 %3421
        %3423 = vrot.lane.b32.xlu0 %v3011, 125
        %v3424 = vpop.permute.xlu0 %3423
        %3425 = vrot.lane.b32.xlu0 %v3009, 125
        %v3426 = vpop.permute.xlu0 %3425
        %3427 = vrot.lane.b32.xlu0 %v3013, 125
        %v3428 = vpop.permute.xlu0 %3427
        %3429 = vrot.lane.b32.xlu0 %v3211, 125
        %v3430 = vpop.permute.xlu0 %3429
        %3431 = vrot.lane.b32.xlu0 %v3214, 125
        %v3432 = vpop.permute.xlu0 %3431
        %vm3433 = vcmp.lt.s32.totalorder %v3286, 125
        %v3434 = vsel %vm3433, %v3426, %v3430
        %v3435 = vsel %vm3433, %v3428, %v3432
        %v3436 = vsel %vm3433, %v3422, %v3426
        %v3437 = vsel %vm3433, %v3424, %v3428
        %v3438 = vsel %vm3433, %v3418, %v3422
        %v3439 = vsel %vm3433, %v3420, %v3424
        %v3440 = vsel %vm3433, %v3414, %v3418
        %v3441 = vsel %vm3433, %v3416, %v3420
        %v3442 = vsel %vm3433, %v3410, %v3414
        %v3443 = vsel %vm3433, %v3412, %v3416
        %v3444 = vsel %vm3433, %v3406, %v3410
        %v3445 = vsel %vm3433, %v3408, %v3412
        %v3446 = vsel %vm3433, %v3402, %v3406
        %v3447 = vsel %vm3433, %v3404, %v3408
        %v3448 = vsel %vm3433, %v3398, %v3402
        %v3449 = vsel %vm3433, %v3400, %v3404
        %v3450 = vsel %vm3433, %v3430, %v3398
        %v3451 = vsel %vm3433, %v3432, %v3400
        %v3452 = vadd.f32 %v3379, %v3448
        %v3453 = vadd.f32 %v3380, %v3446
        %v3454 = vadd.f32 %v3381, %v3444
        %v3455 = vadd.f32 %v3382, %v3442
        %v3456 = vadd.f32 %v3383, %v3440
        %v3457 = vadd.f32 %v3384, %v3438
        %v3458 = vadd.f32 %v3385, %v3436
        %v3459 = vadd.f32 %v3386, %v3434
        %v3460 = vadd.f32 %v3387, %v3450
        %v3461 = vadd.f32 %v3388, %v3449
        %v3462 = vadd.f32 %v3389, %v3447
        %v3463 = vadd.f32 %v3390, %v3445
        %v3464 = vadd.f32 %v3391, %v3443
        %v3465 = vadd.f32 %v3392, %v3441
        %v3466 = vadd.f32 %v3393, %v3439
        %v3467 = vadd.f32 %v3394, %v3437
        %v3468 = vadd.f32 %v3395, %v3435
        %v3469 = vadd.f32 %v3396, %v3451
        %3470 = vrot.lane.b32.xlu0 %v2339, 124
        %v3471 = vpop.permute.xlu0 %3470
        %3472 = vrot.lane.b32.xlu0 %v2343, 124
        %v3473 = vpop.permute.xlu0 %3472
        %3474 = vrot.lane.b32.xlu0 %v2341, 124
        %v3475 = vpop.permute.xlu0 %3474
        %3476 = vrot.lane.b32.xlu0 %v2345, 124
        %v3477 = vpop.permute.xlu0 %3476
        %3478 = vrot.lane.b32.xlu0 %v2565, 124
        %v3479 = vpop.permute.xlu0 %3478
        %3480 = vrot.lane.b32.xlu0 %v2569, 124
        %v3481 = vpop.permute.xlu0 %3480
        %3482 = vrot.lane.b32.xlu0 %v2567, 124
        %v3483 = vpop.permute.xlu0 %3482
        %3484 = vrot.lane.b32.xlu0 %v2571, 124
        %v3485 = vpop.permute.xlu0 %3484
        %3486 = vrot.lane.b32.xlu0 %v2791, 124
        %v3487 = vpop.permute.xlu0 %3486
        %3488 = vrot.lane.b32.xlu0 %v2795, 124
        %v3489 = vpop.permute.xlu0 %3488
        %3490 = vrot.lane.b32.xlu0 %v2793, 124
        %v3491 = vpop.permute.xlu0 %3490
        %3492 = vrot.lane.b32.xlu0 %v2797, 124
        %v3493 = vpop.permute.xlu0 %3492
        %3494 = vrot.lane.b32.xlu0 %v3017, 124
        %v3495 = vpop.permute.xlu0 %3494
        %3496 = vrot.lane.b32.xlu0 %v3021, 124
        %v3497 = vpop.permute.xlu0 %3496
        %3498 = vrot.lane.b32.xlu0 %v3019, 124
        %v3499 = vpop.permute.xlu0 %3498
        %3500 = vrot.lane.b32.xlu0 %v3023, 124
        %v3501 = vpop.permute.xlu0 %3500
        %3502 = vrot.lane.b32.xlu0 %v3219, 124
        %v3503 = vpop.permute.xlu0 %3502
        %3504 = vrot.lane.b32.xlu0 %v3222, 124
        %v3505 = vpop.permute.xlu0 %3504
        %vm3506 = vcmp.lt.s32.totalorder %v3286, 124
        %v3507 = vsel %vm3506, %v3499, %v3503
        %v3508 = vsel %vm3506, %v3501, %v3505
        %v3509 = vsel %vm3506, %v3495, %v3499
        %v3510 = vsel %vm3506, %v3497, %v3501
        %v3511 = vsel %vm3506, %v3491, %v3495
        %v3512 = vsel %vm3506, %v3493, %v3497
        %v3513 = vsel %vm3506, %v3487, %v3491
        %v3514 = vsel %vm3506, %v3489, %v3493
        %v3515 = vsel %vm3506, %v3483, %v3487
        %v3516 = vsel %vm3506, %v3485, %v3489
        %v3517 = vsel %vm3506, %v3479, %v3483
        %v3518 = vsel %vm3506, %v3481, %v3485
        %v3519 = vsel %vm3506, %v3475, %v3479
        %v3520 = vsel %vm3506, %v3477, %v3481
        %v3521 = vsel %vm3506, %v3471, %v3475
        %v3522 = vsel %vm3506, %v3473, %v3477
        %v3523 = vsel %vm3506, %v3503, %v3471
        %v3524 = vsel %vm3506, %v3505, %v3473
        %v3525 = vadd.f32 %v3452, %v3521
        %v3526 = vadd.f32 %v3453, %v3519
        %v3527 = vadd.f32 %v3454, %v3517
        %v3528 = vadd.f32 %v3455, %v3515
        %v3529 = vadd.f32 %v3456, %v3513
        %v3530 = vadd.f32 %v3457, %v3511
        %v3531 = vadd.f32 %v3458, %v3509
        %v3532 = vadd.f32 %v3459, %v3507
        %v3533 = vadd.f32 %v3460, %v3523
        %v3534 = vadd.f32 %v3461, %v3522
        %v3535 = vadd.f32 %v3462, %v3520
        %v3536 = vadd.f32 %v3463, %v3518
        %v3537 = vadd.f32 %v3464, %v3516
        %v3538 = vadd.f32 %v3465, %v3514
        %v3539 = vadd.f32 %v3466, %v3512
        %v3540 = vadd.f32 %v3467, %v3510
        %v3541 = vadd.f32 %v3468, %v3508
        %v3542 = vadd.f32 %v3469, %v3524
        %3543 = vrot.lane.b32.xlu0 %v2349, 123
        %v3544 = vpop.permute.xlu0 %3543
        %3545 = vrot.lane.b32.xlu0 %v2353, 123
        %v3546 = vpop.permute.xlu0 %3545
        %3547 = vrot.lane.b32.xlu0 %v2351, 123
        %v3548 = vpop.permute.xlu0 %3547
        %3549 = vrot.lane.b32.xlu0 %v2355, 123
        %v3550 = vpop.permute.xlu0 %3549
        %3551 = vrot.lane.b32.xlu0 %v2575, 123
        %v3552 = vpop.permute.xlu0 %3551
        %3553 = vrot.lane.b32.xlu0 %v2579, 123
        %v3554 = vpop.permute.xlu0 %3553
        %3555 = vrot.lane.b32.xlu0 %v2577, 123
        %v3556 = vpop.permute.xlu0 %3555
        %3557 = vrot.lane.b32.xlu0 %v2581, 123
        %v3558 = vpop.permute.xlu0 %3557
        %3559 = vrot.lane.b32.xlu0 %v2801, 123
        %v3560 = vpop.permute.xlu0 %3559
        %3561 = vrot.lane.b32.xlu0 %v2805, 123
        %v3562 = vpop.permute.xlu0 %3561
        %3563 = vrot.lane.b32.xlu0 %v2803, 123
        %v3564 = vpop.permute.xlu0 %3563
        %3565 = vrot.lane.b32.xlu0 %v2807, 123
        %v3566 = vpop.permute.xlu0 %3565
        %3567 = vrot.lane.b32.xlu0 %v3027, 123
        %v3568 = vpop.permute.xlu0 %3567
        %3569 = vrot.lane.b32.xlu0 %v3031, 123
        %v3570 = vpop.permute.xlu0 %3569
        %3571 = vrot.lane.b32.xlu0 %v3029, 123
        %v3572 = vpop.permute.xlu0 %3571
        %3573 = vrot.lane.b32.xlu0 %v3033, 123
        %v3574 = vpop.permute.xlu0 %3573
        %3575 = vrot.lane.b32.xlu0 %v3227, 123
        %v3576 = vpop.permute.xlu0 %3575
        %3577 = vrot.lane.b32.xlu0 %v3230, 123
        %v3578 = vpop.permute.xlu0 %3577
        %vm3579 = vcmp.lt.s32.totalorder %v3286, 123
        %v3580 = vsel %vm3579, %v3572, %v3576
        %v3581 = vsel %vm3579, %v3574, %v3578
        %v3582 = vsel %vm3579, %v3568, %v3572
        %v3583 = vsel %vm3579, %v3570, %v3574
        %v3584 = vsel %vm3579, %v3564, %v3568
        %v3585 = vsel %vm3579, %v3566, %v3570
        %v3586 = vsel %vm3579, %v3560, %v3564
        %v3587 = vsel %vm3579, %v3562, %v3566
        %v3588 = vsel %vm3579, %v3556, %v3560
        %v3589 = vsel %vm3579, %v3558, %v3562
        %v3590 = vsel %vm3579, %v3552, %v3556
        %v3591 = vsel %vm3579, %v3554, %v3558
        %v3592 = vsel %vm3579, %v3548, %v3552
        %v3593 = vsel %vm3579, %v3550, %v3554
        %v3594 = vsel %vm3579, %v3544, %v3548
        %v3595 = vsel %vm3579, %v3546, %v3550
        %v3596 = vsel %vm3579, %v3576, %v3544
        %v3597 = vsel %vm3579, %v3578, %v3546
        %v3598 = vadd.f32 %v3525, %v3594
        %v3599 = vadd.f32 %v3526, %v3592
        %v3600 = vadd.f32 %v3527, %v3590
        %v3601 = vadd.f32 %v3528, %v3588
        %v3602 = vadd.f32 %v3529, %v3586
        %v3603 = vadd.f32 %v3530, %v3584
        %v3604 = vadd.f32 %v3531, %v3582
        %v3605 = vadd.f32 %v3532, %v3580
        %v3606 = vadd.f32 %v3533, %v3596
        %v3607 = vadd.f32 %v3534, %v3595
        %v3608 = vadd.f32 %v3535, %v3593
        %v3609 = vadd.f32 %v3536, %v3591
        %v3610 = vadd.f32 %v3537, %v3589
        %v3611 = vadd.f32 %v3538, %v3587
        %v3612 = vadd.f32 %v3539, %v3585
        %v3613 = vadd.f32 %v3540, %v3583
        %v3614 = vadd.f32 %v3541, %v3581
        %v3615 = vadd.f32 %v3542, %v3597
        %3616 = vrot.lane.b32.xlu0 %v2359, 122
        %v3617 = vpop.permute.xlu0 %3616
        %3618 = vrot.lane.b32.xlu0 %v2363, 122
        %v3619 = vpop.permute.xlu0 %3618
        %3620 = vrot.lane.b32.xlu0 %v2361, 122
        %v3621 = vpop.permute.xlu0 %3620
        %3622 = vrot.lane.b32.xlu0 %v2365, 122
        %v3623 = vpop.permute.xlu0 %3622
        %3624 = vrot.lane.b32.xlu0 %v2585, 122
        %v3625 = vpop.permute.xlu0 %3624
        %3626 = vrot.lane.b32.xlu0 %v2589, 122
        %v3627 = vpop.permute.xlu0 %3626
        %3628 = vrot.lane.b32.xlu0 %v2587, 122
        %v3629 = vpop.permute.xlu0 %3628
        %3630 = vrot.lane.b32.xlu0 %v2591, 122
        %v3631 = vpop.permute.xlu0 %3630
        %3632 = vrot.lane.b32.xlu0 %v2811, 122
        %v3633 = vpop.permute.xlu0 %3632
        %3634 = vrot.lane.b32.xlu0 %v2815, 122
        %v3635 = vpop.permute.xlu0 %3634
        %3636 = vrot.lane.b32.xlu0 %v2813, 122
        %v3637 = vpop.permute.xlu0 %3636
        %3638 = vrot.lane.b32.xlu0 %v2817, 122
        %v3639 = vpop.permute.xlu0 %3638
        %3640 = vrot.lane.b32.xlu0 %v3037, 122
        %v3641 = vpop.permute.xlu0 %3640
        %3642 = vrot.lane.b32.xlu0 %v3041, 122
        %v3643 = vpop.permute.xlu0 %3642
        %3644 = vrot.lane.b32.xlu0 %v3039, 122
        %v3645 = vpop.permute.xlu0 %3644
        %3646 = vrot.lane.b32.xlu0 %v3043, 122
        %v3647 = vpop.permute.xlu0 %3646
        %3648 = vrot.lane.b32.xlu0 %v3235, 122
        %v3649 = vpop.permute.xlu0 %3648
        %3650 = vrot.lane.b32.xlu0 %v3238, 122
        %v3651 = vpop.permute.xlu0 %3650
        %vm3652 = vcmp.lt.s32.totalorder %v3286, 122
        %v3653 = vsel %vm3652, %v3645, %v3649
        %v3654 = vsel %vm3652, %v3647, %v3651
        %v3655 = vsel %vm3652, %v3641, %v3645
        %v3656 = vsel %vm3652, %v3643, %v3647
        %v3657 = vsel %vm3652, %v3637, %v3641
        %v3658 = vsel %vm3652, %v3639, %v3643
        %v3659 = vsel %vm3652, %v3633, %v3637
        %v3660 = vsel %vm3652, %v3635, %v3639
        %v3661 = vsel %vm3652, %v3629, %v3633
        %v3662 = vsel %vm3652, %v3631, %v3635
        %v3663 = vsel %vm3652, %v3625, %v3629
        %v3664 = vsel %vm3652, %v3627, %v3631
        %v3665 = vsel %vm3652, %v3621, %v3625
        %v3666 = vsel %vm3652, %v3623, %v3627
        %v3667 = vsel %vm3652, %v3617, %v3621
        %v3668 = vsel %vm3652, %v3619, %v3623
        %v3669 = vsel %vm3652, %v3649, %v3617
        %v3670 = vsel %vm3652, %v3651, %v3619
        %v3671 = vadd.f32 %v3598, %v3667
        %v3672 = vadd.f32 %v3599, %v3665
        %v3673 = vadd.f32 %v3600, %v3663
        %v3674 = vadd.f32 %v3601, %v3661
        %v3675 = vadd.f32 %v3602, %v3659
        %v3676 = vadd.f32 %v3603, %v3657
        %v3677 = vadd.f32 %v3604, %v3655
        %v3678 = vadd.f32 %v3605, %v3653
        %v3679 = vadd.f32 %v3606, %v3669
        %v3680 = vadd.f32 %v3607, %v3668
        %v3681 = vadd.f32 %v3608, %v3666
        %v3682 = vadd.f32 %v3609, %v3664
        %v3683 = vadd.f32 %v3610, %v3662
        %v3684 = vadd.f32 %v3611, %v3660
        %v3685 = vadd.f32 %v3612, %v3658
        %v3686 = vadd.f32 %v3613, %v3656
        %v3687 = vadd.f32 %v3614, %v3654
        %v3688 = vadd.f32 %v3615, %v3670
        %3689 = vrot.lane.b32.xlu0 %v2369, 121
        %v3690 = vpop.permute.xlu0 %3689
        %3691 = vrot.lane.b32.xlu0 %v2373, 121
        %v3692 = vpop.permute.xlu0 %3691
        %3693 = vrot.lane.b32.xlu0 %v2371, 121
        %v3694 = vpop.permute.xlu0 %3693
        %3695 = vrot.lane.b32.xlu0 %v2375, 121
        %v3696 = vpop.permute.xlu0 %3695
        %3697 = vrot.lane.b32.xlu0 %v2595, 121
        %v3698 = vpop.permute.xlu0 %3697
        %3699 = vrot.lane.b32.xlu0 %v2599, 121
        %v3700 = vpop.permute.xlu0 %3699
        %3701 = vrot.lane.b32.xlu0 %v2597, 121
        %v3702 = vpop.permute.xlu0 %3701
        %3703 = vrot.lane.b32.xlu0 %v2601, 121
        %v3704 = vpop.permute.xlu0 %3703
        %3705 = vrot.lane.b32.xlu0 %v2821, 121
        %v3706 = vpop.permute.xlu0 %3705
        %3707 = vrot.lane.b32.xlu0 %v2825, 121
        %v3708 = vpop.permute.xlu0 %3707
        %3709 = vrot.lane.b32.xlu0 %v2823, 121
        %v3710 = vpop.permute.xlu0 %3709
        %3711 = vrot.lane.b32.xlu0 %v2827, 121
        %v3712 = vpop.permute.xlu0 %3711
        %3713 = vrot.lane.b32.xlu0 %v3047, 121
        %v3714 = vpop.permute.xlu0 %3713
        %3715 = vrot.lane.b32.xlu0 %v3051, 121
        %v3716 = vpop.permute.xlu0 %3715
        %3717 = vrot.lane.b32.xlu0 %v3049, 121
        %v3718 = vpop.permute.xlu0 %3717
        %3719 = vrot.lane.b32.xlu0 %v3053, 121
        %v3720 = vpop.permute.xlu0 %3719
        %3721 = vrot.lane.b32.xlu0 %v3243, 121
        %v3722 = vpop.permute.xlu0 %3721
        %3723 = vrot.lane.b32.xlu0 %v3246, 121
        %v3724 = vpop.permute.xlu0 %3723
        %vm3725 = vcmp.lt.s32.totalorder %v3286, 121
        %v3726 = vsel %vm3725, %v3718, %v3722
        %v3727 = vsel %vm3725, %v3720, %v3724
        %v3728 = vsel %vm3725, %v3714, %v3718
        %v3729 = vsel %vm3725, %v3716, %v3720
        %v3730 = vsel %vm3725, %v3710, %v3714
        %v3731 = vsel %vm3725, %v3712, %v3716
        %v3732 = vsel %vm3725, %v3706, %v3710
        %v3733 = vsel %vm3725, %v3708, %v3712
        %v3734 = vsel %vm3725, %v3702, %v3706
        %v3735 = vsel %vm3725, %v3704, %v3708
        %v3736 = vsel %vm3725, %v3698, %v3702
        %v3737 = vsel %vm3725, %v3700, %v3704
        %v3738 = vsel %vm3725, %v3694, %v3698
        %v3739 = vsel %vm3725, %v3696, %v3700
        %v3740 = vsel %vm3725, %v3690, %v3694
        %v3741 = vsel %vm3725, %v3692, %v3696
        %v3742 = vsel %vm3725, %v3722, %v3690
        %v3743 = vsel %vm3725, %v3724, %v3692
        %v3744 = vadd.f32 %v3671, %v3740
        %v3745 = vadd.f32 %v3672, %v3738
        %v3746 = vadd.f32 %v3673, %v3736
        %v3747 = vadd.f32 %v3674, %v3734
        %v3748 = vadd.f32 %v3675, %v3732
        %v3749 = vadd.f32 %v3676, %v3730
        %v3750 = vadd.f32 %v3677, %v3728
        %v3751 = vadd.f32 %v3678, %v3726
        %v3752 = vadd.f32 %v3679, %v3742
        %v3753 = vadd.f32 %v3680, %v3741
        %v3754 = vadd.f32 %v3681, %v3739
        %v3755 = vadd.f32 %v3682, %v3737
        %v3756 = vadd.f32 %v3683, %v3735
        %v3757 = vadd.f32 %v3684, %v3733
        %v3758 = vadd.f32 %v3685, %v3731
        %v3759 = vadd.f32 %v3686, %v3729
        %v3760 = vadd.f32 %v3687, %v3727
        %v3761 = vadd.f32 %v3688, %v3743
        %v3762 = vld [vmem:[%s2] sm:$0xff]
        %v3763 = vld [vmem:[%s2 + $0x8] sm:$0xff]
        %3765 = vset.pattern.permute.xlu0 0
        %3766 = vperm.xlu0 %3765, %v3762
        %v3767 = vpop.permute.xlu0 %3766
        %3770 = vset.pattern.permute.xlu0 0
        %3771 = vperm.xlu0 %3770, %v3763
        %v3772 = vpop.permute.xlu0 %3771
        %v3774 = vadd.f32 %v3744, %v3767
        %v3775 = vadd.f32 %v3745, %v3767
        %v3776 = vadd.f32 %v3746, %v3767
        %v3777 = vadd.f32 %v3747, %v3767
        %v3778 = vadd.f32 %v3748, %v3767
        %v3779 = vadd.f32 %v3749, %v3767
        %v3780 = vadd.f32 %v3750, %v3767
        %v3781 = vadd.f32 %v3751, %v3767
        %v3782 = vadd.f32 %v3752, %v3767
        %v3783 = vadd.f32 %v3753, %v3772
        %v3784 = vadd.f32 %v3754, %v3772
        %v3785 = vadd.f32 %v3755, %v3772
        %v3786 = vadd.f32 %v3756, %v3772
        %v3787 = vadd.f32 %v3757, %v3772
        %v3788 = vadd.f32 %v3758, %v3772
        %v3789 = vadd.f32 %v3759, %v3772
        %v3790 = vadd.f32 %v3760, %v3772
        %v3791 = vadd.f32 %v3761, %v3772
        %v3792 = vmax.f32 %v3774, 0.0
        %v3793 = vmax.f32 %v3775, 0.0
        %v3794 = vmax.f32 %v3776, 0.0
        %v3795 = vmax.f32 %v3777, 0.0
        %v3796 = vmax.f32 %v3778, 0.0
        %v3797 = vmax.f32 %v3779, 0.0
        %v3798 = vmax.f32 %v3780, 0.0
        %v3799 = vmax.f32 %v3781, 0.0
        %v3800 = vmax.f32 %v3782, 0.0
        %v3801 = vmax.f32 %v3783, 0.0
        %v3802 = vmax.f32 %v3784, 0.0
        %v3803 = vmax.f32 %v3785, 0.0
        %v3804 = vmax.f32 %v3786, 0.0
        %v3805 = vmax.f32 %v3787, 0.0
        %v3806 = vmax.f32 %v3788, 0.0
        %v3807 = vmax.f32 %v3789, 0.0
        %v3808 = vmax.f32 %v3790, 0.0
        %v3809 = vmax.f32 %v3791, 0.0
        %3810 = vst [vmem:[%s159] sm:$0xff] %v3792
        %3811 = vst [vmem:[%s159 + $0x8] sm:$0xff] %v3793
        %3812 = vst [vmem:[%s159 + $0x10] sm:$0xff] %v3794
        %3813 = vst [vmem:[%s159 + $0x18] sm:$0xff] %v3795
        %3814 = vst [vmem:[%s159 + $0x20] sm:$0xff] %v3796
        %3815 = vst [vmem:[%s159 + $0x28] sm:$0xff] %v3797
        %3816 = vst [vmem:[%s159 + $0x30] sm:$0xff] %v3798
        %3817 = vst [vmem:[%s159 + $0x38] sm:$0xff] %v3799
        %3818 = vst [vmem:[%s159 + $0x40] sm:$0xff] %v3800
        %3819 = vst [vmem:[%s159 + $0x48] sm:$0xff] %v3801
        %3820 = vst [vmem:[%s159 + $0x50] sm:$0xff] %v3802
        %3821 = vst [vmem:[%s159 + $0x58] sm:$0xff] %v3803
        %3822 = vst [vmem:[%s159 + $0x60] sm:$0xff] %v3804
        %3823 = vst [vmem:[%s159 + $0x68] sm:$0xff] %v3805
        %3824 = vst [vmem:[%s159 + $0x70] sm:$0xff] %v3806
        %3825 = vst [vmem:[%s159 + $0x78] sm:$0xff] %v3807
        %3826 = vst [vmem:[%s159 + $0x80] sm:$0xff] %v3808
        %3827 = vst [vmem:[%s159 + $0x88] sm:$0xff] %v3809
        %s3828 = sand.u32 %s90, 1
        %s3829 = sand.u32 %s90, 1
        %s3830 = smul.addr %s3829, 144
        %s3831 = scalar_lea.vmem [#allocation2], %s3830
        // Predicated region
        $region33: #{cross_talk_conv_net_forward.3} parent=31 // pred_check
          %p3832 = pneg %p100
        $region34: #{cross_talk_conv_net_forward.3} parent=31 // pred_check_branch
          %3834 = sbr.rel (%p3832) target = $region36
        $region35: #{cross_talk_conv_net_forward.3} parent=31 // pred_region
          %s3835 = smul.u32 9, %s14
          %s3836 = smul.addr %s3835, 8
          %s3837 = scalar_lea.vmem %s3, %s3836
          // Predicated region
          $region37: #{cross_talk_conv_net_forward.3} parent=35 // pred_check
            _
          $region38: #{cross_talk_conv_net_forward.3} parent=35 // pred_check_branch
            %3839 = sbr.rel (0) target = $region40
          $region39: #{cross_talk_conv_net_forward.3} parent=35 // pred_region
            // Predicated region
            $region41: #{cross_talk_conv_net_forward.3} parent=39 // pred_check
              _
            $region42: #{cross_talk_conv_net_forward.3} parent=39 // pred_check_branch
              %3841 = sbr.rel (0) target = $region44
            $region43: #{cross_talk_conv_net_forward.3} parent=39 // pred_region
              loop: start=0, step=1, limit=1
              $region45: #{cross_talk_conv_net_forward.3} parent=43 // loop_pre_header
                _
              $region46: #{cross_talk_conv_net_forward.3} parent=43 // loop_header
                %s3843 = sphi 0, %s3847
                %p3844 = scmp.ge.s32.totalorder %s3843, 1
                %s3848 = sphi %s3831, %s3831
                %s3849 = sphi %s3837, %s3837
              $region47: #{cross_talk_conv_net_forward.3} parent=43 // loop_header_branch
                %3846 = sbr.rel (%p3844) target = $region51
              $region48: #{cross_talk_conv_net_forward.3} parent=43 // loop_body
                %v3850 = vld [vmem:[%s3848] sm:$0xff]
                %3851 = vst [vmem:[%s3849] sm:$0xff] %v3850
                %v3852 = vld [vmem:[%s3848 + $0x8] sm:$0xff]
                %3853 = vst [vmem:[%s3849 + $0x8] sm:$0xff] %v3852
                %v3854 = vld [vmem:[%s3848 + $0x10] sm:$0xff]
                %3855 = vst [vmem:[%s3849 + $0x10] sm:$0xff] %v3854
                %v3856 = vld [vmem:[%s3848 + $0x18] sm:$0xff]
                %3857 = vst [vmem:[%s3849 + $0x18] sm:$0xff] %v3856
                %v3858 = vld [vmem:[%s3848 + $0x20] sm:$0xff]
                %3859 = vst [vmem:[%s3849 + $0x20] sm:$0xff] %v3858
                %v3860 = vld [vmem:[%s3848 + $0x28] sm:$0xff]
                %3861 = vst [vmem:[%s3849 + $0x28] sm:$0xff] %v3860
                %v3862 = vld [vmem:[%s3848 + $0x30] sm:$0xff]
                %3863 = vst [vmem:[%s3849 + $0x30] sm:$0xff] %v3862
                %v3864 = vld [vmem:[%s3848 + $0x38] sm:$0xff]
                %3865 = vst [vmem:[%s3849 + $0x38] sm:$0xff] %v3864
                %v3866 = vld [vmem:[%s3848 + $0x40] sm:$0xff]
                %3867 = vst [vmem:[%s3849 + $0x40] sm:$0xff] %v3866
                %v3868 = vld [vmem:[%s3848 + $0x48] sm:$0xff]
                %3869 = vst [vmem:[%s3849 + $0x90] sm:$0xff] %v3868
                %v3870 = vld [vmem:[%s3848 + $0x50] sm:$0xff]
                %3871 = vst [vmem:[%s3849 + $0x98] sm:$0xff] %v3870
                %v3872 = vld [vmem:[%s3848 + $0x58] sm:$0xff]
                %3873 = vst [vmem:[%s3849 + $0xa0] sm:$0xff] %v3872
                %v3874 = vld [vmem:[%s3848 + $0x60] sm:$0xff]
                %3875 = vst [vmem:[%s3849 + $0xa8] sm:$0xff] %v3874
                %v3876 = vld [vmem:[%s3848 + $0x68] sm:$0xff]
                %3877 = vst [vmem:[%s3849 + $0xb0] sm:$0xff] %v3876
                %v3878 = vld [vmem:[%s3848 + $0x70] sm:$0xff]
                %3879 = vst [vmem:[%s3849 + $0xb8] sm:$0xff] %v3878
                %v3880 = vld [vmem:[%s3848 + $0x78] sm:$0xff]
                %3881 = vst [vmem:[%s3849 + $0xc0] sm:$0xff] %v3880
                %v3882 = vld [vmem:[%s3848 + $0x80] sm:$0xff]
                %3883 = vst [vmem:[%s3849 + $0xc8] sm:$0xff] %v3882
                %v3884 = vld [vmem:[%s3848 + $0x88] sm:$0xff]
                %3885 = vst [vmem:[%s3849 + $0xd0] sm:$0xff] %v3884
              $region49: #{cross_talk_conv_net_forward.3} parent=43 // loop_footer
                %s3847 = sadd.s32 1, %s3843
              $region50: #{cross_talk_conv_net_forward.3} parent=43 // loop_footer_branch
                %3842 = sbr.rel target = $region46
              $region51: #{cross_talk_conv_net_forward.3} parent=43 // loop_exit
                _
            $region44: #{cross_talk_conv_net_forward.3} parent=39 // pred_fallthru
              _
            // Predicated region
            $region52: #{cross_talk_conv_net_forward.3} parent=39 // pred_check
              _
            $region53: #{cross_talk_conv_net_forward.3} parent=39 // pred_check_branch
              %3887 = sbr.rel target = $region55
            $region54: #{cross_talk_conv_net_forward.3} parent=39 // pred_region
              _
            $region55: #{cross_talk_conv_net_forward.3} parent=39 // pred_fallthru
              _
          $region40: #{cross_talk_conv_net_forward.3} parent=35 // pred_fallthru
            _
          %3888 = vnop
        $region36: #{cross_talk_conv_net_forward.3} parent=31 // pred_fallthru
          _
      $region32: #{cross_talk_conv_net_forward.3} parent=5 // pred_fallthru
        _
      %p3889 = scmp.le.s32.totalorder 2, %s9
      // Predicated region
      $region56: #{cross_talk_conv_net_forward.3} parent=5 // pred_check
        %p3890 = pneg %p3889
      $region57: #{cross_talk_conv_net_forward.3} parent=5 // pred_check_branch
        %3892 = sbr.rel (%p3890) target = $region59
      $region58: #{cross_talk_conv_net_forward.3} parent=5 // pred_region
        %s3893 = ssub.s32 %s9, 2
        // Predicated region
        $region60: #{cross_talk_conv_net_forward.3} parent=58 // pred_check
          %p3894 = pneg %p106
        $region61: #{cross_talk_conv_net_forward.3} parent=58 // pred_check_branch
          %3896 = sbr.rel (%p3894) target = $region63
        $region62: #{cross_talk_conv_net_forward.3} parent=58 // pred_region
          %s3897 = sand.u32 %s91, 1
          %s3898 = sand.u32 %s91, 1
          %s3899 = smul.addr %s3898, 144
          %s3900 = scalar_lea.vmem [#allocation2], %s3899
        $region63: #{cross_talk_conv_net_forward.3} parent=58 // pred_fallthru
          _
      $region59: #{cross_talk_conv_net_forward.3} parent=5 // pred_fallthru
        _
    $region6: #{cross_talk_conv_net_forward.3} parent=1 // loop_footer
      %s13 = sadd.s32 1, %s9
    $region7: #{cross_talk_conv_net_forward.3} parent=1 // loop_footer_branch
      %8 = sbr.rel target = $region3
    $region8: #{cross_talk_conv_net_forward.3} parent=1 // loop_exit
      _

// kernel: cross_talk_conv_net_forward.4
$region0: #{cross_talk_conv_net_forward.4}
  #allocation0 [shape = 'u32[]', space=smem, size = 0x4, offset = 0x4, fixed_abs, tag = 'smem constant byte address 0x4 - core index']
  #allocation1 [shape = 'u32[144,128]{1,0:T(1,128)}', space=vmem, size = 0x12000, scoped, tag = 'internal scratch']
  %s0 = inlined_call_operand.vmem [shape: f32[32,1456], index: 0, kind: input, shape index: {}]
  %s1 = inlined_call_operand.vmem [shape: f32[1456,232], index: 1, kind: input, shape index: {}]
  %s2 = inlined_call_operand.vmem [shape: f32[32,1], index: 2, kind: input, shape index: {}]
  %s3 = inlined_call_operand.vmem [shape: f32[32,232], index: 3, kind: output, shape index: {}]
  %s4 = sld [smem:[#allocation0]]
  $region22: #{cross_talk_conv_net_forward.4} parent=0
    _
  %s6 = ssub.s32 1, %s4
  %s7 = scalar_select 0, %s6, %s4
  // Predicated region
  $region2: #{cross_talk_conv_net_forward.4} parent=0 // pred_check
    _
  $region3: #{cross_talk_conv_net_forward.4} parent=0 // pred_check_branch
    %9 = sbr.rel (0) target = $region5
  $region4: #{cross_talk_conv_net_forward.4} parent=0 // pred_region
    _
  $region5: #{cross_talk_conv_net_forward.4} parent=0 // pred_fallthru
    _
  // Predicated region
  $region6: #{cross_talk_conv_net_forward.4} parent=0 // pred_check
    _
  $region7: #{cross_talk_conv_net_forward.4} parent=0 // pred_check_branch
    %11 = sbr.rel (0) target = $region9
  $region8: #{cross_talk_conv_net_forward.4} parent=0 // pred_region
    _
  $region9: #{cross_talk_conv_net_forward.4} parent=0 // pred_fallthru
    _
  // Predicated region
  $region10: #{cross_talk_conv_net_forward.4} parent=0 // pred_check
    _
  $region11: #{cross_talk_conv_net_forward.4} parent=0 // pred_check_branch
    %13 = sbr.rel (0) target = $region13
  $region12: #{cross_talk_conv_net_forward.4} parent=0 // pred_region
    _
  $region13: #{cross_talk_conv_net_forward.4} parent=0 // pred_fallthru
    _
  %v14 = vld [vmem:[%s0] sm:$0xff]
  %v15 = vld [vmem:[%s0 + $0x8] sm:$0xff]
  %v16 = vld [vmem:[%s0 + $0x10] sm:$0xff]
  %v17 = vld [vmem:[%s0 + $0x18] sm:$0xff]
  %v18 = vld [vmem:[%s0 + $0x20] sm:$0xff]
  %v19 = vld [vmem:[%s0 + $0x28] sm:$0xff]
  %v20 = vld [vmem:[%s0 + $0x30] sm:$0xff]
  %v21 = vld [vmem:[%s0 + $0x38] sm:$0xff]
  %v22 = vld [vmem:[%s0 + $0x40] sm:$0xff]
  %v23 = vld [vmem:[%s0 + $0x48] sm:$0xff]
  %v24 = vld [vmem:[%s0 + $0x50] sm:$0xff]
  %v25 = vld [vmem:[%s0 + $0x58] sm:$0xff]
  %v26 = vld [vmem:[%s0 + $0x60] sm:$0xff]
  %v27 = vld [vmem:[%s0 + $0x68] sm:$0xff]
  %v28 = vld [vmem:[%s0 + $0x70] sm:$0xff]
  %v29 = vld [vmem:[%s0 + $0x78] sm:$0xff]
  %v30 = vld [vmem:[%s0 + $0x80] sm:$0xff]
  %v31 = vld [vmem:[%s0 + $0x88] sm:$0xff]
  %v32 = vld [vmem:[%s0 + $0x90] sm:$0xff]
  %v33 = vld [vmem:[%s0 + $0x98] sm:$0xff]
  %v34 = vld [vmem:[%s0 + $0xa0] sm:$0xff]
  %v35 = vld [vmem:[%s0 + $0xa8] sm:$0xff]
  %v36 = vld [vmem:[%s0 + $0xb0] sm:$0xff]
  %v37 = vld [vmem:[%s0 + $0xb8] sm:$0xff]
  %v38 = vld [vmem:[%s0 + $0xc0] sm:$0xff]
  %v39 = vld [vmem:[%s0 + $0xc8] sm:$0xff]
  %v40 = vld [vmem:[%s0 + $0xd0] sm:$0xff]
  %v41 = vld [vmem:[%s0 + $0xd8] sm:$0xff]
  %v42 = vld [vmem:[%s0 + $0xe0] sm:$0xff]
  %v43 = vld [vmem:[%s0 + $0xe8] sm:$0xff]
  %v44 = vld [vmem:[%s0 + $0xf0] sm:$0xff]
  %v45 = vld [vmem:[%s0 + $0xf8] sm:$0xff]
  %v46 = vld [vmem:[%s0 + $0x100] sm:$0xff]
  %v47 = vld [vmem:[%s0 + $0x108] sm:$0xff]
  %v48 = vld [vmem:[%s0 + $0x110] sm:$0xff]
  %v49 = vld [vmem:[%s0 + $0x118] sm:$0xff]
  %v50 = vld [vmem:[%s0 + $0x120] sm:$0xff]
  %v51 = vld [vmem:[%s0 + $0x128] sm:$0xff]
  %v52 = vld [vmem:[%s0 + $0x130] sm:$0xff]
  %v53 = vld [vmem:[%s0 + $0x138] sm:$0xff]
  %v54 = vld [vmem:[%s0 + $0x140] sm:$0xff]
  %v55 = vld [vmem:[%s0 + $0x148] sm:$0xff]
  %v56 = vld [vmem:[%s0 + $0x150] sm:$0xff]
  %v57 = vld [vmem:[%s0 + $0x158] sm:$0xff]
  %v58 = vld [vmem:[%s0 + $0x160] sm:$0xff]
  %v59 = vld [vmem:[%s0 + $0x168] sm:$0xff]
  %v60 = vld [vmem:[%s0 + $0x170] sm:$0xff]
  %v61 = vld [vmem:[%s0 + $0x178] sm:$0xff]
  %v62 = vld [vmem:[%s1] sm:$0xff]
  %v63 = vld [vmem:[%s1 + $0x8] sm:$0xff]
  %v64 = vld [vmem:[%s1 + $0x10] sm:$0xff]
  %v65 = vld [vmem:[%s1 + $0x18] sm:$0xff]
  %v66 = vld [vmem:[%s1 + $0x20] sm:$0xff]
  %v67 = vld [vmem:[%s1 + $0x28] sm:$0xff]
  %v68 = vld [vmem:[%s1 + $0x30] sm:$0xff]
  %v69 = vld [vmem:[%s1 + $0x38] sm:$0xff]
  %v70 = vld [vmem:[%s1 + $0x40] sm:$0xff]
  %v71 = vld [vmem:[%s1 + $0x48] sm:$0xff]
  %v72 = vld [vmem:[%s1 + $0x50] sm:$0xff]
  %v73 = vld [vmem:[%s1 + $0x58] sm:$0xff]
  %v74 = vld [vmem:[%s1 + $0x60] sm:$0xff]
  %v75 = vld [vmem:[%s1 + $0x68] sm:$0xff]
  %v76 = vld [vmem:[%s1 + $0x70] sm:$0xff]
  %v77 = vld [vmem:[%s1 + $0x78] sm:$0xff]
  %v78 = vld [vmem:[%s1 + $0x80] sm:$0xff]
  %v79 = vld [vmem:[%s1 + $0x88] sm:$0xff]
  %v80 = vld [vmem:[%s1 + $0x90] sm:$0xff]
  %v81 = vld [vmem:[%s1 + $0x98] sm:$0xff]
  %v82 = vld [vmem:[%s1 + $0xa0] sm:$0xff]
  %v83 = vld [vmem:[%s1 + $0xa8] sm:$0xff]
  %v84 = vld [vmem:[%s1 + $0xb0] sm:$0xff]
  %v85 = vld [vmem:[%s1 + $0xb8] sm:$0xff]
  %v86 = vld [vmem:[%s1 + $0xc0] sm:$0xff]
  %v87 = vld [vmem:[%s1 + $0xc8] sm:$0xff]
  %v88 = vld [vmem:[%s1 + $0xd0] sm:$0xff]
  %v89 = vld [vmem:[%s1 + $0xd8] sm:$0xff]
  %v90 = vld [vmem:[%s1 + $0xe0] sm:$0xff]
  %v91 = vld [vmem:[%s1 + $0xe8] sm:$0xff]
  %v92 = vld [vmem:[%s1 + $0xf0] sm:$0xff]
  %v93 = vld [vmem:[%s1 + $0xf8] sm:$0xff]
  %v94 = vld [vmem:[%s1 + $0x100] sm:$0xff]
  %v95 = vld [vmem:[%s1 + $0x108] sm:$0xff]
  %v96 = vld [vmem:[%s1 + $0x110] sm:$0xff]
  %v97 = vld [vmem:[%s1 + $0x118] sm:$0xff]
  %v98 = vld [vmem:[%s1 + $0x120] sm:$0xff]
  %v99 = vld [vmem:[%s1 + $0x128] sm:$0xff]
  %v100 = vld [vmem:[%s1 + $0x130] sm:$0xff]
  %v101 = vld [vmem:[%s1 + $0x138] sm:$0xff]
  %v102 = vld [vmem:[%s1 + $0x140] sm:$0xff]
  %v103 = vld [vmem:[%s1 + $0x148] sm:$0xff]
  %v104 = vld [vmem:[%s1 + $0x150] sm:$0xff]
  %v105 = vld [vmem:[%s1 + $0x158] sm:$0xff]
  %v106 = vld [vmem:[%s1 + $0x160] sm:$0xff]
  %v107 = vld [vmem:[%s1 + $0x168] sm:$0xff]
  %v108 = vld [vmem:[%s1 + $0x170] sm:$0xff]
  %v109 = vld [vmem:[%s1 + $0x178] sm:$0xff]
  %v110 = vld [vmem:[%s1 + $0x180] sm:$0xff]
  %v111 = vld [vmem:[%s1 + $0x188] sm:$0xff]
  %v112 = vld [vmem:[%s1 + $0x190] sm:$0xff]
  %v113 = vld [vmem:[%s1 + $0x198] sm:$0xff]
  %v114 = vld [vmem:[%s1 + $0x1a0] sm:$0xff]
  %v115 = vld [vmem:[%s1 + $0x1a8] sm:$0xff]
  %v116 = vld [vmem:[%s1 + $0x1b0] sm:$0xff]
  %v117 = vld [vmem:[%s1 + $0x1b8] sm:$0xff]
  %v118 = vld [vmem:[%s1 + $0x1c0] sm:$0xff]
  %v119 = vld [vmem:[%s1 + $0x1c8] sm:$0xff]
  %v120 = vld [vmem:[%s1 + $0x1d0] sm:$0xff]
  %v121 = vld [vmem:[%s1 + $0x1d8] sm:$0xff]
  %v122 = vld [vmem:[%s1 + $0x1e0] sm:$0xff]
  %v123 = vld [vmem:[%s1 + $0x1e8] sm:$0xff]
  %v124 = vld [vmem:[%s1 + $0x1f0] sm:$0xff]
  %v125 = vld [vmem:[%s1 + $0x1f8] sm:$0xff]
  %v126 = vld [vmem:[%s1 + $0x200] sm:$0xff]
  %v127 = vld [vmem:[%s1 + $0x208] sm:$0xff]
  %v128 = vld [vmem:[%s1 + $0x210] sm:$0xff]
  %v129 = vld [vmem:[%s1 + $0x218] sm:$0xff]
  %v130 = vld [vmem:[%s1 + $0x220] sm:$0xff]
  %v131 = vld [vmem:[%s1 + $0x228] sm:$0xff]
  %v132 = vld [vmem:[%s1 + $0x230] sm:$0xff]
  %v133 = vld [vmem:[%s1 + $0x238] sm:$0xff]
  %v134 = vld [vmem:[%s1 + $0x240] sm:$0xff]
  %v135 = vld [vmem:[%s1 + $0x248] sm:$0xff]
  %v136 = vld [vmem:[%s1 + $0x250] sm:$0xff]
  %v137 = vld [vmem:[%s1 + $0x258] sm:$0xff]
  %v138 = vld [vmem:[%s1 + $0x260] sm:$0xff]
  %v139 = vld [vmem:[%s1 + $0x268] sm:$0xff]
  %v140 = vld [vmem:[%s1 + $0x270] sm:$0xff]
  %v141 = vld [vmem:[%s1 + $0x278] sm:$0xff]
  %v142 = vld [vmem:[%s1 + $0x280] sm:$0xff]
  %v143 = vld [vmem:[%s1 + $0x288] sm:$0xff]
  %v144 = vld [vmem:[%s1 + $0x290] sm:$0xff]
  %v145 = vld [vmem:[%s1 + $0x298] sm:$0xff]
  %v146 = vld [vmem:[%s1 + $0x2a0] sm:$0xff]
  %v147 = vld [vmem:[%s1 + $0x2a8] sm:$0xff]
  %v148 = vld [vmem:[%s1 + $0x2b0] sm:$0xff]
  %v149 = vld [vmem:[%s1 + $0x2b8] sm:$0xff]
  %v150 = vld [vmem:[%s1 + $0x2c0] sm:$0xff]
  %v151 = vld [vmem:[%s1 + $0x2c8] sm:$0xff]
  %v152 = vld [vmem:[%s1 + $0x2d0] sm:$0xff]
  %v153 = vld [vmem:[%s1 + $0x2d8] sm:$0xff]
  %v154 = vld [vmem:[%s1 + $0x2e0] sm:$0xff]
  %v155 = vld [vmem:[%s1 + $0x2e8] sm:$0xff]
  %v156 = vld [vmem:[%s1 + $0x2f0] sm:$0xff]
  %v157 = vld [vmem:[%s1 + $0x2f8] sm:$0xff]
  %v158 = vld [vmem:[%s1 + $0x300] sm:$0xff]
  %v159 = vld [vmem:[%s1 + $0x308] sm:$0xff]
  %v160 = vld [vmem:[%s1 + $0x310] sm:$0xff]
  %v161 = vld [vmem:[%s1 + $0x318] sm:$0xff]
  %v162 = vld [vmem:[%s1 + $0x320] sm:$0xff]
  %v163 = vld [vmem:[%s1 + $0x328] sm:$0xff]
  %v164 = vld [vmem:[%s1 + $0x330] sm:$0xff]
  %v165 = vld [vmem:[%s1 + $0x338] sm:$0xff]
  %v166 = vld [vmem:[%s1 + $0x340] sm:$0xff]
  %v167 = vld [vmem:[%s1 + $0x348] sm:$0xff]
  %v168 = vld [vmem:[%s1 + $0x350] sm:$0xff]
  %v169 = vld [vmem:[%s1 + $0x358] sm:$0xff]
  %v170 = vld [vmem:[%s1 + $0x360] sm:$0xff]
  %v171 = vld [vmem:[%s1 + $0x368] sm:$0xff]
  %v172 = vld [vmem:[%s1 + $0x370] sm:$0xff]
  %v173 = vld [vmem:[%s1 + $0x378] sm:$0xff]
  %v174 = vld [vmem:[%s1 + $0x380] sm:$0xff]
  %v175 = vld [vmem:[%s1 + $0x388] sm:$0xff]
  %v176 = vld [vmem:[%s1 + $0x390] sm:$0xff]
  %v177 = vld [vmem:[%s1 + $0x398] sm:$0xff]
  %v178 = vld [vmem:[%s1 + $0x3a0] sm:$0xff]
  %v179 = vld [vmem:[%s1 + $0x3a8] sm:$0xff]
  %v180 = vld [vmem:[%s1 + $0x3b0] sm:$0xff]
  %v181 = vld [vmem:[%s1 + $0x3b8] sm:$0xff]
  %v182 = vld [vmem:[%s1 + $0x3c0] sm:$0xff]
  %v183 = vld [vmem:[%s1 + $0x3c8] sm:$0xff]
  %v184 = vld [vmem:[%s1 + $0x3d0] sm:$0xff]
  %v185 = vld [vmem:[%s1 + $0x3d8] sm:$0xff]
  %v186 = vld [vmem:[%s1 + $0x3e0] sm:$0xff]
  %v187 = vld [vmem:[%s1 + $0x3e8] sm:$0xff]
  %v188 = vld [vmem:[%s1 + $0x3f0] sm:$0xff]
  %v189 = vld [vmem:[%s1 + $0x3f8] sm:$0xff]
  %v190 = vld [vmem:[%s1 + $0x400] sm:$0xff]
  %v191 = vld [vmem:[%s1 + $0x408] sm:$0xff]
  %v192 = vld [vmem:[%s1 + $0x410] sm:$0xff]
  %v193 = vld [vmem:[%s1 + $0x418] sm:$0xff]
  %v194 = vld [vmem:[%s1 + $0x420] sm:$0xff]
  %v195 = vld [vmem:[%s1 + $0x428] sm:$0xff]
  %v196 = vld [vmem:[%s1 + $0x430] sm:$0xff]
  %v197 = vld [vmem:[%s1 + $0x438] sm:$0xff]
  %v198 = vld [vmem:[%s1 + $0x440] sm:$0xff]
  %v199 = vld [vmem:[%s1 + $0x448] sm:$0xff]
  %v200 = vld [vmem:[%s1 + $0x450] sm:$0xff]
  %v201 = vld [vmem:[%s1 + $0x458] sm:$0xff]
  %v202 = vld [vmem:[%s1 + $0x460] sm:$0xff]
  %v203 = vld [vmem:[%s1 + $0x468] sm:$0xff]
  %v204 = vld [vmem:[%s1 + $0x470] sm:$0xff]
  %v205 = vld [vmem:[%s1 + $0x478] sm:$0xff]
  %v206 = vld [vmem:[%s1 + $0x480] sm:$0xff]
  %v207 = vld [vmem:[%s1 + $0x488] sm:$0xff]
  %v208 = vld [vmem:[%s1 + $0x490] sm:$0xff]
  %v209 = vld [vmem:[%s1 + $0x498] sm:$0xff]
  %v210 = vld [vmem:[%s1 + $0x4a0] sm:$0xff]
  %v211 = vld [vmem:[%s1 + $0x4a8] sm:$0xff]
  %v212 = vld [vmem:[%s1 + $0x4b0] sm:$0xff]
  %v213 = vld [vmem:[%s1 + $0x4b8] sm:$0xff]
  %v214 = vld [vmem:[%s1 + $0x4c0] sm:$0xff]
  %v215 = vld [vmem:[%s1 + $0x4c8] sm:$0xff]
  %v216 = vld [vmem:[%s1 + $0x4d0] sm:$0xff]
  %v217 = vld [vmem:[%s1 + $0x4d8] sm:$0xff]
  %v218 = vld [vmem:[%s1 + $0x4e0] sm:$0xff]
  %v219 = vld [vmem:[%s1 + $0x4e8] sm:$0xff]
  %v220 = vld [vmem:[%s1 + $0x4f0] sm:$0xff]
  %v221 = vld [vmem:[%s1 + $0x4f8] sm:$0xff]
  %v222 = vld [vmem:[%s1 + $0x500] sm:$0xff]
  %v223 = vld [vmem:[%s1 + $0x508] sm:$0xff]
  %v224 = vld [vmem:[%s1 + $0x510] sm:$0xff]
  %v225 = vld [vmem:[%s1 + $0x518] sm:$0xff]
  %v226 = vld [vmem:[%s1 + $0x520] sm:$0xff]
  %v227 = vld [vmem:[%s1 + $0x528] sm:$0xff]
  %v228 = vld [vmem:[%s1 + $0x530] sm:$0xff]
  %v229 = vld [vmem:[%s1 + $0x538] sm:$0xff]
  %v230 = vld [vmem:[%s1 + $0x540] sm:$0xff]
  %v231 = vld [vmem:[%s1 + $0x548] sm:$0xff]
  %v232 = vld [vmem:[%s1 + $0x550] sm:$0xff]
  %v233 = vld [vmem:[%s1 + $0x558] sm:$0xff]
  %v234 = vld [vmem:[%s1 + $0x560] sm:$0xff]
  %v235 = vld [vmem:[%s1 + $0x568] sm:$0xff]
  %v236 = vld [vmem:[%s1 + $0x570] sm:$0xff]
  %v237 = vld [vmem:[%s1 + $0x578] sm:$0xff]
  %v238 = vld [vmem:[%s1 + $0x580] sm:$0xff]
  %v239 = vld [vmem:[%s1 + $0x588] sm:$0xff]
  %v240 = vld [vmem:[%s1 + $0x590] sm:$0xff]
  %v241 = vld [vmem:[%s1 + $0x598] sm:$0xff]
  %v242 = vld [vmem:[%s1 + $0x5a0] sm:$0xff]
  %v243 = vld [vmem:[%s1 + $0x5a8] sm:$0xff]
  %v244 = vld [vmem:[%s1 + $0x5b0] sm:$0xff]
  %v245 = vld [vmem:[%s1 + $0x5b8] sm:$0xff]
  %v246 = vld [vmem:[%s1 + $0x5c0] sm:$0xff]
  %v247 = vld [vmem:[%s1 + $0x5c8] sm:$0xff]
  %v248 = vld [vmem:[%s1 + $0x5d0] sm:$0xff]
  %v249 = vld [vmem:[%s1 + $0x5d8] sm:$0xff]
  %v250 = vld [vmem:[%s1 + $0x5e0] sm:$0xff]
  %v251 = vld [vmem:[%s1 + $0x5e8] sm:$0xff]
  %v252 = vld [vmem:[%s1 + $0x5f0] sm:$0xff]
  %v253 = vld [vmem:[%s1 + $0x5f8] sm:$0xff]
  %v254 = vld [vmem:[%s1 + $0x600] sm:$0xff]
  %v255 = vld [vmem:[%s1 + $0x608] sm:$0xff]
  %v256 = vld [vmem:[%s1 + $0x610] sm:$0xff]
  %v257 = vld [vmem:[%s1 + $0x618] sm:$0xff]
  %v258 = vld [vmem:[%s1 + $0x620] sm:$0xff]
  %v259 = vld [vmem:[%s1 + $0x628] sm:$0xff]
  %v260 = vld [vmem:[%s1 + $0x630] sm:$0xff]
  %v261 = vld [vmem:[%s1 + $0x638] sm:$0xff]
  %v262 = vld [vmem:[%s1 + $0x640] sm:$0xff]
  %v263 = vld [vmem:[%s1 + $0x648] sm:$0xff]
  %v264 = vld [vmem:[%s1 + $0x650] sm:$0xff]
  %v265 = vld [vmem:[%s1 + $0x658] sm:$0xff]
  %v266 = vld [vmem:[%s1 + $0x660] sm:$0xff]
  %v267 = vld [vmem:[%s1 + $0x668] sm:$0xff]
  %v268 = vld [vmem:[%s1 + $0x670] sm:$0xff]
  %v269 = vld [vmem:[%s1 + $0x678] sm:$0xff]
  %v270 = vld [vmem:[%s1 + $0x680] sm:$0xff]
  %v271 = vld [vmem:[%s1 + $0x688] sm:$0xff]
  %v272 = vld [vmem:[%s1 + $0x690] sm:$0xff]
  %v273 = vld [vmem:[%s1 + $0x698] sm:$0xff]
  %v274 = vld [vmem:[%s1 + $0x6a0] sm:$0xff]
  %v275 = vld [vmem:[%s1 + $0x6a8] sm:$0xff]
  %v276 = vld [vmem:[%s1 + $0x6b0] sm:$0xff]
  %v277 = vld [vmem:[%s1 + $0x6b8] sm:$0xff]
  %v278 = vld [vmem:[%s1 + $0x6c0] sm:$0xff]
  %v279 = vld [vmem:[%s1 + $0x6c8] sm:$0xff]
  %v280 = vld [vmem:[%s1 + $0x6d0] sm:$0xff]
  %v281 = vld [vmem:[%s1 + $0x6d8] sm:$0xff]
  %v282 = vld [vmem:[%s1 + $0x6e0] sm:$0xff]
  %v283 = vld [vmem:[%s1 + $0x6e8] sm:$0xff]
  %v284 = vld [vmem:[%s1 + $0x6f0] sm:$0xff]
  %v285 = vld [vmem:[%s1 + $0x6f8] sm:$0xff]
  %v286 = vld [vmem:[%s1 + $0x700] sm:$0xff]
  %v287 = vld [vmem:[%s1 + $0x708] sm:$0xff]
  %v288 = vld [vmem:[%s1 + $0x710] sm:$0xff]
  %v289 = vld [vmem:[%s1 + $0x718] sm:$0xff]
  %v290 = vld [vmem:[%s1 + $0x720] sm:$0xff]
  %v291 = vld [vmem:[%s1 + $0x728] sm:$0xff]
  %v292 = vld [vmem:[%s1 + $0x730] sm:$0xff]
  %v293 = vld [vmem:[%s1 + $0x738] sm:$0xff]
  %v294 = vld [vmem:[%s1 + $0x740] sm:$0xff]
  %v295 = vld [vmem:[%s1 + $0x748] sm:$0xff]
  %v296 = vld [vmem:[%s1 + $0x750] sm:$0xff]
  %v297 = vld [vmem:[%s1 + $0x758] sm:$0xff]
  %v298 = vld [vmem:[%s1 + $0x760] sm:$0xff]
  %v299 = vld [vmem:[%s1 + $0x768] sm:$0xff]
  %v300 = vld [vmem:[%s1 + $0x770] sm:$0xff]
  %v301 = vld [vmem:[%s1 + $0x778] sm:$0xff]
  %v302 = vld [vmem:[%s1 + $0x780] sm:$0xff]
  %v303 = vld [vmem:[%s1 + $0x788] sm:$0xff]
  %v304 = vld [vmem:[%s1 + $0x790] sm:$0xff]
  %v305 = vld [vmem:[%s1 + $0x798] sm:$0xff]
  %v306 = vld [vmem:[%s1 + $0x7a0] sm:$0xff]
  %v307 = vld [vmem:[%s1 + $0x7a8] sm:$0xff]
  %v308 = vld [vmem:[%s1 + $0x7b0] sm:$0xff]
  %v309 = vld [vmem:[%s1 + $0x7b8] sm:$0xff]
  %v310 = vld [vmem:[%s1 + $0x7c0] sm:$0xff]
  %v311 = vld [vmem:[%s1 + $0x7c8] sm:$0xff]
  %v312 = vld [vmem:[%s1 + $0x7d0] sm:$0xff]
  %v313 = vld [vmem:[%s1 + $0x7d8] sm:$0xff]
  %v314 = vld [vmem:[%s1 + $0x7e0] sm:$0xff]
  %v315 = vld [vmem:[%s1 + $0x7e8] sm:$0xff]
  %v316 = vld [vmem:[%s1 + $0x7f0] sm:$0xff]
  %v317 = vld [vmem:[%s1 + $0x7f8] sm:$0xff]
  %v318 = vld [vmem:[%s1 + $0x800] sm:$0xff]
  %v319 = vld [vmem:[%s1 + $0x808] sm:$0xff]
  %v320 = vld [vmem:[%s1 + $0x810] sm:$0xff]
  %v321 = vld [vmem:[%s1 + $0x818] sm:$0xff]
  %v322 = vld [vmem:[%s1 + $0x820] sm:$0xff]
  %v323 = vld [vmem:[%s1 + $0x828] sm:$0xff]
  %v324 = vld [vmem:[%s1 + $0x830] sm:$0xff]
  %v325 = vld [vmem:[%s1 + $0x838] sm:$0xff]
  %v326 = vld [vmem:[%s1 + $0x840] sm:$0xff]
  %v327 = vld [vmem:[%s1 + $0x848] sm:$0xff]
  %v328 = vld [vmem:[%s1 + $0x850] sm:$0xff]
  %v329 = vld [vmem:[%s1 + $0x858] sm:$0xff]
  %v330 = vld [vmem:[%s1 + $0x860] sm:$0xff]
  %v331 = vld [vmem:[%s1 + $0x868] sm:$0xff]
  %v332 = vld [vmem:[%s1 + $0x870] sm:$0xff]
  %v333 = vld [vmem:[%s1 + $0x878] sm:$0xff]
  %v334 = vld [vmem:[%s1 + $0x880] sm:$0xff]
  %v335 = vld [vmem:[%s1 + $0x888] sm:$0xff]
  %v336 = vld [vmem:[%s1 + $0x890] sm:$0xff]
  %v337 = vld [vmem:[%s1 + $0x898] sm:$0xff]
  %v338 = vld [vmem:[%s1 + $0x8a0] sm:$0xff]
  %v339 = vld [vmem:[%s1 + $0x8a8] sm:$0xff]
  %v340 = vld [vmem:[%s1 + $0x8b0] sm:$0xff]
  %v341 = vld [vmem:[%s1 + $0x8b8] sm:$0xff]
  %v342 = vld [vmem:[%s1 + $0x8c0] sm:$0xff]
  %v343 = vld [vmem:[%s1 + $0x8c8] sm:$0xff]
  %v344 = vld [vmem:[%s1 + $0x8d0] sm:$0xff]
  %v345 = vld [vmem:[%s1 + $0x8d8] sm:$0xff]
  %v346 = vld [vmem:[%s1 + $0x8e0] sm:$0xff]
  %v347 = vld [vmem:[%s1 + $0x8e8] sm:$0xff]
  %v348 = vld [vmem:[%s1 + $0x8f0] sm:$0xff]
  %v349 = vld [vmem:[%s1 + $0x8f8] sm:$0xff]
  %v350 = vld [vmem:[%s1 + $0x900] sm:$0xff]
  %v351 = vld [vmem:[%s1 + $0x908] sm:$0xff]
  %v352 = vld [vmem:[%s1 + $0x910] sm:$0xff]
  %v353 = vld [vmem:[%s1 + $0x918] sm:$0xff]
  %v354 = vld [vmem:[%s1 + $0x920] sm:$0xff]
  %v355 = vld [vmem:[%s1 + $0x928] sm:$0xff]
  %v356 = vld [vmem:[%s1 + $0x930] sm:$0xff]
  %v357 = vld [vmem:[%s1 + $0x938] sm:$0xff]
  %v358 = vld [vmem:[%s1 + $0x940] sm:$0xff]
  %v359 = vld [vmem:[%s1 + $0x948] sm:$0xff]
  %v360 = vld [vmem:[%s1 + $0x950] sm:$0xff]
  %v361 = vld [vmem:[%s1 + $0x958] sm:$0xff]
  %v362 = vld [vmem:[%s1 + $0x960] sm:$0xff]
  %v363 = vld [vmem:[%s1 + $0x968] sm:$0xff]
  %v364 = vld [vmem:[%s1 + $0x970] sm:$0xff]
  %v365 = vld [vmem:[%s1 + $0x978] sm:$0xff]
  %v366 = vld [vmem:[%s1 + $0x980] sm:$0xff]
  %v367 = vld [vmem:[%s1 + $0x988] sm:$0xff]
  %v368 = vld [vmem:[%s1 + $0x990] sm:$0xff]
  %v369 = vld [vmem:[%s1 + $0x998] sm:$0xff]
  %v370 = vld [vmem:[%s1 + $0x9a0] sm:$0xff]
  %v371 = vld [vmem:[%s1 + $0x9a8] sm:$0xff]
  %v372 = vld [vmem:[%s1 + $0x9b0] sm:$0xff]
  %v373 = vld [vmem:[%s1 + $0x9b8] sm:$0xff]
  %v374 = vld [vmem:[%s1 + $0x9c0] sm:$0xff]
  %v375 = vld [vmem:[%s1 + $0x9c8] sm:$0xff]
  %v376 = vld [vmem:[%s1 + $0x9d0] sm:$0xff]
  %v377 = vld [vmem:[%s1 + $0x9d8] sm:$0xff]
  %v378 = vld [vmem:[%s1 + $0x9e0] sm:$0xff]
  %v379 = vld [vmem:[%s1 + $0x9e8] sm:$0xff]
  %v380 = vld [vmem:[%s1 + $0x9f0] sm:$0xff]
  %v381 = vld [vmem:[%s1 + $0x9f8] sm:$0xff]
  %v382 = vld [vmem:[%s1 + $0xa00] sm:$0xff]
  %v383 = vld [vmem:[%s1 + $0xa08] sm:$0xff]
  %v384 = vld [vmem:[%s1 + $0xa10] sm:$0xff]
  %v385 = vld [vmem:[%s1 + $0xa18] sm:$0xff]
  %v386 = vld [vmem:[%s1 + $0xa20] sm:$0xff]
  %v387 = vld [vmem:[%s1 + $0xa28] sm:$0xff]
  %v388 = vld [vmem:[%s1 + $0xa30] sm:$0xff]
  %v389 = vld [vmem:[%s1 + $0xa38] sm:$0xff]
  %v390 = vld [vmem:[%s1 + $0xa40] sm:$0xff]
  %v391 = vld [vmem:[%s1 + $0xa48] sm:$0xff]
  %v392 = vld [vmem:[%s1 + $0xa50] sm:$0xff]
  %v393 = vld [vmem:[%s1 + $0xa58] sm:$0xff]
  %v394 = vld [vmem:[%s1 + $0xa60] sm:$0xff]
  %v395 = vld [vmem:[%s1 + $0xa68] sm:$0xff]
  %v396 = vld [vmem:[%s1 + $0xa70] sm:$0xff]
  %v397 = vld [vmem:[%s1 + $0xa78] sm:$0xff]
  %v398 = vld [vmem:[%s1 + $0xa80] sm:$0xff]
  %v399 = vld [vmem:[%s1 + $0xa88] sm:$0xff]
  %v400 = vld [vmem:[%s1 + $0xa90] sm:$0xff]
  %v401 = vld [vmem:[%s1 + $0xa98] sm:$0xff]
  %v402 = vld [vmem:[%s1 + $0xaa0] sm:$0xff]
  %v403 = vld [vmem:[%s1 + $0xaa8] sm:$0xff]
  %v404 = vld [vmem:[%s1 + $0xab0] sm:$0xff]
  %v405 = vld [vmem:[%s1 + $0xab8] sm:$0xff]
  %v406 = vld [vmem:[%s1 + $0xac0] sm:$0xff]
  %v407 = vld [vmem:[%s1 + $0xac8] sm:$0xff]
  %v408 = vld [vmem:[%s1 + $0xad0] sm:$0xff]
  %v409 = vld [vmem:[%s1 + $0xad8] sm:$0xff]
  %v410 = vld [vmem:[%s1 + $0xae0] sm:$0xff]
  %v411 = vld [vmem:[%s1 + $0xae8] sm:$0xff]
  %v412 = vld [vmem:[%s1 + $0xaf0] sm:$0xff]
  %v413 = vld [vmem:[%s1 + $0xaf8] sm:$0xff]
  %v414 = vld [vmem:[%s1 + $0xb00] sm:$0xff]
  %v415 = vld [vmem:[%s1 + $0xb08] sm:$0xff]
  %v416 = vld [vmem:[%s1 + $0xb10] sm:$0xff]
  %v417 = vld [vmem:[%s1 + $0xb18] sm:$0xff]
  %v418 = vld [vmem:[%s1 + $0xb20] sm:$0xff]
  %v419 = vld [vmem:[%s1 + $0xb28] sm:$0xff]
  %v420 = vld [vmem:[%s1 + $0xb30] sm:$0xff]
  %v421 = vld [vmem:[%s1 + $0xb38] sm:$0xff]
  %v422 = vld [vmem:[%s1 + $0xb40] sm:$0xff]
  %v423 = vld [vmem:[%s1 + $0xb48] sm:$0xff]
  %v424 = vld [vmem:[%s1 + $0xb50] sm:$0xff]
  %v425 = vld [vmem:[%s1 + $0xb58] sm:$0xff]
  %v426 = vld [vmem:[%s2] sm:$0xff]
  %v427 = vld [vmem:[%s2 + $0x8] sm:$0xff]
  %v428 = vld [vmem:[%s2 + $0x10] sm:$0xff]
  %v429 = vld [vmem:[%s2 + $0x18] sm:$0xff]
  %431 = vset.pattern.permute.xlu0 0
  %432 = vperm.xlu0 %431, %v426
  %v433 = vpop.permute.xlu0 %432
  %436 = vset.pattern.permute.xlu0 0
  %437 = vperm.xlu0 %436, %v427
  %v438 = vpop.permute.xlu0 %437
  %441 = vset.pattern.permute.xlu0 0
  %442 = vperm.xlu0 %441, %v428
  %v443 = vpop.permute.xlu0 %442
  %446 = vset.pattern.permute.xlu0 0
  %447 = vperm.xlu0 %446, %v429
  %v448 = vpop.permute.xlu0 %447
  %vm450 = vcmask 392192
  %v452 = vsel %vm450, %v25, 0
  %v455 = vsel %vm450, %v37, 0
  %v458 = vsel %vm450, %v49, 0
  %v461 = vsel %vm450, %v61, 0
  %463 = vmatprep.subr.mxu0 %v63
  %464 = vmatpush1.msra.mxu0 %v62
  %465 = vmatprep.subr.mxu0 %v65
  %466 = vmatpush1.msra.mxu0 %v64
  %467 = vmatprep.subr.mxu0 %v67
  %468 = vmatpush1.msra.mxu0 %v66
  %469 = vmatprep.subr.mxu0 %v69
  %470 = vmatpush1.msra.mxu0 %v68
  %471 = vmatprep.subr.mxu0 %v71
  %472 = vmatpush1.msra.mxu0 %v70
  %473 = vmatprep.subr.mxu0 %v73
  %474 = vmatpush1.msra.mxu0 %v72
  %475 = vmatprep.subr.mxu0 %v75
  %476 = vmatpush1.msra.mxu0 %v74
  %477 = vmatprep.subr.mxu0 %v77
  %478 = vmatpush1.msra.mxu0 %v76
  %479 = vmatprep.subr.mxu0 %v79
  %480 = vmatpush1.msra.mxu0 %v78
  %481 = vmatprep.subr.mxu0 %v81
  %482 = vmatpush1.msra.mxu0 %v80
  %483 = vmatprep.subr.mxu0 %v83
  %484 = vmatpush1.msra.mxu0 %v82
  %485 = vmatprep.subr.mxu0 %v85
  %486 = vmatpush1.msra.mxu0 %v84
  %487 = vmatprep.subr.mxu0 %v87
  %488 = vmatpush1.msra.mxu0 %v86
  %489 = vmatprep.subr.mxu0 %v89
  %490 = vmatpush1.msra.mxu0 %v88
  %491 = vmatprep.subr.mxu0 %v91
  %492 = vmatpush1.msra.mxu0 %v90
  %493 = vmatprep.subr.mxu0 %v93
  %494 = vmatpush1.msra.mxu0 %v92
  %495 = vmatprep.subr.mxu0 %v95
  %496 = vmatpush1.msra.mxu0 %v94
  %497 = vmatprep.subr.mxu0 %v97
  %498 = vmatpush1.msra.mxu0 %v96
  %499 = vmatprep.subr.mxu0 %v99
  %500 = vmatpush1.msra.mxu0 %v98
  %501 = vmatprep.subr.mxu0 %v101
  %502 = vmatpush1.msra.mxu0 %v100
  %503 = vmatprep.subr.mxu0 %v103
  %504 = vmatpush1.msra.mxu0 %v102
  %505 = vmatprep.subr.mxu0 %v105
  %506 = vmatpush1.msra.mxu0 %v104
  %507 = vmatprep.subr.mxu0 %v107
  %508 = vmatpush1.msra.mxu0 %v106
  %509 = vmatprep.subr.mxu0 %v109
  %510 = vmatpush1.msra.mxu0 %v108
  %511 = vmatprep.subr.mxu0 %v111
  %512 = vmatpush1.msra.mxu0 %v110
  %513 = vmatprep.subr.mxu0 %v113
  %514 = vmatpush1.msra.mxu0 %v112
  %515 = vmatprep.subr.mxu0 %v115
  %516 = vmatpush1.msra.mxu0 %v114
  %517 = vmatprep.subr.mxu0 %v117
  %518 = vmatpush1.msra.mxu0 %v116
  %519 = vmatprep.subr.mxu0 %v119
  %520 = vmatpush1.msra.mxu0 %v118
  %521 = vmatprep.subr.mxu0 %v121
  %522 = vmatpush1.msra.mxu0 %v120
  %523 = vmatprep.subr.mxu0 %v123
  %524 = vmatpush1.msra.mxu0 %v122
  %525 = vmatprep.subr.mxu0 %v125
  %526 = vmatpush1.msra.mxu0 %v124
  %527 = vmatprep.mubr.f32.mxu0 %v15
  %528 = vmatmul.mubr.f32.gmra.mrb[0].mxu0 %v14
  %v529 = vpop.f32.mrb[0].mxu0
  %v530 = vadd.f32 %v433, %v529
  %v531 = vpop.f32.mrb[0].mxu0
  %v532 = vadd.f32 %v433, %v531
  %533 = vmatprep.mubr.f32.mxu0 %v27
  %534 = vmatmul.mubr.f32.gmra.mrb[0].mxu0 %v26
  %v535 = vpop.f32.mrb[0].mxu0
  %v536 = vadd.f32 %v438, %v535
  %v537 = vpop.f32.mrb[0].mxu0
  %v538 = vadd.f32 %v438, %v537
  %539 = vmatprep.mubr.f32.mxu0 %v39
  %540 = vmatmul.mubr.f32.gmra.mrb[0].mxu0 %v38
  %v541 = vpop.f32.mrb[0].mxu0
  %v542 = vadd.f32 %v443, %v541
  %v543 = vpop.f32.mrb[0].mxu0
  %v544 = vadd.f32 %v443, %v543
  %545 = vmatprep.mubr.f32.mxu0 %v51
  %546 = vmatmul.mubr.f32.gmra.mrb[0].mxu0 %v50
  %v547 = vpop.f32.mrb[0].mxu0
  %v548 = vadd.f32 %v448, %v547
  %v549 = vpop.f32.mrb[0].mxu0
  %v550 = vadd.f32 %v448, %v549
  %551 = vdwg.mxu0
  %552 = vmatprep.subr.mxu0 %v127
  %553 = vmatpush1.msra.mxu0 %v126
  %554 = vmatprep.subr.mxu0 %v129
  %555 = vmatpush1.msra.mxu0 %v128
  %556 = vmatprep.subr.mxu0 %v131
  %557 = vmatpush1.msra.mxu0 %v130
  %558 = vmatprep.subr.mxu0 %v133
  %559 = vmatpush1.msra.mxu0 %v132
  %560 = vmatprep.subr.mxu0 %v135
  %561 = vmatpush1.msra.mxu0 %v134
  %562 = vmatprep.subr.mxu0 %v137
  %563 = vmatpush1.msra.mxu0 %v136
  %564 = vmatprep.subr.mxu0 %v139
  %565 = vmatpush1.msra.mxu0 %v138
  %566 = vmatprep.subr.mxu0 %v141
  %567 = vmatpush1.msra.mxu0 %v140
  %568 = vmatprep.subr.mxu0 %v143
  %569 = vmatpush1.msra.mxu0 %v142
  %570 = vmatprep.subr.mxu0 %v145
  %571 = vmatpush1.msra.mxu0 %v144
  %572 = vmatprep.subr.mxu0 %v147
  %573 = vmatpush1.msra.mxu0 %v146
  %574 = vmatprep.subr.mxu0 %v149
  %575 = vmatpush1.msra.mxu0 %v148
  %576 = vmatprep.subr.mxu0 %v151
  %577 = vmatpush1.msra.mxu0 %v150
  %578 = vmatprep.subr.mxu0 %v153
  %579 = vmatpush1.msra.mxu0 %v152
  %580 = vmatprep.subr.mxu0 %v155
  %581 = vmatpush1.msra.mxu0 %v154
  %582 = vmatprep.subr.mxu0 %v157
  %583 = vmatpush1.msra.mxu0 %v156
  %584 = vmatprep.subr.mxu0 %v159
  %585 = vmatpush1.msra.mxu0 %v158
  %586 = vmatprep.subr.mxu0 %v161
  %587 = vmatpush1.msra.mxu0 %v160
  %588 = vmatprep.subr.mxu0 %v163
  %589 = vmatpush1.msra.mxu0 %v162
  %590 = vmatprep.subr.mxu0 %v165
  %591 = vmatpush1.msra.mxu0 %v164
  %592 = vmatprep.subr.mxu0 %v167
  %593 = vmatpush1.msra.mxu0 %v166
  %594 = vmatprep.subr.mxu0 %v169
  %595 = vmatpush1.msra.mxu0 %v168
  %596 = vmatprep.subr.mxu0 %v171
  %597 = vmatpush1.msra.mxu0 %v170
  %598 = vmatprep.subr.mxu0 %v173
  %599 = vmatpush1.msra.mxu0 %v172
  %600 = vmatprep.subr.mxu0 %v175
  %601 = vmatpush1.msra.mxu0 %v174
  %602 = vmatprep.subr.mxu0 %v177
  %603 = vmatpush1.msra.mxu0 %v176
  %604 = vmatprep.subr.mxu0 %v179
  %605 = vmatpush1.msra.mxu0 %v178
  %606 = vmatprep.subr.mxu0 %v181
  %607 = vmatpush1.msra.mxu0 %v180
  %608 = vmatprep.subr.mxu0 %v183
  %609 = vmatpush1.msra.mxu0 %v182
  %610 = vmatprep.subr.mxu0 %v185
  %611 = vmatpush1.msra.mxu0 %v184
  %612 = vmatprep.subr.mxu0 %v187
  %613 = vmatpush1.msra.mxu0 %v186
  %614 = vmatprep.subr.mxu0 %v189
  %615 = vmatpush1.msra.mxu0 %v188
  %616 = vmatprep.mubr.f32.mxu0 %v17
  %617 = vmatmul.mubr.f32.gmra.mrb[0].mxu0 %v16
  %v618 = vpop.f32.mrb[0].mxu0
  %v619 = vadd.f32 %v530, %v618
  %v620 = vpop.f32.mrb[0].mxu0
  %v621 = vadd.f32 %v532, %v620
  %622 = vmatprep.mubr.f32.mxu0 %v29
  %623 = vmatmul.mubr.f32.gmra.mrb[0].mxu0 %v28
  %v624 = vpop.f32.mrb[0].mxu0
  %v625 = vadd.f32 %v536, %v624
  %v626 = vpop.f32.mrb[0].mxu0
  %v627 = vadd.f32 %v538, %v626
  %628 = vmatprep.mubr.f32.mxu0 %v41
  %629 = vmatmul.mubr.f32.gmra.mrb[0].mxu0 %v40
  %v630 = vpop.f32.mrb[0].mxu0
  %v631 = vadd.f32 %v542, %v630
  %v632 = vpop.f32.mrb[0].mxu0
  %v633 = vadd.f32 %v544, %v632
  %634 = vmatprep.mubr.f32.mxu0 %v53
  %635 = vmatmul.mubr.f32.gmra.mrb[0].mxu0 %v52
  %v636 = vpop.f32.mrb[0].mxu0
  %v637 = vadd.f32 %v548, %v636
  %v638 = vpop.f32.mrb[0].mxu0
  %v639 = vadd.f32 %v550, %v638
  %640 = vdwg.mxu0
  %641 = vmatprep.subr.mxu0 %v191
  %642 = vmatpush1.msra.mxu0 %v190
  %643 = vmatprep.subr.mxu0 %v193
  %644 = vmatpush1.msra.mxu0 %v192
  %645 = vmatprep.subr.mxu0 %v195
  %646 = vmatpush1.msra.mxu0 %v194
  %647 = vmatprep.subr.mxu0 %v197
  %648 = vmatpush1.msra.mxu0 %v196
  %649 = vmatprep.subr.mxu0 %v199
  %650 = vmatpush1.msra.mxu0 %v198
  %651 = vmatprep.subr.mxu0 %v201
  %652 = vmatpush1.msra.mxu0 %v200
  %653 = vmatprep.subr.mxu0 %v203
  %654 = vmatpush1.msra.mxu0 %v202
  %655 = vmatprep.subr.mxu0 %v205
  %656 = vmatpush1.msra.mxu0 %v204
  %657 = vmatprep.subr.mxu0 %v207
  %658 = vmatpush1.msra.mxu0 %v206
  %659 = vmatprep.subr.mxu0 %v209
  %660 = vmatpush1.msra.mxu0 %v208
  %661 = vmatprep.subr.mxu0 %v211
  %662 = vmatpush1.msra.mxu0 %v210
  %663 = vmatprep.subr.mxu0 %v213
  %664 = vmatpush1.msra.mxu0 %v212
  %665 = vmatprep.subr.mxu0 %v215
  %666 = vmatpush1.msra.mxu0 %v214
  %667 = vmatprep.subr.mxu0 %v217
  %668 = vmatpush1.msra.mxu0 %v216
  %669 = vmatprep.subr.mxu0 %v219
  %670 = vmatpush1.msra.mxu0 %v218
  %671 = vmatprep.subr.mxu0 %v221
  %672 = vmatpush1.msra.mxu0 %v220
  %673 = vmatprep.subr.mxu0 %v223
  %674 = vmatpush1.msra.mxu0 %v222
  %675 = vmatprep.subr.mxu0 %v225
  %676 = vmatpush1.msra.mxu0 %v224
  %677 = vmatprep.subr.mxu0 %v227
  %678 = vmatpush1.msra.mxu0 %v226
  %679 = vmatprep.subr.mxu0 %v229
  %680 = vmatpush1.msra.mxu0 %v228
  %681 = vmatprep.subr.mxu0 %v231
  %682 = vmatpush1.msra.mxu0 %v230
  %683 = vmatprep.subr.mxu0 %v233
  %684 = vmatpush1.msra.mxu0 %v232
  %685 = vmatprep.subr.mxu0 %v235
  %686 = vmatpush1.msra.mxu0 %v234
  %687 = vmatprep.subr.mxu0 %v237
  %688 = vmatpush1.msra.mxu0 %v236
  %689 = vmatprep.subr.mxu0 %v239
  %690 = vmatpush1.msra.mxu0 %v238
  %691 = vmatprep.subr.mxu0 %v241
  %692 = vmatpush1.msra.mxu0 %v240
  %693 = vmatprep.subr.mxu0 %v243
  %694 = vmatpush1.msra.mxu0 %v242
  %695 = vmatprep.subr.mxu0 %v245
  %696 = vmatpush1.msra.mxu0 %v244
  %697 = vmatprep.subr.mxu0 %v247
  %698 = vmatpush1.msra.mxu0 %v246
  %699 = vmatprep.subr.mxu0 %v249
  %700 = vmatpush1.msra.mxu0 %v248
  %701 = vmatprep.subr.mxu0 %v251
  %702 = vmatpush1.msra.mxu0 %v250
  %703 = vmatprep.subr.mxu0 %v253
  %704 = vmatpush1.msra.mxu0 %v252
  %705 = vmatprep.mubr.f32.mxu0 %v19
  %706 = vmatmul.mubr.f32.gmra.mrb[0].mxu0 %v18
  %v707 = vpop.f32.mrb[0].mxu0
  %v708 = vadd.f32 %v619, %v707
  %v709 = vpop.f32.mrb[0].mxu0
  %v710 = vadd.f32 %v621, %v709
  %711 = vmatprep.mubr.f32.mxu0 %v31
  %712 = vmatmul.mubr.f32.gmra.mrb[0].mxu0 %v30
  %v713 = vpop.f32.mrb[0].mxu0
  %v714 = vadd.f32 %v625, %v713
  %v715 = vpop.f32.mrb[0].mxu0
  %v716 = vadd.f32 %v627, %v715
  %717 = vmatprep.mubr.f32.mxu0 %v43
  %718 = vmatmul.mubr.f32.gmra.mrb[0].mxu0 %v42
  %v719 = vpop.f32.mrb[0].mxu0
  %v720 = vadd.f32 %v631, %v719
  %v721 = vpop.f32.mrb[0].mxu0
  %v722 = vadd.f32 %v633, %v721
  %723 = vmatprep.mubr.f32.mxu0 %v55
  %724 = vmatmul.mubr.f32.gmra.mrb[0].mxu0 %v54
  %v725 = vpop.f32.mrb[0].mxu0
  %v726 = vadd.f32 %v637, %v725
  %v727 = vpop.f32.mrb[0].mxu0
  %v728 = vadd.f32 %v639, %v727
  %729 = vdwg.mxu0
  %730 = vmatprep.subr.mxu0 %v255
  %731 = vmatpush1.msra.mxu0 %v254
  %732 = vmatprep.subr.mxu0 %v257
  %733 = vmatpush1.msra.mxu0 %v256
  %734 = vmatprep.subr.mxu0 %v259
  %735 = vmatpush1.msra.mxu0 %v258
  %736 = vmatprep.subr.mxu0 %v261
  %737 = vmatpush1.msra.mxu0 %v260
  %738 = vmatprep.subr.mxu0 %v263
  %739 = vmatpush1.msra.mxu0 %v262
  %740 = vmatprep.subr.mxu0 %v265
  %741 = vmatpush1.msra.mxu0 %v264
  %742 = vmatprep.subr.mxu0 %v267
  %743 = vmatpush1.msra.mxu0 %v266
  %744 = vmatprep.subr.mxu0 %v269
  %745 = vmatpush1.msra.mxu0 %v268
  %746 = vmatprep.subr.mxu0 %v271
  %747 = vmatpush1.msra.mxu0 %v270
  %748 = vmatprep.subr.mxu0 %v273
  %749 = vmatpush1.msra.mxu0 %v272
  %750 = vmatprep.subr.mxu0 %v275
  %751 = vmatpush1.msra.mxu0 %v274
  %752 = vmatprep.subr.mxu0 %v277
  %753 = vmatpush1.msra.mxu0 %v276
  %754 = vmatprep.subr.mxu0 %v279
  %755 = vmatpush1.msra.mxu0 %v278
  %756 = vmatprep.subr.mxu0 %v281
  %757 = vmatpush1.msra.mxu0 %v280
  %758 = vmatprep.subr.mxu0 %v283
  %759 = vmatpush1.msra.mxu0 %v282
  %760 = vmatprep.subr.mxu0 %v285
  %761 = vmatpush1.msra.mxu0 %v284
  %762 = vmatprep.subr.mxu0 %v287
  %763 = vmatpush1.msra.mxu0 %v286
  %764 = vmatprep.subr.mxu0 %v289
  %765 = vmatpush1.msra.mxu0 %v288
  %766 = vmatprep.subr.mxu0 %v291
  %767 = vmatpush1.msra.mxu0 %v290
  %768 = vmatprep.subr.mxu0 %v293
  %769 = vmatpush1.msra.mxu0 %v292
  %770 = vmatprep.subr.mxu0 %v295
  %771 = vmatpush1.msra.mxu0 %v294
  %772 = vmatprep.subr.mxu0 %v297
  %773 = vmatpush1.msra.mxu0 %v296
  %774 = vmatprep.subr.mxu0 %v299
  %775 = vmatpush1.msra.mxu0 %v298
  %776 = vmatprep.subr.mxu0 %v301
  %777 = vmatpush1.msra.mxu0 %v300
  %778 = vmatprep.subr.mxu0 %v303
  %779 = vmatpush1.msra.mxu0 %v302
  %780 = vmatprep.subr.mxu0 %v305
  %781 = vmatpush1.msra.mxu0 %v304
  %782 = vmatprep.subr.mxu0 %v307
  %783 = vmatpush1.msra.mxu0 %v306
  %784 = vmatprep.subr.mxu0 %v309
  %785 = vmatpush1.msra.mxu0 %v308
  %786 = vmatprep.subr.mxu0 %v311
  %787 = vmatpush1.msra.mxu0 %v310
  %788 = vmatprep.subr.mxu0 %v313
  %789 = vmatpush1.msra.mxu0 %v312
  %790 = vmatprep.subr.mxu0 %v315
  %791 = vmatpush1.msra.mxu0 %v314
  %792 = vmatprep.subr.mxu0 %v317
  %793 = vmatpush1.msra.mxu0 %v316
  %794 = vmatprep.mubr.f32.mxu0 %v21
  %795 = vmatmul.mubr.f32.gmra.mrb[0].mxu0 %v20
  %v796 = vpop.f32.mrb[0].mxu0
  %v797 = vadd.f32 %v708, %v796
  %v798 = vpop.f32.mrb[0].mxu0
  %v799 = vadd.f32 %v710, %v798
  %800 = vmatprep.mubr.f32.mxu0 %v33
  %801 = vmatmul.mubr.f32.gmra.mrb[0].mxu0 %v32
  %v802 = vpop.f32.mrb[0].mxu0
  %v803 = vadd.f32 %v714, %v802
  %v804 = vpop.f32.mrb[0].mxu0
  %v805 = vadd.f32 %v716, %v804
  %806 = vmatprep.mubr.f32.mxu0 %v45
  %807 = vmatmul.mubr.f32.gmra.mrb[0].mxu0 %v44
  %v808 = vpop.f32.mrb[0].mxu0
  %v809 = vadd.f32 %v720, %v808
  %v810 = vpop.f32.mrb[0].mxu0
  %v811 = vadd.f32 %v722, %v810
  %812 = vmatprep.mubr.f32.mxu0 %v57
  %813 = vmatmul.mubr.f32.gmra.mrb[0].mxu0 %v56
  %v814 = vpop.f32.mrb[0].mxu0
  %v815 = vadd.f32 %v726, %v814
  %v816 = vpop.f32.mrb[0].mxu0
  %v817 = vadd.f32 %v728, %v816
  %818 = vdwg.mxu0
  %819 = vmatprep.subr.mxu0 %v319
  %820 = vmatpush1.msra.mxu0 %v318
  %821 = vmatprep.subr.mxu0 %v321
  %822 = vmatpush1.msra.mxu0 %v320
  %823 = vmatprep.subr.mxu0 %v323
  %824 = vmatpush1.msra.mxu0 %v322
  %825 = vmatprep.subr.mxu0 %v325
  %826 = vmatpush1.msra.mxu0 %v324
  %827 = vmatprep.subr.mxu0 %v327
  %828 = vmatpush1.msra.mxu0 %v326
  %829 = vmatprep.subr.mxu0 %v329
  %830 = vmatpush1.msra.mxu0 %v328
  %831 = vmatprep.subr.mxu0 %v331
  %832 = vmatpush1.msra.mxu0 %v330
  %833 = vmatprep.subr.mxu0 %v333
  %834 = vmatpush1.msra.mxu0 %v332
  %835 = vmatprep.subr.mxu0 %v335
  %836 = vmatpush1.msra.mxu0 %v334
  %837 = vmatprep.subr.mxu0 %v337
  %838 = vmatpush1.msra.mxu0 %v336
  %839 = vmatprep.subr.mxu0 %v339
  %840 = vmatpush1.msra.mxu0 %v338
  %841 = vmatprep.subr.mxu0 %v341
  %842 = vmatpush1.msra.mxu0 %v340
  %843 = vmatprep.subr.mxu0 %v343
  %844 = vmatpush1.msra.mxu0 %v342
  %845 = vmatprep.subr.mxu0 %v345
  %846 = vmatpush1.msra.mxu0 %v344
  %847 = vmatprep.subr.mxu0 %v347
  %848 = vmatpush1.msra.mxu0 %v346
  %849 = vmatprep.subr.mxu0 %v349
  %850 = vmatpush1.msra.mxu0 %v348
  %851 = vmatprep.subr.mxu0 %v351
  %852 = vmatpush1.msra.mxu0 %v350
  %853 = vmatprep.subr.mxu0 %v353
  %854 = vmatpush1.msra.mxu0 %v352
  %855 = vmatprep.subr.mxu0 %v355
  %856 = vmatpush1.msra.mxu0 %v354
  %857 = vmatprep.subr.mxu0 %v357
  %858 = vmatpush1.msra.mxu0 %v356
  %859 = vmatprep.subr.mxu0 %v359
  %860 = vmatpush1.msra.mxu0 %v358
  %861 = vmatprep.subr.mxu0 %v361
  %862 = vmatpush1.msra.mxu0 %v360
  %863 = vmatprep.subr.mxu0 %v363
  %864 = vmatpush1.msra.mxu0 %v362
  %865 = vmatprep.subr.mxu0 %v365
  %866 = vmatpush1.msra.mxu0 %v364
  %867 = vmatprep.subr.mxu0 %v367
  %868 = vmatpush1.msra.mxu0 %v366
  %869 = vmatprep.subr.mxu0 %v369
  %870 = vmatpush1.msra.mxu0 %v368
  %871 = vmatprep.subr.mxu0 %v371
  %872 = vmatpush1.msra.mxu0 %v370
  %873 = vmatprep.subr.mxu0 %v373
  %874 = vmatpush1.msra.mxu0 %v372
  %875 = vmatprep.subr.mxu0 %v375
  %876 = vmatpush1.msra.mxu0 %v374
  %877 = vmatprep.subr.mxu0 %v377
  %878 = vmatpush1.msra.mxu0 %v376
  %879 = vmatprep.subr.mxu0 %v379
  %880 = vmatpush1.msra.mxu0 %v378
  %881 = vmatprep.subr.mxu0 %v381
  %882 = vmatpush1.msra.mxu0 %v380
  %883 = vmatprep.mubr.f32.mxu0 %v23
  %884 = vmatmul.mubr.f32.gmra.mrb[0].mxu0 %v22
  %v885 = vpop.f32.mrb[0].mxu0
  %v886 = vadd.f32 %v797, %v885
  %v887 = vpop.f32.mrb[0].mxu0
  %v888 = vadd.f32 %v799, %v887
  %889 = vmatprep.mubr.f32.mxu0 %v35
  %890 = vmatmul.mubr.f32.gmra.mrb[0].mxu0 %v34
  %v891 = vpop.f32.mrb[0].mxu0
  %v892 = vadd.f32 %v803, %v891
  %v893 = vpop.f32.mrb[0].mxu0
  %v894 = vadd.f32 %v805, %v893
  %895 = vmatprep.mubr.f32.mxu0 %v47
  %896 = vmatmul.mubr.f32.gmra.mrb[0].mxu0 %v46
  %v897 = vpop.f32.mrb[0].mxu0
  %v898 = vadd.f32 %v809, %v897
  %v899 = vpop.f32.mrb[0].mxu0
  %v900 = vadd.f32 %v811, %v899
  %901 = vmatprep.mubr.f32.mxu0 %v59
  %902 = vmatmul.mubr.f32.gmra.mrb[0].mxu0 %v58
  %v903 = vpop.f32.mrb[0].mxu0
  %v904 = vadd.f32 %v815, %v903
  %v905 = vpop.f32.mrb[0].mxu0
  %v906 = vadd.f32 %v817, %v905
  %907 = vdwg.mxu0
  %908 = vmatprep.subr.mxu0 %v383
  %909 = vmatpush1.msra.mxu0 %v382
  %910 = vmatprep.subr.mxu0 %v385
  %911 = vmatpush1.msra.mxu0 %v384
  %912 = vmatprep.subr.mxu0 %v387
  %913 = vmatpush1.msra.mxu0 %v386
  %914 = vmatprep.subr.mxu0 %v389
  %915 = vmatpush1.msra.mxu0 %v388
  %916 = vmatprep.subr.mxu0 %v391
  %917 = vmatpush1.msra.mxu0 %v390
  %918 = vmatprep.subr.mxu0 %v393
  %919 = vmatpush1.msra.mxu0 %v392
  %920 = vmatprep.subr.mxu0 %v395
  %921 = vmatpush1.msra.mxu0 %v394
  %922 = vmatprep.subr.mxu0 %v397
  %923 = vmatpush1.msra.mxu0 %v396
  %924 = vmatprep.subr.mxu0 %v399
  %925 = vmatpush1.msra.mxu0 %v398
  %926 = vmatprep.subr.mxu0 %v401
  %927 = vmatpush1.msra.mxu0 %v400
  %928 = vmatprep.subr.mxu0 %v403
  %929 = vmatpush1.msra.mxu0 %v402
  %930 = vmatprep.subr.mxu0 %v405
  %931 = vmatpush1.msra.mxu0 %v404
  %932 = vmatprep.subr.mxu0 %v407
  %933 = vmatpush1.msra.mxu0 %v406
  %934 = vmatprep.subr.mxu0 %v409
  %935 = vmatpush1.msra.mxu0 %v408
  %936 = vmatprep.subr.mxu0 %v411
  %937 = vmatpush1.msra.mxu0 %v410
  %938 = vmatprep.subr.mxu0 %v413
  %939 = vmatpush1.msra.mxu0 %v412
  %940 = vmatprep.subr.mxu0 %v415
  %941 = vmatpush1.msra.mxu0 %v414
  %942 = vmatprep.subr.mxu0 %v417
  %943 = vmatpush1.msra.mxu0 %v416
  %944 = vmatprep.subr.mxu0 %v419
  %945 = vmatpush1.msra.mxu0 %v418
  %946 = vmatprep.subr.mxu0 %v421
  %947 = vmatpush1.msra.mxu0 %v420
  %948 = vmatprep.subr.mxu0 %v423
  %949 = vmatpush1.msra.mxu0 %v422
  %950 = vmatprep.subr.mxu0 %v425
  %951 = vmatpush1.msra.mxu0 %v424
  %952 = vmatprep.subr.mxu0 0.0
  %953 = vmatpush1.msra.mxu0 0.0
  %954 = vmatprep.subr.mxu0 0.0
  %955 = vmatpush1.msra.mxu0 0.0
  %956 = vmatprep.subr.mxu0 0.0
  %957 = vmatpush1.msra.mxu0 0.0
  %958 = vmatprep.subr.mxu0 0.0
  %959 = vmatpush1.msra.mxu0 0.0
  %960 = vmatprep.subr.mxu0 0.0
  %961 = vmatpush1.msra.mxu0 0.0
  %962 = vmatprep.subr.mxu0 0.0
  %963 = vmatpush1.msra.mxu0 0.0
  %964 = vmatprep.subr.mxu0 0.0
  %965 = vmatpush1.msra.mxu0 0.0
  %966 = vmatprep.subr.mxu0 0.0
  %967 = vmatpush1.msra.mxu0 0.0
  %968 = vmatprep.subr.mxu0 0.0
  %969 = vmatpush1.msra.mxu0 0.0
  %970 = vmatprep.subr.mxu0 0.0
  %971 = vmatpush1.msra.mxu0 0.0
  %972 = vmatprep.mubr.f32.mxu0 %v452
  %973 = vmatmul.mubr.f32.gmra.mrb[0].mxu0 %v24
  %v974 = vpop.f32.mrb[0].mxu0
  %v975 = vadd.f32 %v886, %v974
  %v976 = vpop.f32.mrb[0].mxu0
  %v977 = vadd.f32 %v888, %v976
  %978 = vmatprep.mubr.f32.mxu0 %v455
  %979 = vmatmul.mubr.f32.gmra.mrb[0].mxu0 %v36
  %v980 = vpop.f32.mrb[0].mxu0
  %v981 = vadd.f32 %v892, %v980
  %v982 = vpop.f32.mrb[0].mxu0
  %v983 = vadd.f32 %v894, %v982
  %984 = vmatprep.mubr.f32.mxu0 %v458
  %985 = vmatmul.mubr.f32.gmra.mrb[0].mxu0 %v48
  %v986 = vpop.f32.mrb[0].mxu0
  %v987 = vadd.f32 %v898, %v986
  %v988 = vpop.f32.mrb[0].mxu0
  %v989 = vadd.f32 %v900, %v988
  %990 = vmatprep.mubr.f32.mxu0 %v461
  %991 = vmatmul.mubr.f32.gmra.mrb[0].mxu0 %v60
  %v992 = vpop.f32.mrb[0].mxu0
  %v993 = vadd.f32 %v904, %v992
  %v994 = vpop.f32.mrb[0].mxu0
  %v995 = vadd.f32 %v906, %v994
  %996 = vdwg.mxu0
  %v997 = vmax.f32 %v975, 0.0
  %v998 = vmax.f32 %v977, 0.0
  %v999 = vmax.f32 %v981, 0.0
  %v1000 = vmax.f32 %v983, 0.0
  %v1001 = vmax.f32 %v987, 0.0
  %v1002 = vmax.f32 %v989, 0.0
  %v1003 = vmax.f32 %v993, 0.0
  %v1004 = vmax.f32 %v995, 0.0
  %1005 = vst [vmem:[%s3] sm:$0xff] %v997
  %vm1006 = vcmask 850944
  %1007 = vst.msk [vmem:[%s3 + $0x8] sm:$0xff] %vm1006, %v998
  %1008 = vst [vmem:[%s3 + $0x10] sm:$0xff] %v999
  %1009 = vst.msk [vmem:[%s3 + $0x18] sm:$0xff] %vm1006, %v1000
  %1010 = vst [vmem:[%s3 + $0x20] sm:$0xff] %v1001
  %1011 = vst.msk [vmem:[%s3 + $0x28] sm:$0xff] %vm1006, %v1002
  %1012 = vst [vmem:[%s3 + $0x30] sm:$0xff] %v1003
  %1013 = vst.msk [vmem:[%s3 + $0x38] sm:$0xff] %vm1006, %v1004
  // Predicated region
  $region14: #{cross_talk_conv_net_forward.4} parent=0 // pred_check
    _
  $region15: #{cross_talk_conv_net_forward.4} parent=0 // pred_check_branch
    %1015 = sbr.rel (0) target = $region17
  $region16: #{cross_talk_conv_net_forward.4} parent=0 // pred_region
    _
  $region17: #{cross_talk_conv_net_forward.4} parent=0 // pred_fallthru
    _
  // Predicated region
  $region18: #{cross_talk_conv_net_forward.4} parent=0 // pred_check
    _
  $region19: #{cross_talk_conv_net_forward.4} parent=0 // pred_check_branch
    %1017 = sbr.rel (0) target = $region21
  $region20: #{cross_talk_conv_net_forward.4} parent=0 // pred_region
    _
  $region21: #{cross_talk_conv_net_forward.4} parent=0 // pred_fallthru
    _

// kernel: cross_talk_conv_net_forward.5
$region0: #{cross_talk_conv_net_forward.5}
  #allocation0 [shape = 'u32[]', space=smem, size = 0x4, offset = 0x4, fixed_abs, tag = 'smem constant byte address 0x4 - core index']
  #allocation1 [shape = 'u32[144,128]{1,0:T(1,128)}', space=vmem, size = 0x12000, scoped, tag = 'internal scratch']
  %s0 = inlined_call_operand.vmem [shape: f32[8,1024], index: 0, kind: input, shape index: {}]
  %s1 = inlined_call_operand.vmem [shape: f32[1024,64], index: 1, kind: input, shape index: {}]
  %s2 = inlined_call_operand.vmem [shape: f32[1,64], index: 2, kind: input, shape index: {}]
  %s3 = inlined_call_operand.vmem [shape: f32[64,24], index: 3, kind: input, shape index: {}]
  %s4 = inlined_call_operand.vmem [shape: f32[1,24], index: 4, kind: input, shape index: {}]
  %s5 = inlined_call_operand.vmem [shape: f32[8,24], index: 5, kind: output, shape index: {}]
  %s6 = sld [smem:[#allocation0]]
  $region30: #{cross_talk_conv_net_forward.5} parent=0
    _
  %s8 = ssub.s32 1, %s6
  %s9 = scalar_select 0, %s8, %s6
  // Predicated region
  $region2: #{cross_talk_conv_net_forward.5} parent=0 // pred_check
    _
  $region3: #{cross_talk_conv_net_forward.5} parent=0 // pred_check_branch
    %11 = sbr.rel (0) target = $region5
  $region4: #{cross_talk_conv_net_forward.5} parent=0 // pred_region
    _
  $region5: #{cross_talk_conv_net_forward.5} parent=0 // pred_fallthru
    _
  // Predicated region
  $region6: #{cross_talk_conv_net_forward.5} parent=0 // pred_check
    _
  $region7: #{cross_talk_conv_net_forward.5} parent=0 // pred_check_branch
    %13 = sbr.rel (0) target = $region9
  $region8: #{cross_talk_conv_net_forward.5} parent=0 // pred_region
    _
  $region9: #{cross_talk_conv_net_forward.5} parent=0 // pred_fallthru
    _
  // Predicated region
  $region10: #{cross_talk_conv_net_forward.5} parent=0 // pred_check
    _
  $region11: #{cross_talk_conv_net_forward.5} parent=0 // pred_check_branch
    %15 = sbr.rel (0) target = $region13
  $region12: #{cross_talk_conv_net_forward.5} parent=0 // pred_region
    _
  $region13: #{cross_talk_conv_net_forward.5} parent=0 // pred_fallthru
    _
  // Predicated region
  $region14: #{cross_talk_conv_net_forward.5} parent=0 // pred_check
    _
  $region15: #{cross_talk_conv_net_forward.5} parent=0 // pred_check_branch
    %17 = sbr.rel (0) target = $region17
  $region16: #{cross_talk_conv_net_forward.5} parent=0 // pred_region
    _
  $region17: #{cross_talk_conv_net_forward.5} parent=0 // pred_fallthru
    _
  // Predicated region
  $region18: #{cross_talk_conv_net_forward.5} parent=0 // pred_check
    _
  $region19: #{cross_talk_conv_net_forward.5} parent=0 // pred_check_branch
    %19 = sbr.rel (0) target = $region21
  $region20: #{cross_talk_conv_net_forward.5} parent=0 // pred_region
    _
  $region21: #{cross_talk_conv_net_forward.5} parent=0 // pred_fallthru
    _
  %v20 = vld [vmem:[%s0] sm:$0xff]
  %v21 = vld [vmem:[%s0 + $0x8] sm:$0xff]
  %v22 = vld [vmem:[%s0 + $0x10] sm:$0xff]
  %v23 = vld [vmem:[%s0 + $0x18] sm:$0xff]
  %v24 = vld [vmem:[%s0 + $0x20] sm:$0xff]
  %v25 = vld [vmem:[%s0 + $0x28] sm:$0xff]
  %v26 = vld [vmem:[%s0 + $0x30] sm:$0xff]
  %v27 = vld [vmem:[%s0 + $0x38] sm:$0xff]
  %v28 = vld [vmem:[%s1] sm:$0xff]
  %v29 = vld [vmem:[%s1 + $0x8] sm:$0xff]
  %v30 = vld [vmem:[%s1 + $0x10] sm:$0xff]
  %v31 = vld [vmem:[%s1 + $0x18] sm:$0xff]
  %v32 = vld [vmem:[%s1 + $0x20] sm:$0xff]
  %v33 = vld [vmem:[%s1 + $0x28] sm:$0xff]
  %v34 = vld [vmem:[%s1 + $0x30] sm:$0xff]
  %v35 = vld [vmem:[%s1 + $0x38] sm:$0xff]
  %v36 = vld [vmem:[%s1 + $0x40] sm:$0xff]
  %v37 = vld [vmem:[%s1 + $0x48] sm:$0xff]
  %v38 = vld [vmem:[%s1 + $0x50] sm:$0xff]
  %v39 = vld [vmem:[%s1 + $0x58] sm:$0xff]
  %v40 = vld [vmem:[%s1 + $0x60] sm:$0xff]
  %v41 = vld [vmem:[%s1 + $0x68] sm:$0xff]
  %v42 = vld [vmem:[%s1 + $0x70] sm:$0xff]
  %v43 = vld [vmem:[%s1 + $0x78] sm:$0xff]
  %v44 = vld [vmem:[%s1 + $0x80] sm:$0xff]
  %v45 = vld [vmem:[%s1 + $0x88] sm:$0xff]
  %v46 = vld [vmem:[%s1 + $0x90] sm:$0xff]
  %v47 = vld [vmem:[%s1 + $0x98] sm:$0xff]
  %v48 = vld [vmem:[%s1 + $0xa0] sm:$0xff]
  %v49 = vld [vmem:[%s1 + $0xa8] sm:$0xff]
  %v50 = vld [vmem:[%s1 + $0xb0] sm:$0xff]
  %v51 = vld [vmem:[%s1 + $0xb8] sm:$0xff]
  %v52 = vld [vmem:[%s1 + $0xc0] sm:$0xff]
  %v53 = vld [vmem:[%s1 + $0xc8] sm:$0xff]
  %v54 = vld [vmem:[%s1 + $0xd0] sm:$0xff]
  %v55 = vld [vmem:[%s1 + $0xd8] sm:$0xff]
  %v56 = vld [vmem:[%s1 + $0xe0] sm:$0xff]
  %v57 = vld [vmem:[%s1 + $0xe8] sm:$0xff]
  %v58 = vld [vmem:[%s1 + $0xf0] sm:$0xff]
  %v59 = vld [vmem:[%s1 + $0xf8] sm:$0xff]
  %v60 = vld [vmem:[%s1 + $0x100] sm:$0xff]
  %v61 = vld [vmem:[%s1 + $0x108] sm:$0xff]
  %v62 = vld [vmem:[%s1 + $0x110] sm:$0xff]
  %v63 = vld [vmem:[%s1 + $0x118] sm:$0xff]
  %v64 = vld [vmem:[%s1 + $0x120] sm:$0xff]
  %v65 = vld [vmem:[%s1 + $0x128] sm:$0xff]
  %v66 = vld [vmem:[%s1 + $0x130] sm:$0xff]
  %v67 = vld [vmem:[%s1 + $0x138] sm:$0xff]
  %v68 = vld [vmem:[%s1 + $0x140] sm:$0xff]
  %v69 = vld [vmem:[%s1 + $0x148] sm:$0xff]
  %v70 = vld [vmem:[%s1 + $0x150] sm:$0xff]
  %v71 = vld [vmem:[%s1 + $0x158] sm:$0xff]
  %v72 = vld [vmem:[%s1 + $0x160] sm:$0xff]
  %v73 = vld [vmem:[%s1 + $0x168] sm:$0xff]
  %v74 = vld [vmem:[%s1 + $0x170] sm:$0xff]
  %v75 = vld [vmem:[%s1 + $0x178] sm:$0xff]
  %v76 = vld [vmem:[%s1 + $0x180] sm:$0xff]
  %v77 = vld [vmem:[%s1 + $0x188] sm:$0xff]
  %v78 = vld [vmem:[%s1 + $0x190] sm:$0xff]
  %v79 = vld [vmem:[%s1 + $0x198] sm:$0xff]
  %v80 = vld [vmem:[%s1 + $0x1a0] sm:$0xff]
  %v81 = vld [vmem:[%s1 + $0x1a8] sm:$0xff]
  %v82 = vld [vmem:[%s1 + $0x1b0] sm:$0xff]
  %v83 = vld [vmem:[%s1 + $0x1b8] sm:$0xff]
  %v84 = vld [vmem:[%s1 + $0x1c0] sm:$0xff]
  %v85 = vld [vmem:[%s1 + $0x1c8] sm:$0xff]
  %v86 = vld [vmem:[%s1 + $0x1d0] sm:$0xff]
  %v87 = vld [vmem:[%s1 + $0x1d8] sm:$0xff]
  %v88 = vld [vmem:[%s1 + $0x1e0] sm:$0xff]
  %v89 = vld [vmem:[%s1 + $0x1e8] sm:$0xff]
  %v90 = vld [vmem:[%s1 + $0x1f0] sm:$0xff]
  %v91 = vld [vmem:[%s1 + $0x1f8] sm:$0xff]
  %v92 = vld [vmem:[%s1 + $0x200] sm:$0xff]
  %v93 = vld [vmem:[%s1 + $0x208] sm:$0xff]
  %v94 = vld [vmem:[%s1 + $0x210] sm:$0xff]
  %v95 = vld [vmem:[%s1 + $0x218] sm:$0xff]
  %v96 = vld [vmem:[%s1 + $0x220] sm:$0xff]
  %v97 = vld [vmem:[%s1 + $0x228] sm:$0xff]
  %v98 = vld [vmem:[%s1 + $0x230] sm:$0xff]
  %v99 = vld [vmem:[%s1 + $0x238] sm:$0xff]
  %v100 = vld [vmem:[%s1 + $0x240] sm:$0xff]
  %v101 = vld [vmem:[%s1 + $0x248] sm:$0xff]
  %v102 = vld [vmem:[%s1 + $0x250] sm:$0xff]
  %v103 = vld [vmem:[%s1 + $0x258] sm:$0xff]
  %v104 = vld [vmem:[%s1 + $0x260] sm:$0xff]
  %v105 = vld [vmem:[%s1 + $0x268] sm:$0xff]
  %v106 = vld [vmem:[%s1 + $0x270] sm:$0xff]
  %v107 = vld [vmem:[%s1 + $0x278] sm:$0xff]
  %v108 = vld [vmem:[%s1 + $0x280] sm:$0xff]
  %v109 = vld [vmem:[%s1 + $0x288] sm:$0xff]
  %v110 = vld [vmem:[%s1 + $0x290] sm:$0xff]
  %v111 = vld [vmem:[%s1 + $0x298] sm:$0xff]
  %v112 = vld [vmem:[%s1 + $0x2a0] sm:$0xff]
  %v113 = vld [vmem:[%s1 + $0x2a8] sm:$0xff]
  %v114 = vld [vmem:[%s1 + $0x2b0] sm:$0xff]
  %v115 = vld [vmem:[%s1 + $0x2b8] sm:$0xff]
  %v116 = vld [vmem:[%s1 + $0x2c0] sm:$0xff]
  %v117 = vld [vmem:[%s1 + $0x2c8] sm:$0xff]
  %v118 = vld [vmem:[%s1 + $0x2d0] sm:$0xff]
  %v119 = vld [vmem:[%s1 + $0x2d8] sm:$0xff]
  %v120 = vld [vmem:[%s1 + $0x2e0] sm:$0xff]
  %v121 = vld [vmem:[%s1 + $0x2e8] sm:$0xff]
  %v122 = vld [vmem:[%s1 + $0x2f0] sm:$0xff]
  %v123 = vld [vmem:[%s1 + $0x2f8] sm:$0xff]
  %v124 = vld [vmem:[%s1 + $0x300] sm:$0xff]
  %v125 = vld [vmem:[%s1 + $0x308] sm:$0xff]
  %v126 = vld [vmem:[%s1 + $0x310] sm:$0xff]
  %v127 = vld [vmem:[%s1 + $0x318] sm:$0xff]
  %v128 = vld [vmem:[%s1 + $0x320] sm:$0xff]
  %v129 = vld [vmem:[%s1 + $0x328] sm:$0xff]
  %v130 = vld [vmem:[%s1 + $0x330] sm:$0xff]
  %v131 = vld [vmem:[%s1 + $0x338] sm:$0xff]
  %v132 = vld [vmem:[%s1 + $0x340] sm:$0xff]
  %v133 = vld [vmem:[%s1 + $0x348] sm:$0xff]
  %v134 = vld [vmem:[%s1 + $0x350] sm:$0xff]
  %v135 = vld [vmem:[%s1 + $0x358] sm:$0xff]
  %v136 = vld [vmem:[%s1 + $0x360] sm:$0xff]
  %v137 = vld [vmem:[%s1 + $0x368] sm:$0xff]
  %v138 = vld [vmem:[%s1 + $0x370] sm:$0xff]
  %v139 = vld [vmem:[%s1 + $0x378] sm:$0xff]
  %v140 = vld [vmem:[%s1 + $0x380] sm:$0xff]
  %v141 = vld [vmem:[%s1 + $0x388] sm:$0xff]
  %v142 = vld [vmem:[%s1 + $0x390] sm:$0xff]
  %v143 = vld [vmem:[%s1 + $0x398] sm:$0xff]
  %v144 = vld [vmem:[%s1 + $0x3a0] sm:$0xff]
  %v145 = vld [vmem:[%s1 + $0x3a8] sm:$0xff]
  %v146 = vld [vmem:[%s1 + $0x3b0] sm:$0xff]
  %v147 = vld [vmem:[%s1 + $0x3b8] sm:$0xff]
  %v148 = vld [vmem:[%s1 + $0x3c0] sm:$0xff]
  %v149 = vld [vmem:[%s1 + $0x3c8] sm:$0xff]
  %v150 = vld [vmem:[%s1 + $0x3d0] sm:$0xff]
  %v151 = vld [vmem:[%s1 + $0x3d8] sm:$0xff]
  %v152 = vld [vmem:[%s1 + $0x3e0] sm:$0xff]
  %v153 = vld [vmem:[%s1 + $0x3e8] sm:$0xff]
  %v154 = vld [vmem:[%s1 + $0x3f0] sm:$0xff]
  %v155 = vld [vmem:[%s1 + $0x3f8] sm:$0xff]
  %v156 = vld [vmem:[%s2] sm:$0x1]
  %v158 = vlaneseq
  %v159 = vshrl.u32 %v158, 7
  %v160 = vsub.s32 0, %v159
  %v161 = vrot.slane %v156, %v160
  %163 = vmatprep.subr.mxu0 0.0
  %164 = vmatpush1.msra.mxu0 %v28
  %165 = vmatprep.subr.mxu0 0.0
  %166 = vmatpush1.msra.mxu0 %v29
  %167 = vmatprep.subr.mxu0 0.0
  %168 = vmatpush1.msra.mxu0 %v30
  %169 = vmatprep.subr.mxu0 0.0
  %170 = vmatpush1.msra.mxu0 %v31
  %171 = vmatprep.subr.mxu0 0.0
  %172 = vmatpush1.msra.mxu0 %v32
  %173 = vmatprep.subr.mxu0 0.0
  %174 = vmatpush1.msra.mxu0 %v33
  %175 = vmatprep.subr.mxu0 0.0
  %176 = vmatpush1.msra.mxu0 %v34
  %177 = vmatprep.subr.mxu0 0.0
  %178 = vmatpush1.msra.mxu0 %v35
  %179 = vmatprep.subr.mxu0 0.0
  %180 = vmatpush1.msra.mxu0 %v36
  %181 = vmatprep.subr.mxu0 0.0
  %182 = vmatpush1.msra.mxu0 %v37
  %183 = vmatprep.subr.mxu0 0.0
  %184 = vmatpush1.msra.mxu0 %v38
  %185 = vmatprep.subr.mxu0 0.0
  %186 = vmatpush1.msra.mxu0 %v39
  %187 = vmatprep.subr.mxu0 0.0
  %188 = vmatpush1.msra.mxu0 %v40
  %189 = vmatprep.subr.mxu0 0.0
  %190 = vmatpush1.msra.mxu0 %v41
  %191 = vmatprep.subr.mxu0 0.0
  %192 = vmatpush1.msra.mxu0 %v42
  %193 = vmatprep.subr.mxu0 0.0
  %194 = vmatpush1.msra.mxu0 %v43
  %195 = vmatprep.subr.mxu0 0.0
  %196 = vmatpush1.msra.mxu0 %v44
  %197 = vmatprep.subr.mxu0 0.0
  %198 = vmatpush1.msra.mxu0 %v45
  %199 = vmatprep.subr.mxu0 0.0
  %200 = vmatpush1.msra.mxu0 %v46
  %201 = vmatprep.subr.mxu0 0.0
  %202 = vmatpush1.msra.mxu0 %v47
  %203 = vmatprep.subr.mxu0 0.0
  %204 = vmatpush1.msra.mxu0 %v48
  %205 = vmatprep.subr.mxu0 0.0
  %206 = vmatpush1.msra.mxu0 %v49
  %207 = vmatprep.subr.mxu0 0.0
  %208 = vmatpush1.msra.mxu0 %v50
  %209 = vmatprep.subr.mxu0 0.0
  %210 = vmatpush1.msra.mxu0 %v51
  %211 = vmatprep.subr.mxu0 0.0
  %212 = vmatpush1.msra.mxu0 %v52
  %213 = vmatprep.subr.mxu0 0.0
  %214 = vmatpush1.msra.mxu0 %v53
  %215 = vmatprep.subr.mxu0 0.0
  %216 = vmatpush1.msra.mxu0 %v54
  %217 = vmatprep.subr.mxu0 0.0
  %218 = vmatpush1.msra.mxu0 %v55
  %219 = vmatprep.subr.mxu0 0.0
  %220 = vmatpush1.msra.mxu0 %v56
  %221 = vmatprep.subr.mxu0 0.0
  %222 = vmatpush1.msra.mxu0 %v57
  %223 = vmatprep.subr.mxu0 0.0
  %224 = vmatpush1.msra.mxu0 %v58
  %225 = vmatprep.subr.mxu0 0.0
  %226 = vmatpush1.msra.mxu0 %v59
  %227 = vmatprep.mubr.f32.mxu0 %v21
  %228 = vmatmul.mubr.f32.gmra.mrb[0].mxu0 %v20
  %v229 = vpop.f32.mrb[0].mxu0
  %v230 = vadd.f32 %v161, %v229
  %v231 = vpop.f32.mrb[0].mxu0
  %232 = vdwg.mxu0
  %233 = vmatprep.subr.mxu0 0.0
  %234 = vmatpush1.msra.mxu0 %v60
  %235 = vmatprep.subr.mxu0 0.0
  %236 = vmatpush1.msra.mxu0 %v61
  %237 = vmatprep.subr.mxu0 0.0
  %238 = vmatpush1.msra.mxu0 %v62
  %239 = vmatprep.subr.mxu0 0.0
  %240 = vmatpush1.msra.mxu0 %v63
  %241 = vmatprep.subr.mxu0 0.0
  %242 = vmatpush1.msra.mxu0 %v64
  %243 = vmatprep.subr.mxu0 0.0
  %244 = vmatpush1.msra.mxu0 %v65
  %245 = vmatprep.subr.mxu0 0.0
  %246 = vmatpush1.msra.mxu0 %v66
  %247 = vmatprep.subr.mxu0 0.0
  %248 = vmatpush1.msra.mxu0 %v67
  %249 = vmatprep.subr.mxu0 0.0
  %250 = vmatpush1.msra.mxu0 %v68
  %251 = vmatprep.subr.mxu0 0.0
  %252 = vmatpush1.msra.mxu0 %v69
  %253 = vmatprep.subr.mxu0 0.0
  %254 = vmatpush1.msra.mxu0 %v70
  %255 = vmatprep.subr.mxu0 0.0
  %256 = vmatpush1.msra.mxu0 %v71
  %257 = vmatprep.subr.mxu0 0.0
  %258 = vmatpush1.msra.mxu0 %v72
  %259 = vmatprep.subr.mxu0 0.0
  %260 = vmatpush1.msra.mxu0 %v73
  %261 = vmatprep.subr.mxu0 0.0
  %262 = vmatpush1.msra.mxu0 %v74
  %263 = vmatprep.subr.mxu0 0.0
  %264 = vmatpush1.msra.mxu0 %v75
  %265 = vmatprep.subr.mxu0 0.0
  %266 = vmatpush1.msra.mxu0 %v76
  %267 = vmatprep.subr.mxu0 0.0
  %268 = vmatpush1.msra.mxu0 %v77
  %269 = vmatprep.subr.mxu0 0.0
  %270 = vmatpush1.msra.mxu0 %v78
  %271 = vmatprep.subr.mxu0 0.0
  %272 = vmatpush1.msra.mxu0 %v79
  %273 = vmatprep.subr.mxu0 0.0
  %274 = vmatpush1.msra.mxu0 %v80
  %275 = vmatprep.subr.mxu0 0.0
  %276 = vmatpush1.msra.mxu0 %v81
  %277 = vmatprep.subr.mxu0 0.0
  %278 = vmatpush1.msra.mxu0 %v82
  %279 = vmatprep.subr.mxu0 0.0
  %280 = vmatpush1.msra.mxu0 %v83
  %281 = vmatprep.subr.mxu0 0.0
  %282 = vmatpush1.msra.mxu0 %v84
  %283 = vmatprep.subr.mxu0 0.0
  %284 = vmatpush1.msra.mxu0 %v85
  %285 = vmatprep.subr.mxu0 0.0
  %286 = vmatpush1.msra.mxu0 %v86
  %287 = vmatprep.subr.mxu0 0.0
  %288 = vmatpush1.msra.mxu0 %v87
  %289 = vmatprep.subr.mxu0 0.0
  %290 = vmatpush1.msra.mxu0 %v88
  %291 = vmatprep.subr.mxu0 0.0
  %292 = vmatpush1.msra.mxu0 %v89
  %293 = vmatprep.subr.mxu0 0.0
  %294 = vmatpush1.msra.mxu0 %v90
  %295 = vmatprep.subr.mxu0 0.0
  %296 = vmatpush1.msra.mxu0 %v91
  %297 = vmatprep.mubr.f32.mxu0 %v23
  %298 = vmatmul.mubr.f32.gmra.mrb[0].mxu0 %v22
  %v299 = vpop.f32.mrb[0].mxu0
  %v300 = vadd.f32 %v230, %v299
  %v301 = vpop.f32.mrb[0].mxu0
  %302 = vdwg.mxu0
  %303 = vmatprep.subr.mxu0 0.0
  %304 = vmatpush1.msra.mxu0 %v92
  %305 = vmatprep.subr.mxu0 0.0
  %306 = vmatpush1.msra.mxu0 %v93
  %307 = vmatprep.subr.mxu0 0.0
  %308 = vmatpush1.msra.mxu0 %v94
  %309 = vmatprep.subr.mxu0 0.0
  %310 = vmatpush1.msra.mxu0 %v95
  %311 = vmatprep.subr.mxu0 0.0
  %312 = vmatpush1.msra.mxu0 %v96
  %313 = vmatprep.subr.mxu0 0.0
  %314 = vmatpush1.msra.mxu0 %v97
  %315 = vmatprep.subr.mxu0 0.0
  %316 = vmatpush1.msra.mxu0 %v98
  %317 = vmatprep.subr.mxu0 0.0
  %318 = vmatpush1.msra.mxu0 %v99
  %319 = vmatprep.subr.mxu0 0.0
  %320 = vmatpush1.msra.mxu0 %v100
  %321 = vmatprep.subr.mxu0 0.0
  %322 = vmatpush1.msra.mxu0 %v101
  %323 = vmatprep.subr.mxu0 0.0
  %324 = vmatpush1.msra.mxu0 %v102
  %325 = vmatprep.subr.mxu0 0.0
  %326 = vmatpush1.msra.mxu0 %v103
  %327 = vmatprep.subr.mxu0 0.0
  %328 = vmatpush1.msra.mxu0 %v104
  %329 = vmatprep.subr.mxu0 0.0
  %330 = vmatpush1.msra.mxu0 %v105
  %331 = vmatprep.subr.mxu0 0.0
  %332 = vmatpush1.msra.mxu0 %v106
  %333 = vmatprep.subr.mxu0 0.0
  %334 = vmatpush1.msra.mxu0 %v107
  %335 = vmatprep.subr.mxu0 0.0
  %336 = vmatpush1.msra.mxu0 %v108
  %337 = vmatprep.subr.mxu0 0.0
  %338 = vmatpush1.msra.mxu0 %v109
  %339 = vmatprep.subr.mxu0 0.0
  %340 = vmatpush1.msra.mxu0 %v110
  %341 = vmatprep.subr.mxu0 0.0
  %342 = vmatpush1.msra.mxu0 %v111
  %343 = vmatprep.subr.mxu0 0.0
  %344 = vmatpush1.msra.mxu0 %v112
  %345 = vmatprep.subr.mxu0 0.0
  %346 = vmatpush1.msra.mxu0 %v113
  %347 = vmatprep.subr.mxu0 0.0
  %348 = vmatpush1.msra.mxu0 %v114
  %349 = vmatprep.subr.mxu0 0.0
  %350 = vmatpush1.msra.mxu0 %v115
  %351 = vmatprep.subr.mxu0 0.0
  %352 = vmatpush1.msra.mxu0 %v116
  %353 = vmatprep.subr.mxu0 0.0
  %354 = vmatpush1.msra.mxu0 %v117
  %355 = vmatprep.subr.mxu0 0.0
  %356 = vmatpush1.msra.mxu0 %v118
  %357 = vmatprep.subr.mxu0 0.0
  %358 = vmatpush1.msra.mxu0 %v119
  %359 = vmatprep.subr.mxu0 0.0
  %360 = vmatpush1.msra.mxu0 %v120
  %361 = vmatprep.subr.mxu0 0.0
  %362 = vmatpush1.msra.mxu0 %v121
  %363 = vmatprep.subr.mxu0 0.0
  %364 = vmatpush1.msra.mxu0 %v122
  %365 = vmatprep.subr.mxu0 0.0
  %366 = vmatpush1.msra.mxu0 %v123
  %367 = vmatprep.mubr.f32.mxu0 %v25
  %368 = vmatmul.mubr.f32.gmra.mrb[0].mxu0 %v24
  %v369 = vpop.f32.mrb[0].mxu0
  %v370 = vadd.f32 %v300, %v369
  %v371 = vpop.f32.mrb[0].mxu0
  %372 = vdwg.mxu0
  %373 = vmatprep.subr.mxu0 0.0
  %374 = vmatpush1.msra.mxu0 %v124
  %375 = vmatprep.subr.mxu0 0.0
  %376 = vmatpush1.msra.mxu0 %v125
  %377 = vmatprep.subr.mxu0 0.0
  %378 = vmatpush1.msra.mxu0 %v126
  %379 = vmatprep.subr.mxu0 0.0
  %380 = vmatpush1.msra.mxu0 %v127
  %381 = vmatprep.subr.mxu0 0.0
  %382 = vmatpush1.msra.mxu0 %v128
  %383 = vmatprep.subr.mxu0 0.0
  %384 = vmatpush1.msra.mxu0 %v129
  %385 = vmatprep.subr.mxu0 0.0
  %386 = vmatpush1.msra.mxu0 %v130
  %387 = vmatprep.subr.mxu0 0.0
  %388 = vmatpush1.msra.mxu0 %v131
  %389 = vmatprep.subr.mxu0 0.0
  %390 = vmatpush1.msra.mxu0 %v132
  %391 = vmatprep.subr.mxu0 0.0
  %392 = vmatpush1.msra.mxu0 %v133
  %393 = vmatprep.subr.mxu0 0.0
  %394 = vmatpush1.msra.mxu0 %v134
  %395 = vmatprep.subr.mxu0 0.0
  %396 = vmatpush1.msra.mxu0 %v135
  %397 = vmatprep.subr.mxu0 0.0
  %398 = vmatpush1.msra.mxu0 %v136
  %399 = vmatprep.subr.mxu0 0.0
  %400 = vmatpush1.msra.mxu0 %v137
  %401 = vmatprep.subr.mxu0 0.0
  %402 = vmatpush1.msra.mxu0 %v138
  %403 = vmatprep.subr.mxu0 0.0
  %404 = vmatpush1.msra.mxu0 %v139
  %405 = vmatprep.subr.mxu0 0.0
  %406 = vmatpush1.msra.mxu0 %v140
  %407 = vmatprep.subr.mxu0 0.0
  %408 = vmatpush1.msra.mxu0 %v141
  %409 = vmatprep.subr.mxu0 0.0
  %410 = vmatpush1.msra.mxu0 %v142
  %411 = vmatprep.subr.mxu0 0.0
  %412 = vmatpush1.msra.mxu0 %v143
  %413 = vmatprep.subr.mxu0 0.0
  %414 = vmatpush1.msra.mxu0 %v144
  %415 = vmatprep.subr.mxu0 0.0
  %416 = vmatpush1.msra.mxu0 %v145
  %417 = vmatprep.subr.mxu0 0.0
  %418 = vmatpush1.msra.mxu0 %v146
  %419 = vmatprep.subr.mxu0 0.0
  %420 = vmatpush1.msra.mxu0 %v147
  %421 = vmatprep.subr.mxu0 0.0
  %422 = vmatpush1.msra.mxu0 %v148
  %423 = vmatprep.subr.mxu0 0.0
  %424 = vmatpush1.msra.mxu0 %v149
  %425 = vmatprep.subr.mxu0 0.0
  %426 = vmatpush1.msra.mxu0 %v150
  %427 = vmatprep.subr.mxu0 0.0
  %428 = vmatpush1.msra.mxu0 %v151
  %429 = vmatprep.subr.mxu0 0.0
  %430 = vmatpush1.msra.mxu0 %v152
  %431 = vmatprep.subr.mxu0 0.0
  %432 = vmatpush1.msra.mxu0 %v153
  %433 = vmatprep.subr.mxu0 0.0
  %434 = vmatpush1.msra.mxu0 %v154
  %435 = vmatprep.subr.mxu0 0.0
  %436 = vmatpush1.msra.mxu0 %v155
  %437 = vmatprep.mubr.f32.mxu0 %v27
  %438 = vmatmul.mubr.f32.gmra.mrb[0].mxu0 %v26
  %v439 = vpop.f32.mrb[0].mxu0
  %v440 = vadd.f32 %v370, %v439
  %v441 = vpop.f32.mrb[0].mxu0
  %442 = vdwg.mxu0
  %v443 = vmax.f32 %v440, 0.0
  %v444 = vld [vmem:[%s3] sm:$0xff]
  %v445 = vld [vmem:[%s3 + $0x8] sm:$0xff]
  %v446 = vld [vmem:[%s3 + $0x10] sm:$0xff]
  %v447 = vld [vmem:[%s3 + $0x18] sm:$0xff]
  %v448 = vld [vmem:[%s3 + $0x20] sm:$0xff]
  %v449 = vld [vmem:[%s3 + $0x28] sm:$0xff]
  %v450 = vld [vmem:[%s3 + $0x30] sm:$0xff]
  %v451 = vld [vmem:[%s3 + $0x38] sm:$0xff]
  %v452 = vld [vmem:[%s4] sm:$0x1]
  %v454 = vlaneseq
  %v455 = vshrl.u32 %v454, 7
  %v456 = vsub.s32 0, %v455
  %v457 = vrot.slane %v452, %v456
  %vm459 = vcmask 523264
  %v461 = vsel %vm459, %v443, 0
  %463 = vmatprep.subr.mxu0 0.0
  %464 = vmatpush1.msra.mxu0 %v444
  %465 = vmatprep.subr.mxu0 0.0
  %466 = vmatpush1.msra.mxu0 %v445
  %467 = vmatprep.subr.mxu0 0.0
  %468 = vmatpush1.msra.mxu0 %v446
  %469 = vmatprep.subr.mxu0 0.0
  %470 = vmatpush1.msra.mxu0 %v447
  %471 = vmatprep.subr.mxu0 0.0
  %472 = vmatpush1.msra.mxu0 %v448
  %473 = vmatprep.subr.mxu0 0.0
  %474 = vmatpush1.msra.mxu0 %v449
  %475 = vmatprep.subr.mxu0 0.0
  %476 = vmatpush1.msra.mxu0 %v450
  %477 = vmatprep.subr.mxu0 0.0
  %478 = vmatpush1.msra.mxu0 %v451
  %479 = vmatprep.subr.mxu0 0.0
  %480 = vmatpush1.msra.mxu0 0.0
  %481 = vmatprep.subr.mxu0 0.0
  %482 = vmatpush1.msra.mxu0 0.0
  %483 = vmatprep.subr.mxu0 0.0
  %484 = vmatpush1.msra.mxu0 0.0
  %485 = vmatprep.subr.mxu0 0.0
  %486 = vmatpush1.msra.mxu0 0.0
  %487 = vmatprep.subr.mxu0 0.0
  %488 = vmatpush1.msra.mxu0 0.0
  %489 = vmatprep.subr.mxu0 0.0
  %490 = vmatpush1.msra.mxu0 0.0
  %491 = vmatprep.subr.mxu0 0.0
  %492 = vmatpush1.msra.mxu0 0.0
  %493 = vmatprep.subr.mxu0 0.0
  %494 = vmatpush1.msra.mxu0 0.0
  %495 = vmatprep.subr.mxu0 0.0
  %496 = vmatpush1.msra.mxu0 0.0
  %497 = vmatprep.subr.mxu0 0.0
  %498 = vmatpush1.msra.mxu0 0.0
  %499 = vmatprep.subr.mxu0 0.0
  %500 = vmatpush1.msra.mxu0 0.0
  %501 = vmatprep.subr.mxu0 0.0
  %502 = vmatpush1.msra.mxu0 0.0
  %503 = vmatprep.subr.mxu0 0.0
  %504 = vmatpush1.msra.mxu0 0.0
  %505 = vmatprep.subr.mxu0 0.0
  %506 = vmatpush1.msra.mxu0 0.0
  %507 = vmatprep.subr.mxu0 0.0
  %508 = vmatpush1.msra.mxu0 0.0
  %509 = vmatprep.subr.mxu0 0.0
  %510 = vmatpush1.msra.mxu0 0.0
  %511 = vmatprep.subr.mxu0 0.0
  %512 = vmatpush1.msra.mxu0 0.0
  %513 = vmatprep.subr.mxu0 0.0
  %514 = vmatpush1.msra.mxu0 0.0
  %515 = vmatprep.subr.mxu0 0.0
  %516 = vmatpush1.msra.mxu0 0.0
  %517 = vmatprep.subr.mxu0 0.0
  %518 = vmatpush1.msra.mxu0 0.0
  %519 = vmatprep.subr.mxu0 0.0
  %520 = vmatpush1.msra.mxu0 0.0
  %521 = vmatprep.subr.mxu0 0.0
  %522 = vmatpush1.msra.mxu0 0.0
  %523 = vmatprep.subr.mxu0 0.0
  %524 = vmatpush1.msra.mxu0 0.0
  %525 = vmatprep.subr.mxu0 0.0
  %526 = vmatpush1.msra.mxu0 0.0
  %527 = vmatprep.mubr.f32.mxu0 0.0
  %528 = vmatmul.mubr.f32.gmra.mrb[0].mxu0 %v461
  %v529 = vpop.f32.mrb[0].mxu0
  %v530 = vadd.f32 %v457, %v529
  %v531 = vpop.f32.mrb[0].mxu0
  %532 = vdwg.mxu0
  %vm533 = vcmask 195584
  %534 = vst.msk [vmem:[%s5] sm:$0xff] %vm533, %v530
  // Predicated region
  $region22: #{cross_talk_conv_net_forward.5} parent=0 // pred_check
    _
  $region23: #{cross_talk_conv_net_forward.5} parent=0 // pred_check_branch
    %536 = sbr.rel (0) target = $region25
  $region24: #{cross_talk_conv_net_forward.5} parent=0 // pred_region
    _
  $region25: #{cross_talk_conv_net_forward.5} parent=0 // pred_fallthru
    _
  // Predicated region
  $region26: #{cross_talk_conv_net_forward.5} parent=0 // pred_check
    _
  $region27: #{cross_talk_conv_net_forward.5} parent=0 // pred_check_branch
    %538 = sbr.rel (0) target = $region29
  $region28: #{cross_talk_conv_net_forward.5} parent=0 // pred_region
    _
  $region29: #{cross_talk_conv_net_forward.5} parent=0 // pred_fallthru
    _

</llo_original>
